<compile_context>
chip_gen: v7x
topology: tpu7x:2x2x1
jax: 0.10.0
libtpu: 0.0.40
codegen_flags: <defaults>
</compile_context>

<pallas_src>
import jax
import jax.numpy as jnp
from jax.experimental import pallas as pl
from jax.experimental.pallas import tpu as pltpu


def _make_dncnn_kernel(num_layers, H, W, F, pad_l, pad_r):
    """Fused kernel body.  Grid = (batch, layer); layer axis is sequential."""
    WP = pad_l + W + pad_r
    HW = H * W

    def kernel(x_ref, w_ref, s_ref, b_ref, o_ref, act_ref):
        # x_ref:  (1, H, W, F)    input image, channels zero-padded to F, bf16
        # w_ref:  (1, 9*F, F)     this layer's 3x3 taps, im2col-flattened, bf16
        # s_ref:  (1, 1, F)       per-channel scale (BN fold), f32
        # b_ref:  (1, 1, F)       per-channel bias (conv bias + BN fold), f32
        # o_ref:  (1, H, W, F)    denoised output (first C channels real), bf16
        # act_ref:(H+2, WP, F)    activation buffer, interior at [1:H+1, 8:8+W]
        layer = pl.program_id(1)

        # Per-image setup (layer 0): zero only the halo strips (the interior
        # is fully overwritten every layer), then place the padded image.
        @pl.when(layer == 0)
        def _():
            zrow = jnp.zeros((1, WP, F), act_ref.dtype)
            act_ref[0:1, :, :] = zrow                       # top halo row
            act_ref[H + 1:H + 2, :, :] = zrow               # bottom halo row
            act_ref[:, 0:pad_l, :] = jnp.zeros((H + 2, pad_l, F), act_ref.dtype)
            act_ref[:, pad_l + W:WP, :] = jnp.zeros((H + 2, pad_r, F),
                                                    act_ref.dtype)
            act_ref[1:H + 1, pad_l:pad_l + W, :] = x_ref[0]

        # im2col: 9 shifted views concatenated along lanes -> one wide-K
        # (HW, 9F) x (9F, F) MXU matmul (K=576 fills the MXU; on v7x the MRB
        # accumulates the multi-pass K for free).
        cols = []
        for dy in range(3):
            for dx in range(3):
                c0 = pad_l - 1 + dx
                cols.append(act_ref[dy:dy + H, c0:c0 + W, :].reshape(HW, F))
        patch = jnp.concatenate(cols, axis=-1)              # (HW, 9F) bf16

        y = jnp.dot(patch, w_ref[0], preferred_element_type=jnp.float32)
        y = y * s_ref[0] + b_ref[0]                         # fused affine, f32

        # Hidden layers: ReLU and store back in place (safe: `y` depends on
        # every read of act_ref, so all loads are ordered before this store).
        @pl.when(layer < num_layers - 1)
        def _():
            act_ref[1:H + 1, pad_l:pad_l + W, :] = (
                jnp.maximum(y, 0.0).reshape(H, W, F).astype(act_ref.dtype))

        # Last layer: fold the residual and write the denoised image (bf16).
        @pl.when(layer == num_layers - 1)
        def _():
            o_ref[0] = (x_ref[0].astype(jnp.float32)
                        - y.reshape(H, W, F)).astype(o_ref.dtype)

    return kernel


def _vmem_bytes_estimate(H, W, F, WP):
    """Rough per-core VMEM footprint of the fused kernel (bytes)."""
    bf16 = 2
    act = (H + 2) * WP * F * bf16                 # activation buffer
    xblk = 2 * H * W * F * bf16                   # double-buffered input block
    oblk = 2 * H * W * F * bf16                   # double-buffered output block
    wblk = 2 * 9 * F * F * bf16                   # double-buffered weight slab
    patch = H * W * 9 * F * bf16                  # im2col temporary
    ytmp = H * W * F * 4                          # f32 pre-activation
    return act + xblk + oblk + wblk + patch + ytmp


def dncnn_pallas(x_in, w, scale, bias):
    """x_in: (N, H, W, F) bf16 (channels pre-padded).
    Returns (N, H, W, F) bf16 denoised image (first C channels real)."""
    N, H, W, F = x_in.shape
    L = w.shape[0]
    PAD_L, PAD_R = 8, 8                 # aligned interior starts at sublane 8
    WP = PAD_L + W + PAD_R

    est = _vmem_bytes_estimate(H, W, F, WP)
    vmem_limit = max(32 * 1024 * 1024, int(1.3 * est))
    if vmem_limit > 64 * 1024 * 1024:
        raise ValueError(
            f"Image {H}x{W} needs ~{est/2**20:.1f} MiB VMEM; whole-image "
            "residency exceeds the v7x budget — add row-strip tiling.")

    kernel = _make_dncnn_kernel(L, H, W, F, PAD_L, PAD_R)
    return pl.pallas_call(
        kernel,
        out_shape=jax.ShapeDtypeStruct((N, H, W, F), jnp.bfloat16),
        grid_spec=pltpu.PrefetchScalarGridSpec(
            num_scalar_prefetch=0,
            grid=(N, L),
            in_specs=[
                pl.BlockSpec((1, H, W, F), lambda n, l: (n, 0, 0, 0)),   # x
                pl.BlockSpec((1, 9 * F, F), lambda n, l: (l, 0, 0)),     # w
                pl.BlockSpec((1, 1, F), lambda n, l: (l, 0, 0)),         # scale
                pl.BlockSpec((1, 1, F), lambda n, l: (l, 0, 0)),         # bias
            ],
            out_specs=pl.BlockSpec((1, H, W, F), lambda n, l: (n, 0, 0, 0)),
            scratch_shapes=[
                pltpu.VMEM((H + 2, WP, F), jnp.bfloat16),
            ],
        ),
        compiler_params=pltpu.CompilerParams(
            dimension_semantics=("parallel", "arbitrary"),
            vmem_limit_bytes=vmem_limit),
    )(x_in, w, scale, bias)


def init_dncnn_params(key, channels=3, num_layers=17, features=64):
    """Deterministic synthetic parameters matching DnCNN.__init__ shapes,
    im2col-flattened and stacked for the fused kernel.  BN folded with
    eval-mode running stats."""
    F = features
    eps = 1e-5
    keys = jax.random.split(key, 4 * num_layers)
    ki = 0

    def conv_w(k, cin, cout):
        std = (2.0 / (9.0 * cin)) ** 0.5
        return jax.random.normal(k, (3, 3, cin, cout), jnp.float32) * std

    w_l, s_l, b_l = [], [], []

    # First layer: Conv(channels -> F) + ReLU (no BN). Pad Cin -> F with zeros.
    w = conv_w(keys[ki], channels, F); ki += 1
    b = 0.01 * jax.random.normal(keys[ki], (F,), jnp.float32); ki += 1
    w = jnp.pad(w, ((0, 0), (0, 0), (0, F - channels), (0, 0)))     # (3,3,F,F)
    w_l.append(w.reshape(9 * F, F))
    s_l.append(jnp.ones((F,), jnp.float32))
    b_l.append(b)

    # Middle layers: Conv(F -> F) + BN + ReLU.
    for _ in range(num_layers - 2):
        w = conv_w(keys[ki], F, F); ki += 1
        cb = 0.01 * jax.random.normal(keys[ki], (F,), jnp.float32); ki += 1
        gamma = 1.0 + 0.01 * jax.random.normal(keys[ki], (F,), jnp.float32); ki += 1
        beta = 0.01 * jax.random.normal(keys[ki], (F,), jnp.float32); ki += 1
        # Eval-mode BN fold with running_mean=0, running_var=1:
        scale = gamma / jnp.sqrt(1.0 + eps)
        bias = cb * scale + beta
        w_l.append(w.reshape(9 * F, F)); s_l.append(scale); b_l.append(bias)

    # Last layer: Conv(F -> channels), no BN, no ReLU. Pad Cout -> F with zeros.
    w = conv_w(keys[ki], F, channels); ki += 1
    b = 0.01 * jax.random.normal(keys[ki], (channels,), jnp.float32); ki += 1
    w = jnp.pad(w, ((0, 0), (0, 0), (0, 0), (0, F - channels)))     # (3,3,F,F)
    w_l.append(w.reshape(9 * F, F))
    s_l.append(jnp.ones((F,), jnp.float32))
    b_l.append(jnp.pad(b, (0, F - channels)))

    return dict(
        w=jnp.stack(w_l).astype(jnp.bfloat16),   # (L, 9*F, F) bf16
        scale=jnp.stack(s_l)[:, None, :],        # (L, 1, F) f32
        bias=jnp.stack(b_l)[:, None, :],         # (L, 1, F) f32
    )


@jax.jit
def dncnn_forward(x_nchw, params):
    """DnCNN forward: returns x - noise, in NCHW like the PyTorch module."""
    w, scale, bias = params["w"], params["scale"], params["bias"]
    F = w.shape[-1]
    N, C, H, W = x_nchw.shape
    x_nhwc = jnp.transpose(x_nchw, (0, 2, 3, 1))
    x_in = jnp.pad(x_nhwc, ((0, 0), (0, 0), (0, 0), (0, F - C))
                   ).astype(jnp.bfloat16)
    den = dncnn_pallas(x_in, w, scale, bias)          # (N, H, W, F) bf16
    return jnp.transpose(den[..., :C], (0, 3, 1, 2)).astype(x_nchw.dtype)


@jax.jit
def dncnn_reference(x_nchw, params):
    """Pure-JAX (lax.conv) reference mirroring the kernel's bf16/f32 numerics."""
    w, scale, bias = params["w"], params["scale"], params["bias"]
    L = w.shape[0]
    F = w.shape[-1]
    N, C, H, Wd = x_nchw.shape
    x_bf = jnp.pad(jnp.transpose(x_nchw, (0, 2, 3, 1)),
                   ((0, 0), (0, 0), (0, 0), (0, F - C))).astype(jnp.bfloat16)
    h = x_bf
    noise = None
    for layer in range(L):
        y = jax.lax.conv_general_dilated(
            h, w[layer].reshape(3, 3, F, F),
            window_strides=(1, 1), padding="SAME",
            dimension_numbers=("NHWC", "HWIO", "NHWC"),
            preferred_element_type=jnp.float32)
        y = y * scale[layer] + bias[layer]
        if layer < L - 1:
            h = jnp.maximum(y, 0.0).astype(jnp.bfloat16)
        else:
            noise = y
    den = (x_bf.astype(jnp.float32) - noise).astype(jnp.bfloat16)
    return jnp.transpose(den[..., :C], (0, 3, 1, 2)).astype(x_nchw.dtype)


if __name__ == "__main__":
    key = jax.random.PRNGKey(0)
    k_x, k_p = jax.random.split(key)

    # Small shapes consistent with the module: NCHW, channels=3.
    N, C, H, W = 2, 3, 16, 16
    x = jax.random.normal(k_x, (N, C, H, W), jnp.float32)

    params = init_dncnn_params(k_p, channels=C, num_layers=17, features=64)

    out = dncnn_forward(x, params)
    out = jax.block_until_ready(out)

    assert out.shape == (N, C, H, W), out.shape
    assert out.dtype == jnp.float32
    assert bool(jnp.all(jnp.isfinite(out)))

    # Cross-check against a pure-JAX reference with identical bf16-operand /
    # f32-accumulate numerics (differences are summation-order only).
    ref = jax.block_until_ready(dncnn_reference(x, params))
    max_err = float(jnp.max(jnp.abs(out - ref)))
    assert max_err < 5e-2, f"max |pallas - ref| = {max_err}"

    print("KERNEL_OK")
</pallas_src>

<mosaic_0001>
module attributes {stable_mosaic.version = 11 : i64} {
  func.func @kernel(%arg0: i32, %arg1: i32, %arg2: memref<1x16x16x64xbf16, #tpu.memory_space<vmem>>, %arg3: memref<1x576x64xbf16, #tpu.memory_space<vmem>>, %arg4: memref<1x1x64xf32, #tpu.memory_space<vmem>>, %arg5: memref<1x1x64xf32, #tpu.memory_space<vmem>>, %arg6: memref<1x16x16x64xbf16, #tpu.memory_space<vmem>>, %arg7: memref<18x32x64xbf16, #tpu.memory_space<vmem>>) attributes {dimension_semantics = [#tpu.dimension_semantics<parallel>, #tpu.dimension_semantics<arbitrary>], iteration_bounds = array<i64: 2, 17>, scalar_prefetch = 0 : i64, scratch_operands = 1 : i64, tpu.core_type = #tpu.core_type<tc>, window_params = [{transform_indices = @transform_0, window_bounds = array<i64: 1, 16, 16, 64>}, {transform_indices = @transform_1, window_bounds = array<i64: 1, 576, 64>}, {transform_indices = @transform_2, window_bounds = array<i64: 1, 1, 64>}, {transform_indices = @transform_3, window_bounds = array<i64: 1, 1, 64>}, {transform_indices = @transform_4, window_bounds = array<i64: 1, 16, 16, 64>}]} {
    %c0_i32 = arith.constant 0 : i32
    %0 = arith.cmpi eq, %arg1, %c0_i32 : i32
    %1 = arith.extui %0 : i1 to i32
    %c0_i32_0 = arith.constant 0 : i32
    %2 = arith.cmpi ne, %1, %c0_i32_0 : i32
    scf.if %2 {
      %cst_34 = arith.constant 0.000000e+00 : bf16
      %39 = vector.broadcast %cst_34 : bf16 to vector<1x32x64xbf16>
      %c0_35 = arith.constant 0 : index
      %c0_36 = arith.constant 0 : index
      %c0_37 = arith.constant 0 : index
      %40 = vector.load %arg7[%c0_35, %c0_36, %c0_37] : memref<18x32x64xbf16, #tpu.memory_space<vmem>>, vector<1x32x64xbf16>
      tpu.vector_store %arg7[%c0_35, %c0_36, %c0_37], %39 {strides = array<i32>} : memref<18x32x64xbf16, #tpu.memory_space<vmem>>, vector<1x32x64xbf16>,
      %c17 = arith.constant 17 : index
      %c0_38 = arith.constant 0 : index
      %c0_39 = arith.constant 0 : index
      %41 = vector.load %arg7[%c17, %c0_38, %c0_39] : memref<18x32x64xbf16, #tpu.memory_space<vmem>>, vector<1x32x64xbf16>
      tpu.vector_store %arg7[%c17, %c0_38, %c0_39], %39 {strides = array<i32>} : memref<18x32x64xbf16, #tpu.memory_space<vmem>>, vector<1x32x64xbf16>,
      %cst_40 = arith.constant 0.000000e+00 : bf16
      %42 = vector.broadcast %cst_40 : bf16 to vector<18x8x64xbf16>
      %c0_41 = arith.constant 0 : index
      %c0_42 = arith.constant 0 : index
      %c0_43 = arith.constant 0 : index
      %43 = vector.load %arg7[%c0_41, %c0_42, %c0_43] : memref<18x32x64xbf16, #tpu.memory_space<vmem>>, vector<18x8x64xbf16>
      tpu.vector_store %arg7[%c0_41, %c0_42, %c0_43], %42 {strides = array<i32>} : memref<18x32x64xbf16, #tpu.memory_space<vmem>>, vector<18x8x64xbf16>,
      %cst_44 = arith.constant 0.000000e+00 : bf16
      %44 = vector.broadcast %cst_44 : bf16 to vector<18x8x64xbf16>
      %c0_45 = arith.constant 0 : index
      %c24 = arith.constant 24 : index
      %c0_46 = arith.constant 0 : index
      %45 = vector.load %arg7[%c0_45, %c24, %c0_46] : memref<18x32x64xbf16, #tpu.memory_space<vmem>>, vector<18x8x64xbf16>
      tpu.vector_store %arg7[%c0_45, %c24, %c0_46], %44 {strides = array<i32>} : memref<18x32x64xbf16, #tpu.memory_space<vmem>>, vector<18x8x64xbf16>,
      %c0_47 = arith.constant 0 : index
      %c0_48 = arith.constant 0 : index
      %c0_49 = arith.constant 0 : index
      %c0_50 = arith.constant 0 : index
      %46 = vector.load %arg2[%c0_47, %c0_48, %c0_49, %c0_50] : memref<1x16x16x64xbf16, #tpu.memory_space<vmem>>, vector<1x16x16x64xbf16>
      %47 = vector.shape_cast %46 : vector<1x16x16x64xbf16> to vector<16x16x64xbf16>
      %c1_51 = arith.constant 1 : index
      %c8_52 = arith.constant 8 : index
      %c0_53 = arith.constant 0 : index
      %48 = vector.load %arg7[%c1_51, %c8_52, %c0_53] : memref<18x32x64xbf16, #tpu.memory_space<vmem>>, vector<16x16x64xbf16>
      tpu.vector_store %arg7[%c1_51, %c8_52, %c0_53], %47 {strides = array<i32>} : memref<18x32x64xbf16, #tpu.memory_space<vmem>>, vector<16x16x64xbf16>,
    } else {
    }
    %c0 = arith.constant 0 : index
    %c7 = arith.constant 7 : index
    %c0_1 = arith.constant 0 : index
    %3 = vector.load %arg7[%c0, %c7, %c0_1] : memref<18x32x64xbf16, #tpu.memory_space<vmem>>, vector<16x16x64xbf16>
    %4 = vector.shape_cast %3 : vector<16x16x64xbf16> to vector<256x64xbf16>
    %c0_2 = arith.constant 0 : index
    %c8 = arith.constant 8 : index
    %c0_3 = arith.constant 0 : index
    %5 = vector.load %arg7[%c0_2, %c8, %c0_3] : memref<18x32x64xbf16, #tpu.memory_space<vmem>>, vector<16x16x64xbf16>
    %6 = vector.shape_cast %5 : vector<16x16x64xbf16> to vector<256x64xbf16>
    %c0_4 = arith.constant 0 : index
    %c9 = arith.constant 9 : index
    %c0_5 = arith.constant 0 : index
    %7 = vector.load %arg7[%c0_4, %c9, %c0_5] : memref<18x32x64xbf16, #tpu.memory_space<vmem>>, vector<16x16x64xbf16>
    %8 = vector.shape_cast %7 : vector<16x16x64xbf16> to vector<256x64xbf16>
    %c1 = arith.constant 1 : index
    %c7_6 = arith.constant 7 : index
    %c0_7 = arith.constant 0 : index
    %9 = vector.load %arg7[%c1, %c7_6, %c0_7] : memref<18x32x64xbf16, #tpu.memory_space<vmem>>, vector<16x16x64xbf16>
    %10 = vector.shape_cast %9 : vector<16x16x64xbf16> to vector<256x64xbf16>
    %c1_8 = arith.constant 1 : index
    %c8_9 = arith.constant 8 : index
    %c0_10 = arith.constant 0 : index
    %11 = vector.load %arg7[%c1_8, %c8_9, %c0_10] : memref<18x32x64xbf16, #tpu.memory_space<vmem>>, vector<16x16x64xbf16>
    %12 = vector.shape_cast %11 : vector<16x16x64xbf16> to vector<256x64xbf16>
    %c1_11 = arith.constant 1 : index
    %c9_12 = arith.constant 9 : index
    %c0_13 = arith.constant 0 : index
    %13 = vector.load %arg7[%c1_11, %c9_12, %c0_13] : memref<18x32x64xbf16, #tpu.memory_space<vmem>>, vector<16x16x64xbf16>
    %14 = vector.shape_cast %13 : vector<16x16x64xbf16> to vector<256x64xbf16>
    %c2 = arith.constant 2 : index
    %c7_14 = arith.constant 7 : index
    %c0_15 = arith.constant 0 : index
    %15 = vector.load %arg7[%c2, %c7_14, %c0_15] : memref<18x32x64xbf16, #tpu.memory_space<vmem>>, vector<16x16x64xbf16>
    %16 = vector.shape_cast %15 : vector<16x16x64xbf16> to vector<256x64xbf16>
    %c2_16 = arith.constant 2 : index
    %c8_17 = arith.constant 8 : index
    %c0_18 = arith.constant 0 : index
    %17 = vector.load %arg7[%c2_16, %c8_17, %c0_18] : memref<18x32x64xbf16, #tpu.memory_space<vmem>>, vector<16x16x64xbf16>
    %18 = vector.shape_cast %17 : vector<16x16x64xbf16> to vector<256x64xbf16>
    %c2_19 = arith.constant 2 : index
    %c9_20 = arith.constant 9 : index
    %c0_21 = arith.constant 0 : index
    %19 = vector.load %arg7[%c2_19, %c9_20, %c0_21] : memref<18x32x64xbf16, #tpu.memory_space<vmem>>, vector<16x16x64xbf16>
    %20 = vector.shape_cast %19 : vector<16x16x64xbf16> to vector<256x64xbf16>
    %21 = tpu.concatenate %4, %6, %8, %10, %12, %14, %16, %18, %20 in 1 : vector<256x64xbf16>, vector<256x64xbf16>, vector<256x64xbf16>, vector<256x64xbf16>, vector<256x64xbf16>, vector<256x64xbf16>, vector<256x64xbf16>, vector<256x64xbf16>, vector<256x64xbf16> -> vector<256x576xbf16>
    %c0_22 = arith.constant 0 : index
    %c0_23 = arith.constant 0 : index
    %c0_24 = arith.constant 0 : index
    %22 = vector.load %arg3[%c0_22, %c0_23, %c0_24] : memref<1x576x64xbf16, #tpu.memory_space<vmem>>, vector<1x576x64xbf16>
    %23 = vector.shape_cast %22 : vector<1x576x64xbf16> to vector<576x64xbf16>
    %cst = arith.constant dense<0.000000e+00> : vector<256x64xf32>
    %24 = tpu.matmul %21, %23, %cst {dimension_numbers = #tpu.dot_dimension_numbers<[1], [0], [0], [1], [0, 0, 1, 1], [], []>} : vector<256x576xbf16>, vector<576x64xbf16>, vector<256x64xf32> -> vector<256x64xf32>
    %c0_25 = arith.constant 0 : index
    %c0_26 = arith.constant 0 : index
    %c0_27 = arith.constant 0 : index
    %25 = vector.load %arg4[%c0_25, %c0_26, %c0_27] : memref<1x1x64xf32, #tpu.memory_space<vmem>>, vector<1x1x64xf32>
    %26 = vector.shape_cast %25 : vector<1x1x64xf32> to vector<1x64xf32>
    %27 = vector.broadcast %26 : vector<1x64xf32> to vector<256x64xf32>
    %28 = arith.mulf %24, %27 : vector<256x64xf32>
    %c0_28 = arith.constant 0 : index
    %c0_29 = arith.constant 0 : index
    %c0_30 = arith.constant 0 : index
    %29 = vector.load %arg5[%c0_28, %c0_29, %c0_30] : memref<1x1x64xf32, #tpu.memory_space<vmem>>, vector<1x1x64xf32>
    %30 = vector.shape_cast %29 : vector<1x1x64xf32> to vector<1x64xf32>
    %31 = vector.broadcast %30 : vector<1x64xf32> to vector<256x64xf32>
    %32 = arith.addf %28, %31 : vector<256x64xf32>
    %c16_i32 = arith.constant 16 : i32
    %33 = arith.cmpi slt, %arg1, %c16_i32 : i32
    %34 = arith.extui %33 : i1 to i32
    %c0_i32_31 = arith.constant 0 : i32
    %35 = arith.cmpi ne, %34, %c0_i32_31 : i32
    scf.if %35 {
      %cst_34 = arith.constant 0.000000e+00 : f32
      %39 = vector.broadcast %cst_34 : f32 to vector<256x64xf32>
      %40 = arith.maximumf %32, %39 : vector<256x64xf32>
      %41 = vector.shape_cast %40 : vector<256x64xf32> to vector<16x16x64xf32>
      %42 = arith.truncf %41 : vector<16x16x64xf32> to vector<16x16x64xbf16>
      %c1_35 = arith.constant 1 : index
      %c8_36 = arith.constant 8 : index
      %c0_37 = arith.constant 0 : index
      %43 = vector.load %arg7[%c1_35, %c8_36, %c0_37] : memref<18x32x64xbf16, #tpu.memory_space<vmem>>, vector<16x16x64xbf16>
      tpu.vector_store %arg7[%c1_35, %c8_36, %c0_37], %42 {strides = array<i32>} : memref<18x32x64xbf16, #tpu.memory_space<vmem>>, vector<16x16x64xbf16>,
    } else {
    }
    %c16_i32_32 = arith.constant 16 : i32
    %36 = arith.cmpi eq, %arg1, %c16_i32_32 : i32
    %37 = arith.extui %36 : i1 to i32
    %c0_i32_33 = arith.constant 0 : i32
    %38 = arith.cmpi ne, %37, %c0_i32_33 : i32
    scf.if %38 {
      %c0_34 = arith.constant 0 : index
      %c0_35 = arith.constant 0 : index
      %c0_36 = arith.constant 0 : index
      %c0_37 = arith.constant 0 : index
      %39 = vector.load %arg2[%c0_34, %c0_35, %c0_36, %c0_37] : memref<1x16x16x64xbf16, #tpu.memory_space<vmem>>, vector<1x16x16x64xbf16>
      %40 = vector.shape_cast %39 : vector<1x16x16x64xbf16> to vector<16x16x64xbf16>
      %41 = arith.extf %40 : vector<16x16x64xbf16> to vector<16x16x64xf32>
      %42 = vector.shape_cast %32 : vector<256x64xf32> to vector<16x16x64xf32>
      %43 = arith.subf %41, %42 : vector<16x16x64xf32>
      %44 = arith.truncf %43 : vector<16x16x64xf32> to vector<16x16x64xbf16>
      %c0_38 = arith.constant 0 : index
      %c0_39 = arith.constant 0 : index
      %c0_40 = arith.constant 0 : index
      %c0_41 = arith.constant 0 : index
      %45 = vector.load %arg6[%c0_38, %c0_39, %c0_40, %c0_41] : memref<1x16x16x64xbf16, #tpu.memory_space<vmem>>, vector<1x16x16x64xbf16>
      %46 = vector.shape_cast %45 : vector<1x16x16x64xbf16> to vector<16x16x64xbf16>
      %47 = vector.shape_cast %44 : vector<16x16x64xbf16> to vector<1x16x16x64xbf16>
      tpu.vector_store %arg6[%c0_38, %c0_39, %c0_40, %c0_41], %47 {strides = array<i32>} : memref<1x16x16x64xbf16, #tpu.memory_space<vmem>>, vector<1x16x16x64xbf16>,
    } else {
    }
    return
  }
  func.func @transform_0(%arg0: i32, %arg1: i32) -> (i32, i32, i32, i32) {
    %c0_i32 = arith.constant 0 : i32
    %c0_i32_0 = arith.constant 0 : i32
    %c0_i32_1 = arith.constant 0 : i32
    %c0_i32_2 = arith.constant 0 : i32
    return %arg0, %c0_i32, %c0_i32_0, %c0_i32_1 : i32, i32, i32, i32
  }
  func.func @transform_1(%arg0: i32, %arg1: i32) -> (i32, i32, i32) {
    %c0_i32 = arith.constant 0 : i32
    %c0_i32_0 = arith.constant 0 : i32
    %c0_i32_1 = arith.constant 0 : i32
    return %arg1, %c0_i32, %c0_i32_0 : i32, i32, i32
  }
  func.func @transform_2(%arg0: i32, %arg1: i32) -> (i32, i32, i32) {
    %c0_i32 = arith.constant 0 : i32
    %c0_i32_0 = arith.constant 0 : i32
    %c0_i32_1 = arith.constant 0 : i32
    return %arg1, %c0_i32, %c0_i32_0 : i32, i32, i32
  }
  func.func @transform_3(%arg0: i32, %arg1: i32) -> (i32, i32, i32) {
    %c0_i32 = arith.constant 0 : i32
    %c0_i32_0 = arith.constant 0 : i32
    %c0_i32_1 = arith.constant 0 : i32
    return %arg1, %c0_i32, %c0_i32_0 : i32, i32, i32
  }
  func.func @transform_4(%arg0: i32, %arg1: i32) -> (i32, i32, i32, i32) {
    %c0_i32 = arith.constant 0 : i32
    %c0_i32_0 = arith.constant 0 : i32
    %c0_i32_1 = arith.constant 0 : i32
    %c0_i32_2 = arith.constant 0 : i32
    return %arg0, %c0_i32, %c0_i32_0, %c0_i32_1 : i32, i32, i32, i32
  }
}

</mosaic_0001>

<llo_original>
// kernel: dncnn_forward.1
$region0: #{dncnn_forward.1}
  #allocation0 [shape = 'u32[]', space=smem, size = 0x4, offset = 0x4, fixed_abs, tag = 'smem constant byte address 0x4 - core index']
  #allocation1 [shape = 'u32[144,128]{1,0:T(1,128)}', space=vmem, size = 0x12000, scoped, tag = 'internal scratch']
  #allocation2 [shape = 'bf16[18,32,64]{2,1,0:T(16,128)(2,1)}', space=vmem, size = 0x24000, scoped, tag = 'scratch operand']
  %s0 = inlined_call_operand.vmem [shape: bf16[2,16,16,64], index: 0, kind: input, shape index: {}]
  %s1 = inlined_call_operand.vmem [shape: bf16[17,576,64], index: 1, kind: input, shape index: {}]
  %s2 = inlined_call_operand.vmem [shape: f32[17,1,64], index: 2, kind: input, shape index: {}]
  %s3 = inlined_call_operand.vmem [shape: f32[17,1,64], index: 3, kind: input, shape index: {}]
  %s4 = inlined_call_operand.vmem [shape: bf16[2,16,16,64], index: 4, kind: output, shape index: {}]
  %s5 = sld [smem:[#allocation0]]
  $region61: #{dncnn_forward.1} parent=0
    _
  %s7 = ssub.s32 1, %s5
  %s8 = scalar_select 0, %s7, %s5
  loop: start=0, step=1, limit=36
  $region2: #{dncnn_forward.1} parent=0 // loop_pre_header
    _
  $region3: #{dncnn_forward.1} parent=0 // loop_header
    %s10 = sphi 0, %s14
    %p11 = scmp.ge.s32.totalorder %s10, 36
    %s17 = sphi 0, %s29
    %s18 = sphi 0, %s25
    %s19 = sphi 0, %s17
    %s20 = sphi 0, %s18
    %s21 = sphi 0, %s19
    %s22 = sphi 0, %s20
    %s32 = sphi 0, %s34
    %s35 = sphi 0, %s32
    %s36 = sphi 0, %s35
    %s52 = sphi 0, %s36
    %s58 = sphi 0, %s60
    %s61 = sphi 0, %s58
    %s62 = sphi 0, %s61
    %s78 = sphi 0, %s62
    %s84 = sphi 0, %s86
    %s87 = sphi 0, %s84
    %s88 = sphi 0, %s87
    %s104 = sphi 0, %s88
    %s110 = sphi 0, %s112
    %s113 = sphi 0, %s110
    %s114 = sphi 0, %s113
    %s130 = sphi 0, %s114
    %s136 = sphi 0, %s138
    %s139 = sphi 0, %s136
    %s140 = sphi 0, %s139
    %s156 = sphi 0, %s140
  $region4: #{dncnn_forward.1} parent=0 // loop_header_branch
    %13 = sbr.rel (%p11) target = $region8
  $region5: #{dncnn_forward.1} parent=0 // loop_body
    %s15 = ssub.s32 %s10, 1
    %s16 = ssub.s32 %s10, 2
    %s23 = sadd.s32 1, %s18
    %p24 = scmp.ge.s32.totalorder %s23, 17
    %s25 = scalar_select %p24, 0, %s23
    %s26 = sadd.s32 1, %s17
    %s27 = scalar_select %p24, %s26, %s17
    %p28 = scmp.ge.s32.totalorder %s27, 2
    %s29 = scalar_select %p28, 0, %s27
    %s30 = ssub.s32 %s17, %s29
    %p31 = scmp.eq.s32.totalorder %s30, 0
    %s33 = sadd.s32 %s32, 1
    %s34 = scalar_select %p31, %s32, %s33
    %p37 = pneg %p31
    %p38 = scmp.eq.s32.totalorder %s10, 33
    %p39 = por %p37, %p38
    %p40 = scmp.ne.s32.totalorder %s32, %s35
    %p41 = scmp.eq.s32.totalorder %s10, 0
    %p42 = por %p40, %p41
    %p43 = scmp.ne.s32.totalorder %s32, %s35
    %p44 = scmp.eq.s32.totalorder %s15, 33
    %p45 = por %p43, %p44
    %p46 = scmp.ne.s32.totalorder %s35, %s36
    %p47 = scmp.eq.s32.totalorder %s15, 0
    %p48 = por %p46, %p47
    %p49 = scmp.ne.s32.totalorder %s35, %s36
    %p50 = scmp.eq.s32.totalorder %s16, 33
    %p51 = por %p49, %p50
    %p53 = scmp.ne.s32.totalorder %s36, %s52
    %p54 = scmp.eq.s32.totalorder %s16, 0
    %p55 = por %p53, %p54
    %s56 = ssub.s32 %s18, %s25
    %p57 = scmp.eq.s32.totalorder %s56, 0
    %s59 = sadd.s32 %s58, 1
    %s60 = scalar_select %p57, %s58, %s59
    %p63 = pneg %p57
    %p64 = scmp.eq.s32.totalorder %s10, 33
    %p65 = por %p63, %p64
    %p66 = scmp.ne.s32.totalorder %s58, %s61
    %p67 = scmp.eq.s32.totalorder %s10, 0
    %p68 = por %p66, %p67
    %p69 = scmp.ne.s32.totalorder %s58, %s61
    %p70 = scmp.eq.s32.totalorder %s15, 33
    %p71 = por %p69, %p70
    %p72 = scmp.ne.s32.totalorder %s61, %s62
    %p73 = scmp.eq.s32.totalorder %s15, 0
    %p74 = por %p72, %p73
    %p75 = scmp.ne.s32.totalorder %s61, %s62
    %p76 = scmp.eq.s32.totalorder %s16, 33
    %p77 = por %p75, %p76
    %p79 = scmp.ne.s32.totalorder %s62, %s78
    %p80 = scmp.eq.s32.totalorder %s16, 0
    %p81 = por %p79, %p80
    %s82 = ssub.s32 %s18, %s25
    %p83 = scmp.eq.s32.totalorder %s82, 0
    %s85 = sadd.s32 %s84, 1
    %s86 = scalar_select %p83, %s84, %s85
    %p89 = pneg %p83
    %p90 = scmp.eq.s32.totalorder %s10, 33
    %p91 = por %p89, %p90
    %p92 = scmp.ne.s32.totalorder %s84, %s87
    %p93 = scmp.eq.s32.totalorder %s10, 0
    %p94 = por %p92, %p93
    %p95 = scmp.ne.s32.totalorder %s84, %s87
    %p96 = scmp.eq.s32.totalorder %s15, 33
    %p97 = por %p95, %p96
    %p98 = scmp.ne.s32.totalorder %s87, %s88
    %p99 = scmp.eq.s32.totalorder %s15, 0
    %p100 = por %p98, %p99
    %p101 = scmp.ne.s32.totalorder %s87, %s88
    %p102 = scmp.eq.s32.totalorder %s16, 33
    %p103 = por %p101, %p102
    %p105 = scmp.ne.s32.totalorder %s88, %s104
    %p106 = scmp.eq.s32.totalorder %s16, 0
    %p107 = por %p105, %p106
    %s108 = ssub.s32 %s18, %s25
    %p109 = scmp.eq.s32.totalorder %s108, 0
    %s111 = sadd.s32 %s110, 1
    %s112 = scalar_select %p109, %s110, %s111
    %p115 = pneg %p109
    %p116 = scmp.eq.s32.totalorder %s10, 33
    %p117 = por %p115, %p116
    %p118 = scmp.ne.s32.totalorder %s110, %s113
    %p119 = scmp.eq.s32.totalorder %s10, 0
    %p120 = por %p118, %p119
    %p121 = scmp.ne.s32.totalorder %s110, %s113
    %p122 = scmp.eq.s32.totalorder %s15, 33
    %p123 = por %p121, %p122
    %p124 = scmp.ne.s32.totalorder %s113, %s114
    %p125 = scmp.eq.s32.totalorder %s15, 0
    %p126 = por %p124, %p125
    %p127 = scmp.ne.s32.totalorder %s113, %s114
    %p128 = scmp.eq.s32.totalorder %s16, 33
    %p129 = por %p127, %p128
    %p131 = scmp.ne.s32.totalorder %s114, %s130
    %p132 = scmp.eq.s32.totalorder %s16, 0
    %p133 = por %p131, %p132
    %s134 = ssub.s32 %s17, %s29
    %p135 = scmp.eq.s32.totalorder %s134, 0
    %s137 = sadd.s32 %s136, 1
    %s138 = scalar_select %p135, %s136, %s137
    %p141 = pneg %p135
    %p142 = scmp.eq.s32.totalorder %s10, 33
    %p143 = por %p141, %p142
    %p144 = scmp.ne.s32.totalorder %s136, %s139
    %p145 = scmp.eq.s32.totalorder %s10, 0
    %p146 = por %p144, %p145
    %p147 = scmp.ne.s32.totalorder %s136, %s139
    %p148 = scmp.eq.s32.totalorder %s15, 33
    %p149 = por %p147, %p148
    %p150 = scmp.ne.s32.totalorder %s139, %s140
    %p151 = scmp.eq.s32.totalorder %s15, 0
    %p152 = por %p150, %p151
    %p153 = scmp.ne.s32.totalorder %s139, %s140
    %p154 = scmp.eq.s32.totalorder %s16, 33
    %p155 = por %p153, %p154
    %p157 = scmp.ne.s32.totalorder %s140, %s156
    %p158 = scmp.eq.s32.totalorder %s16, 0
    %p159 = por %p157, %p158
    %p160 = scmp.le.s32.totalorder 1, %s10
    %p161 = scmp.lt.s32.totalorder %s10, 35
    %p162 = pnand %p160, %p161
    %p163 = pneg %p162
    // Predicated region
    $region9: #{dncnn_forward.1} parent=5 // pred_check
      _
    $region10: #{dncnn_forward.1} parent=5 // pred_check_branch
      %165 = sbr.rel (%p162) target = $region12
    $region11: #{dncnn_forward.1} parent=5 // pred_region
      %s166 = ssub.s32 %s10, 1
    $region12: #{dncnn_forward.1} parent=5 // pred_fallthru
      _
    %p167 = scmp.lt.s32.totalorder %s10, 34
    // Predicated region
    $region13: #{dncnn_forward.1} parent=5 // pred_check
      %p168 = pneg %p167
    $region14: #{dncnn_forward.1} parent=5 // pred_check_branch
      %170 = sbr.rel (%p168) target = $region16
    $region15: #{dncnn_forward.1} parent=5 // pred_region
      // Predicated region
      $region17: #{dncnn_forward.1} parent=15 // pred_check
        %p171 = pneg %p42
      $region18: #{dncnn_forward.1} parent=15 // pred_check_branch
        %173 = sbr.rel (%p171) target = $region20
      $region19: #{dncnn_forward.1} parent=15 // pred_region
        %p174 = scmp.lt.s32.totalorder %s17, 1
        %s175 = scalar_select %p174, %s17, 1
        %s176 = smul.addr %s175, 32
        %s177 = smul.addr %s176, 4
        %s178 = scalar_lea.vmem %s0, %s177
      $region20: #{dncnn_forward.1} parent=15 // pred_fallthru
        _
      // Predicated region
      $region21: #{dncnn_forward.1} parent=15 // pred_check
        %p179 = pneg %p68
      $region22: #{dncnn_forward.1} parent=15 // pred_check_branch
        %181 = sbr.rel (%p179) target = $region24
      $region23: #{dncnn_forward.1} parent=15 // pred_region
        %p182 = scmp.lt.s32.totalorder %s18, 16
        %s183 = scalar_select %p182, %s18, 16
        %s184 = smul.addr %s183, 72
        %s185 = smul.addr %s184, 4
        %s186 = scalar_lea.vmem %s1, %s185
      $region24: #{dncnn_forward.1} parent=15 // pred_fallthru
        _
      // Predicated region
      $region25: #{dncnn_forward.1} parent=15 // pred_check
        %p187 = pneg %p94
      $region26: #{dncnn_forward.1} parent=15 // pred_check_branch
        %189 = sbr.rel (%p187) target = $region28
      $region27: #{dncnn_forward.1} parent=15 // pred_region
        %p190 = scmp.lt.s32.totalorder %s18, 16
        %s191 = scalar_select %p190, %s18, 16
        %s192 = scalar_lea.vmem %s2, %s191
      $region28: #{dncnn_forward.1} parent=15 // pred_fallthru
        _
      // Predicated region
      $region29: #{dncnn_forward.1} parent=15 // pred_check
        %p193 = pneg %p120
      $region30: #{dncnn_forward.1} parent=15 // pred_check_branch
        %195 = sbr.rel (%p193) target = $region32
      $region31: #{dncnn_forward.1} parent=15 // pred_region
        %p196 = scmp.lt.s32.totalorder %s18, 16
        %s197 = scalar_select %p196, %s18, 16
        %s198 = scalar_lea.vmem %s3, %s197
      $region32: #{dncnn_forward.1} parent=15 // pred_fallthru
        _
    $region16: #{dncnn_forward.1} parent=5 // pred_fallthru
      _
    %p199 = scmp.le.s32.totalorder 1, %s10
    %p200 = scmp.lt.s32.totalorder %s10, 35
    %p201 = pnand %p199, %p200
    %p202 = pneg %p201
    // Predicated region
    $region33: #{dncnn_forward.1} parent=5 // pred_check
      _
    $region34: #{dncnn_forward.1} parent=5 // pred_check_branch
      %204 = sbr.rel (%p201) target = $region36
    $region35: #{dncnn_forward.1} parent=5 // pred_region
      %s205 = ssub.s32 %s10, 1
      %p206 = scmp.lt.s32.totalorder %s19, 1
      %s207 = scalar_select %p206, %s19, 1
      %s208 = smul.addr %s207, 32
      %s209 = smul.addr %s208, 4
      %s210 = scalar_lea.vmem %s0, %s209
      %p211 = pneg %p48
      %p212 = pneg %p45
      %p213 = scmp.lt.s32.totalorder %s20, 16
      %s214 = scalar_select %p213, %s20, 16
      %s215 = smul.addr %s214, 72
      %s216 = smul.addr %s215, 4
      %s217 = scalar_lea.vmem %s1, %s216
      %p218 = pneg %p74
      %p219 = pneg %p71
      %p220 = scmp.lt.s32.totalorder %s20, 16
      %s221 = scalar_select %p220, %s20, 16
      %s222 = scalar_lea.vmem %s2, %s221
      %p223 = pneg %p100
      %p224 = pneg %p97
      %p225 = scmp.lt.s32.totalorder %s20, 16
      %s226 = scalar_select %p225, %s20, 16
      %s227 = scalar_lea.vmem %s3, %s226
      %p228 = pneg %p126
      %p229 = pneg %p123
      %p230 = pneg %p152
      %p231 = pneg %p149
      %p232 = scmp.lt.s32.totalorder %s19, 1
      %s233 = scalar_select %p232, %s19, 1
      %s234 = smul.addr %s233, 32
      %s235 = smul.addr %s234, 4
      %s236 = scalar_lea.vmem %s4, %s235
      %p237 = scmp.lt.s32.totalorder %s19, 1
      %s238 = scalar_select %p237, %s19, 1
      %s239 = smul.addr %s238, 32
      %s240 = smul.addr %s239, 4
      %s241 = scalar_lea.vmem %s0, %s240
      %p242 = scmp.lt.s32.totalorder %s20, 16
      %s243 = scalar_select %p242, %s20, 16
      %s244 = smul.addr %s243, 72
      %s245 = smul.addr %s244, 4
      %s246 = scalar_lea.vmem %s1, %s245
      %p247 = scmp.lt.s32.totalorder %s20, 16
      %s248 = scalar_select %p247, %s20, 16
      %s249 = scalar_lea.vmem %s2, %s248
      %p250 = scmp.lt.s32.totalorder %s20, 16
      %s251 = scalar_select %p250, %s20, 16
      %s252 = scalar_lea.vmem %s3, %s251
      %p253 = scmp.lt.s32.totalorder %s19, 1
      %s254 = scalar_select %p253, %s19, 1
      %s255 = smul.addr %s254, 32
      %s256 = smul.addr %s255, 4
      %s257 = scalar_lea.vmem %s4, %s256
      %p259 = scmp.eq.s32.totalorder %s20, 0
      // Predicated region
      $region37: #{dncnn_forward.1} parent=35 // pred_check
        %p260 = pneg %p259
      $region38: #{dncnn_forward.1} parent=35 // pred_check_branch
        %262 = sbr.rel (%p260) target = $region40
      $region39: #{dncnn_forward.1} parent=35 // pred_region
        %vm263 = vcmask 523264
        %264 = vst.msk [vmem:[#allocation2] sm:$0xff] %vm263, 0
        %265 = vst.msk [vmem:[#allocation2 + $0x8] sm:$0xff] %vm263, 0
        %s266 = scalar_lea.vmem [#allocation2], 272
        %267 = vst.msk [vmem:[%s266] sm:$0xff] %vm263, 0
        %268 = vst.msk [vmem:[%s266 + $0x8] sm:$0xff] %vm263, 0
        %vm269 = vcmask 519168
        %270 = vst.msk [vmem:[#allocation2] sm:$0xf] %vm269, 0
        %271 = vst.msk [vmem:[#allocation2 + $0x10] sm:$0xf] %vm269, 0
        %272 = vst.msk [vmem:[#allocation2 + $0x20] sm:$0xf] %vm269, 0
        %273 = vst.msk [vmem:[#allocation2 + $0x30] sm:$0xf] %vm269, 0
        %274 = vst.msk [vmem:[#allocation2 + $0x40] sm:$0xf] %vm269, 0
        %275 = vst.msk [vmem:[#allocation2 + $0x50] sm:$0xf] %vm269, 0
        %276 = vst.msk [vmem:[#allocation2 + $0x60] sm:$0xf] %vm269, 0
        %277 = vst.msk [vmem:[#allocation2 + $0x70] sm:$0xf] %vm269, 0
        %278 = vst.msk [vmem:[#allocation2 + $0x80] sm:$0xf] %vm269, 0
        %279 = vst.msk [vmem:[#allocation2 + $0x90] sm:$0xf] %vm269, 0
        %280 = vst.msk [vmem:[#allocation2 + $0xa0] sm:$0xf] %vm269, 0
        %281 = vst.msk [vmem:[#allocation2 + $0xb0] sm:$0xf] %vm269, 0
        %282 = vst.msk [vmem:[#allocation2 + $0xc0] sm:$0xf] %vm269, 0
        %283 = vst.msk [vmem:[#allocation2 + $0xd0] sm:$0xf] %vm269, 0
        %284 = vst.msk [vmem:[#allocation2 + $0xe0] sm:$0xf] %vm269, 0
        %285 = vst.msk [vmem:[#allocation2 + $0xf0] sm:$0xf] %vm269, 0
        %286 = vst.msk [vmem:[#allocation2 + $0x100] sm:$0xf] %vm269, 0
        %287 = vst.msk [vmem:[#allocation2 + $0x110] sm:$0xf] %vm269, 0
        %vm288 = vcmask 523268
        %289 = vst.msk [vmem:[#allocation2 + $0x8] sm:$0xf0] %vm288, 0
        %290 = vst.msk [vmem:[#allocation2 + $0x18] sm:$0xf0] %vm288, 0
        %291 = vst.msk [vmem:[#allocation2 + $0x28] sm:$0xf0] %vm288, 0
        %292 = vst.msk [vmem:[#allocation2 + $0x38] sm:$0xf0] %vm288, 0
        %293 = vst.msk [vmem:[#allocation2 + $0x48] sm:$0xf0] %vm288, 0
        %294 = vst.msk [vmem:[#allocation2 + $0x58] sm:$0xf0] %vm288, 0
        %295 = vst.msk [vmem:[#allocation2 + $0x68] sm:$0xf0] %vm288, 0
        %296 = vst.msk [vmem:[#allocation2 + $0x78] sm:$0xf0] %vm288, 0
        %297 = vst.msk [vmem:[#allocation2 + $0x88] sm:$0xf0] %vm288, 0
        %298 = vst.msk [vmem:[#allocation2 + $0x98] sm:$0xf0] %vm288, 0
        %299 = vst.msk [vmem:[#allocation2 + $0xa8] sm:$0xf0] %vm288, 0
        %300 = vst.msk [vmem:[#allocation2 + $0xb8] sm:$0xf0] %vm288, 0
        %301 = vst.msk [vmem:[#allocation2 + $0xc8] sm:$0xf0] %vm288, 0
        %302 = vst.msk [vmem:[#allocation2 + $0xd8] sm:$0xf0] %vm288, 0
        %303 = vst.msk [vmem:[#allocation2 + $0xe8] sm:$0xf0] %vm288, 0
        %304 = vst.msk [vmem:[#allocation2 + $0xf8] sm:$0xf0] %vm288, 0
        %305 = vst.msk [vmem:[#allocation2 + $0x108] sm:$0xf0] %vm288, 0
        %306 = vst.msk [vmem:[#allocation2 + $0x118] sm:$0xf0] %vm288, 0
        %v307 = vld [vmem:[%s241] sm:$0xf]
        %v308 = vld [vmem:[%s241 + $0x4] sm:$0xf]
        %v309 = vld [vmem:[%s241 + $0x8] sm:$0xf]
        %v310 = vld [vmem:[%s241 + $0xc] sm:$0xf]
        %v311 = vld [vmem:[%s241 + $0x10] sm:$0xf]
        %v312 = vld [vmem:[%s241 + $0x14] sm:$0xf]
        %v313 = vld [vmem:[%s241 + $0x18] sm:$0xf]
        %v314 = vld [vmem:[%s241 + $0x1c] sm:$0xf]
        %v315 = vld [vmem:[%s241 + $0x20] sm:$0xf]
        %v316 = vld [vmem:[%s241 + $0x24] sm:$0xf]
        %v317 = vld [vmem:[%s241 + $0x28] sm:$0xf]
        %v318 = vld [vmem:[%s241 + $0x2c] sm:$0xf]
        %v319 = vld [vmem:[%s241 + $0x30] sm:$0xf]
        %v320 = vld [vmem:[%s241 + $0x34] sm:$0xf]
        %v321 = vld [vmem:[%s241 + $0x38] sm:$0xf]
        %v322 = vld [vmem:[%s241 + $0x3c] sm:$0xf]
        %v323 = vld [vmem:[%s241 + $0x40] sm:$0xf]
        %v324 = vld [vmem:[%s241 + $0x44] sm:$0xf]
        %v325 = vld [vmem:[%s241 + $0x48] sm:$0xf]
        %v326 = vld [vmem:[%s241 + $0x4c] sm:$0xf]
        %v327 = vld [vmem:[%s241 + $0x50] sm:$0xf]
        %v328 = vld [vmem:[%s241 + $0x54] sm:$0xf]
        %v329 = vld [vmem:[%s241 + $0x58] sm:$0xf]
        %v330 = vld [vmem:[%s241 + $0x5c] sm:$0xf]
        %v331 = vld [vmem:[%s241 + $0x60] sm:$0xf]
        %v332 = vld [vmem:[%s241 + $0x64] sm:$0xf]
        %v333 = vld [vmem:[%s241 + $0x68] sm:$0xf]
        %v334 = vld [vmem:[%s241 + $0x6c] sm:$0xf]
        %v335 = vld [vmem:[%s241 + $0x70] sm:$0xf]
        %v336 = vld [vmem:[%s241 + $0x74] sm:$0xf]
        %v337 = vld [vmem:[%s241 + $0x78] sm:$0xf]
        %v338 = vld [vmem:[%s241 + $0x7c] sm:$0xf]
        %v371 = vunpack.c.l.b16 %v307
        %v372 = vunpack.c.l.b16 %v308
        %v373 = vunpack.c.l.b16 %v309
        %v374 = vunpack.c.l.b16 %v310
        %v375 = vunpack.c.l.b16 %v311
        %v376 = vunpack.c.l.b16 %v312
        %v377 = vunpack.c.l.b16 %v313
        %v378 = vunpack.c.l.b16 %v314
        %v379 = vunpack.c.l.b16 %v315
        %v380 = vunpack.c.l.b16 %v316
        %v381 = vunpack.c.l.b16 %v317
        %v382 = vunpack.c.l.b16 %v318
        %v383 = vunpack.c.l.b16 %v319
        %v384 = vunpack.c.l.b16 %v320
        %v385 = vunpack.c.l.b16 %v321
        %v386 = vunpack.c.l.b16 %v322
        %v387 = vunpack.c.l.b16 %v323
        %v388 = vunpack.c.l.b16 %v324
        %v389 = vunpack.c.l.b16 %v325
        %v390 = vunpack.c.l.b16 %v326
        %v391 = vunpack.c.l.b16 %v327
        %v392 = vunpack.c.l.b16 %v328
        %v393 = vunpack.c.l.b16 %v329
        %v394 = vunpack.c.l.b16 %v330
        %v395 = vunpack.c.l.b16 %v331
        %v396 = vunpack.c.l.b16 %v332
        %v397 = vunpack.c.l.b16 %v333
        %v398 = vunpack.c.l.b16 %v334
        %v399 = vunpack.c.l.b16 %v335
        %v400 = vunpack.c.l.b16 %v336
        %v401 = vunpack.c.l.b16 %v337
        %v402 = vunpack.c.l.b16 %v338
        %v403 = vpack.c.b16 %v371, %v371
        %v404 = vpack.c.b16 %v372, %v372
        %v405 = vpack.c.b16 %v373, %v373
        %v406 = vpack.c.b16 %v374, %v374
        %v407 = vpack.c.b16 %v375, %v375
        %v408 = vpack.c.b16 %v376, %v376
        %v409 = vpack.c.b16 %v377, %v377
        %v410 = vpack.c.b16 %v378, %v378
        %v411 = vpack.c.b16 %v379, %v379
        %v412 = vpack.c.b16 %v380, %v380
        %v413 = vpack.c.b16 %v381, %v381
        %v414 = vpack.c.b16 %v382, %v382
        %v415 = vpack.c.b16 %v383, %v383
        %v416 = vpack.c.b16 %v384, %v384
        %v417 = vpack.c.b16 %v385, %v385
        %v418 = vpack.c.b16 %v386, %v386
        %v419 = vpack.c.b16 %v387, %v387
        %v420 = vpack.c.b16 %v388, %v388
        %v421 = vpack.c.b16 %v389, %v389
        %v422 = vpack.c.b16 %v390, %v390
        %v423 = vpack.c.b16 %v391, %v391
        %v424 = vpack.c.b16 %v392, %v392
        %v425 = vpack.c.b16 %v393, %v393
        %v426 = vpack.c.b16 %v394, %v394
        %v427 = vpack.c.b16 %v395, %v395
        %v428 = vpack.c.b16 %v396, %v396
        %v429 = vpack.c.b16 %v397, %v397
        %v430 = vpack.c.b16 %v398, %v398
        %v431 = vpack.c.b16 %v399, %v399
        %v432 = vpack.c.b16 %v400, %v400
        %v433 = vpack.c.b16 %v401, %v401
        %v434 = vpack.c.b16 %v402, %v402
        %s467 = scalar_lea.vmem [#allocation2], 16
        %468 = vst.msk [vmem:[%s467] sm:$0xf0] %vm288, %v403
        %469 = vst.msk [vmem:[%s467 + $0x8] sm:$0xf] %vm269, %v404
        %470 = vst.msk [vmem:[%s467 + $0x10] sm:$0xf0] %vm288, %v405
        %471 = vst.msk [vmem:[%s467 + $0x18] sm:$0xf] %vm269, %v406
        %472 = vst.msk [vmem:[%s467 + $0x20] sm:$0xf0] %vm288, %v407
        %473 = vst.msk [vmem:[%s467 + $0x28] sm:$0xf] %vm269, %v408
        %474 = vst.msk [vmem:[%s467 + $0x30] sm:$0xf0] %vm288, %v409
        %475 = vst.msk [vmem:[%s467 + $0x38] sm:$0xf] %vm269, %v410
        %476 = vst.msk [vmem:[%s467 + $0x40] sm:$0xf0] %vm288, %v411
        %477 = vst.msk [vmem:[%s467 + $0x48] sm:$0xf] %vm269, %v412
        %478 = vst.msk [vmem:[%s467 + $0x50] sm:$0xf0] %vm288, %v413
        %479 = vst.msk [vmem:[%s467 + $0x58] sm:$0xf] %vm269, %v414
        %480 = vst.msk [vmem:[%s467 + $0x60] sm:$0xf0] %vm288, %v415
        %481 = vst.msk [vmem:[%s467 + $0x68] sm:$0xf] %vm269, %v416
        %482 = vst.msk [vmem:[%s467 + $0x70] sm:$0xf0] %vm288, %v417
        %483 = vst.msk [vmem:[%s467 + $0x78] sm:$0xf] %vm269, %v418
        %484 = vst.msk [vmem:[%s467 + $0x80] sm:$0xf0] %vm288, %v419
        %485 = vst.msk [vmem:[%s467 + $0x88] sm:$0xf] %vm269, %v420
        %486 = vst.msk [vmem:[%s467 + $0x90] sm:$0xf0] %vm288, %v421
        %487 = vst.msk [vmem:[%s467 + $0x98] sm:$0xf] %vm269, %v422
        %488 = vst.msk [vmem:[%s467 + $0xa0] sm:$0xf0] %vm288, %v423
        %489 = vst.msk [vmem:[%s467 + $0xa8] sm:$0xf] %vm269, %v424
        %490 = vst.msk [vmem:[%s467 + $0xb0] sm:$0xf0] %vm288, %v425
        %491 = vst.msk [vmem:[%s467 + $0xb8] sm:$0xf] %vm269, %v426
        %492 = vst.msk [vmem:[%s467 + $0xc0] sm:$0xf0] %vm288, %v427
        %493 = vst.msk [vmem:[%s467 + $0xc8] sm:$0xf] %vm269, %v428
        %494 = vst.msk [vmem:[%s467 + $0xd0] sm:$0xf0] %vm288, %v429
        %495 = vst.msk [vmem:[%s467 + $0xd8] sm:$0xf] %vm269, %v430
        %496 = vst.msk [vmem:[%s467 + $0xe0] sm:$0xf0] %vm288, %v431
        %497 = vst.msk [vmem:[%s467 + $0xe8] sm:$0xf] %vm269, %v432
        %498 = vst.msk [vmem:[%s467 + $0xf0] sm:$0xf0] %vm288, %v433
        %499 = vst.msk [vmem:[%s467 + $0xf8] sm:$0xf] %vm269, %v434
      $region40: #{dncnn_forward.1} parent=35 // pred_fallthru
        _
      %v500 = vld [vmem:[#allocation2] sm:$0xf8]
      %v501 = vld [vmem:[#allocation2 + $0x8] sm:$0xf]
      %v502 = vld [vmem:[#allocation2 + $0x10] sm:$0xf8]
      %v503 = vld [vmem:[#allocation2 + $0x18] sm:$0xf]
      %v504 = vld [vmem:[#allocation2 + $0x20] sm:$0xf8]
      %v505 = vld [vmem:[#allocation2 + $0x28] sm:$0xf]
      %v506 = vld [vmem:[#allocation2 + $0x30] sm:$0xf8]
      %v507 = vld [vmem:[#allocation2 + $0x38] sm:$0xf]
      %v508 = vld [vmem:[#allocation2 + $0x40] sm:$0xf8]
      %v509 = vld [vmem:[#allocation2 + $0x48] sm:$0xf]
      %v510 = vld [vmem:[#allocation2 + $0x50] sm:$0xf8]
      %v511 = vld [vmem:[#allocation2 + $0x58] sm:$0xf]
      %v512 = vld [vmem:[#allocation2 + $0x60] sm:$0xf8]
      %v513 = vld [vmem:[#allocation2 + $0x68] sm:$0xf]
      %v514 = vld [vmem:[#allocation2 + $0x70] sm:$0xf8]
      %v515 = vld [vmem:[#allocation2 + $0x78] sm:$0xf]
      %v516 = vld [vmem:[#allocation2 + $0x80] sm:$0xf8]
      %v517 = vld [vmem:[#allocation2 + $0x88] sm:$0xf]
      %v518 = vld [vmem:[#allocation2 + $0x90] sm:$0xf8]
      %v519 = vld [vmem:[#allocation2 + $0x98] sm:$0xf]
      %v520 = vld [vmem:[#allocation2 + $0xa0] sm:$0xf8]
      %v521 = vld [vmem:[#allocation2 + $0xa8] sm:$0xf]
      %v522 = vld [vmem:[#allocation2 + $0xb0] sm:$0xf8]
      %v523 = vld [vmem:[#allocation2 + $0xb8] sm:$0xf]
      %v524 = vld [vmem:[#allocation2 + $0xc0] sm:$0xf8]
      %v525 = vld [vmem:[#allocation2 + $0xc8] sm:$0xf]
      %v526 = vld [vmem:[#allocation2 + $0xd0] sm:$0xf8]
      %v527 = vld [vmem:[#allocation2 + $0xd8] sm:$0xf]
      %v528 = vld [vmem:[#allocation2 + $0xe0] sm:$0xf8]
      %v529 = vld [vmem:[#allocation2 + $0xe8] sm:$0xf]
      %v530 = vld [vmem:[#allocation2 + $0xf0] sm:$0xf8]
      %v531 = vld [vmem:[#allocation2 + $0xf8] sm:$0xf]
      %vm532 = vsmask.f32 4352
      %v534 = vshrl.u32 %v500, 16
      %v536 = vrot.slane %v534, 3
      %v537 = vshll.u32 %v500, 16
      %v539 = vrot.slane %v537, 4
      %v540 = vor.u32 %v536, %v539
      %v542 = vshrl.u32 %v501, 16
      %v544 = vrot.slane %v542, 3
      %v545 = vshll.u32 %v501, 16
      %v547 = vrot.slane %v545, 4
      %v548 = vor.u32 %v544, %v547
      %v549 = vsel %vm532, %v540, %v548
      %v551 = vshrl.u32 %v502, 16
      %v553 = vrot.slane %v551, 3
      %v554 = vshll.u32 %v502, 16
      %v556 = vrot.slane %v554, 4
      %v557 = vor.u32 %v553, %v556
      %v559 = vshrl.u32 %v503, 16
      %v561 = vrot.slane %v559, 3
      %v562 = vshll.u32 %v503, 16
      %v564 = vrot.slane %v562, 4
      %v565 = vor.u32 %v561, %v564
      %v566 = vsel %vm532, %v557, %v565
      %v568 = vshrl.u32 %v504, 16
      %v570 = vrot.slane %v568, 3
      %v571 = vshll.u32 %v504, 16
      %v573 = vrot.slane %v571, 4
      %v574 = vor.u32 %v570, %v573
      %v576 = vshrl.u32 %v505, 16
      %v578 = vrot.slane %v576, 3
      %v579 = vshll.u32 %v505, 16
      %v581 = vrot.slane %v579, 4
      %v582 = vor.u32 %v578, %v581
      %v583 = vsel %vm532, %v574, %v582
      %v585 = vshrl.u32 %v506, 16
      %v587 = vrot.slane %v585, 3
      %v588 = vshll.u32 %v506, 16
      %v590 = vrot.slane %v588, 4
      %v591 = vor.u32 %v587, %v590
      %v593 = vshrl.u32 %v507, 16
      %v595 = vrot.slane %v593, 3
      %v596 = vshll.u32 %v507, 16
      %v598 = vrot.slane %v596, 4
      %v599 = vor.u32 %v595, %v598
      %v600 = vsel %vm532, %v591, %v599
      %v602 = vshrl.u32 %v508, 16
      %v604 = vrot.slane %v602, 3
      %v605 = vshll.u32 %v508, 16
      %v607 = vrot.slane %v605, 4
      %v608 = vor.u32 %v604, %v607
      %v610 = vshrl.u32 %v509, 16
      %v612 = vrot.slane %v610, 3
      %v613 = vshll.u32 %v509, 16
      %v615 = vrot.slane %v613, 4
      %v616 = vor.u32 %v612, %v615
      %v617 = vsel %vm532, %v608, %v616
      %v619 = vshrl.u32 %v510, 16
      %v621 = vrot.slane %v619, 3
      %v622 = vshll.u32 %v510, 16
      %v624 = vrot.slane %v622, 4
      %v625 = vor.u32 %v621, %v624
      %v627 = vshrl.u32 %v511, 16
      %v629 = vrot.slane %v627, 3
      %v630 = vshll.u32 %v511, 16
      %v632 = vrot.slane %v630, 4
      %v633 = vor.u32 %v629, %v632
      %v634 = vsel %vm532, %v625, %v633
      %v636 = vshrl.u32 %v512, 16
      %v638 = vrot.slane %v636, 3
      %v639 = vshll.u32 %v512, 16
      %v641 = vrot.slane %v639, 4
      %v642 = vor.u32 %v638, %v641
      %v644 = vshrl.u32 %v513, 16
      %v646 = vrot.slane %v644, 3
      %v647 = vshll.u32 %v513, 16
      %v649 = vrot.slane %v647, 4
      %v650 = vor.u32 %v646, %v649
      %v651 = vsel %vm532, %v642, %v650
      %v653 = vshrl.u32 %v514, 16
      %v655 = vrot.slane %v653, 3
      %v656 = vshll.u32 %v514, 16
      %v658 = vrot.slane %v656, 4
      %v659 = vor.u32 %v655, %v658
      %v661 = vshrl.u32 %v515, 16
      %v663 = vrot.slane %v661, 3
      %v664 = vshll.u32 %v515, 16
      %v666 = vrot.slane %v664, 4
      %v667 = vor.u32 %v663, %v666
      %v668 = vsel %vm532, %v659, %v667
      %v670 = vshrl.u32 %v516, 16
      %v672 = vrot.slane %v670, 3
      %v673 = vshll.u32 %v516, 16
      %v675 = vrot.slane %v673, 4
      %v676 = vor.u32 %v672, %v675
      %v678 = vshrl.u32 %v517, 16
      %v680 = vrot.slane %v678, 3
      %v681 = vshll.u32 %v517, 16
      %v683 = vrot.slane %v681, 4
      %v684 = vor.u32 %v680, %v683
      %v685 = vsel %vm532, %v676, %v684
      %v687 = vshrl.u32 %v518, 16
      %v689 = vrot.slane %v687, 3
      %v690 = vshll.u32 %v518, 16
      %v692 = vrot.slane %v690, 4
      %v693 = vor.u32 %v689, %v692
      %v695 = vshrl.u32 %v519, 16
      %v697 = vrot.slane %v695, 3
      %v698 = vshll.u32 %v519, 16
      %v700 = vrot.slane %v698, 4
      %v701 = vor.u32 %v697, %v700
      %v702 = vsel %vm532, %v693, %v701
      %v704 = vshrl.u32 %v520, 16
      %v706 = vrot.slane %v704, 3
      %v707 = vshll.u32 %v520, 16
      %v709 = vrot.slane %v707, 4
      %v710 = vor.u32 %v706, %v709
      %v712 = vshrl.u32 %v521, 16
      %v714 = vrot.slane %v712, 3
      %v715 = vshll.u32 %v521, 16
      %v717 = vrot.slane %v715, 4
      %v718 = vor.u32 %v714, %v717
      %v719 = vsel %vm532, %v710, %v718
      %v721 = vshrl.u32 %v522, 16
      %v723 = vrot.slane %v721, 3
      %v724 = vshll.u32 %v522, 16
      %v726 = vrot.slane %v724, 4
      %v727 = vor.u32 %v723, %v726
      %v729 = vshrl.u32 %v523, 16
      %v731 = vrot.slane %v729, 3
      %v732 = vshll.u32 %v523, 16
      %v734 = vrot.slane %v732, 4
      %v735 = vor.u32 %v731, %v734
      %v736 = vsel %vm532, %v727, %v735
      %v738 = vshrl.u32 %v524, 16
      %v740 = vrot.slane %v738, 3
      %v741 = vshll.u32 %v524, 16
      %v743 = vrot.slane %v741, 4
      %v744 = vor.u32 %v740, %v743
      %v746 = vshrl.u32 %v525, 16
      %v748 = vrot.slane %v746, 3
      %v749 = vshll.u32 %v525, 16
      %v751 = vrot.slane %v749, 4
      %v752 = vor.u32 %v748, %v751
      %v753 = vsel %vm532, %v744, %v752
      %v755 = vshrl.u32 %v526, 16
      %v757 = vrot.slane %v755, 3
      %v758 = vshll.u32 %v526, 16
      %v760 = vrot.slane %v758, 4
      %v761 = vor.u32 %v757, %v760
      %v763 = vshrl.u32 %v527, 16
      %v765 = vrot.slane %v763, 3
      %v766 = vshll.u32 %v527, 16
      %v768 = vrot.slane %v766, 4
      %v769 = vor.u32 %v765, %v768
      %v770 = vsel %vm532, %v761, %v769
      %v772 = vshrl.u32 %v528, 16
      %v774 = vrot.slane %v772, 3
      %v775 = vshll.u32 %v528, 16
      %v777 = vrot.slane %v775, 4
      %v778 = vor.u32 %v774, %v777
      %v780 = vshrl.u32 %v529, 16
      %v782 = vrot.slane %v780, 3
      %v783 = vshll.u32 %v529, 16
      %v785 = vrot.slane %v783, 4
      %v786 = vor.u32 %v782, %v785
      %v787 = vsel %vm532, %v778, %v786
      %v789 = vshrl.u32 %v530, 16
      %v791 = vrot.slane %v789, 3
      %v792 = vshll.u32 %v530, 16
      %v794 = vrot.slane %v792, 4
      %v795 = vor.u32 %v791, %v794
      %v797 = vshrl.u32 %v531, 16
      %v799 = vrot.slane %v797, 3
      %v800 = vshll.u32 %v531, 16
      %v802 = vrot.slane %v800, 4
      %v803 = vor.u32 %v799, %v802
      %v804 = vsel %vm532, %v795, %v803
      %v805 = vld [vmem:[#allocation2] sm:$0xf0]
      %v806 = vld [vmem:[#allocation2 + $0x10] sm:$0xf0]
      %v807 = vld [vmem:[#allocation2 + $0x20] sm:$0xf0]
      %v808 = vld [vmem:[#allocation2 + $0x30] sm:$0xf0]
      %v809 = vld [vmem:[#allocation2 + $0x40] sm:$0xf0]
      %v810 = vld [vmem:[#allocation2 + $0x50] sm:$0xf0]
      %v811 = vld [vmem:[#allocation2 + $0x60] sm:$0xf0]
      %v812 = vld [vmem:[#allocation2 + $0x70] sm:$0xf0]
      %v813 = vld [vmem:[#allocation2 + $0x80] sm:$0xf0]
      %v814 = vld [vmem:[#allocation2 + $0x90] sm:$0xf0]
      %v815 = vld [vmem:[#allocation2 + $0xa0] sm:$0xf0]
      %v816 = vld [vmem:[#allocation2 + $0xb0] sm:$0xf0]
      %v817 = vld [vmem:[#allocation2 + $0xc0] sm:$0xf0]
      %v818 = vld [vmem:[#allocation2 + $0xd0] sm:$0xf0]
      %v819 = vld [vmem:[#allocation2 + $0xe0] sm:$0xf0]
      %v820 = vld [vmem:[#allocation2 + $0xf0] sm:$0xf0]
      %vm853 = vcmask 1043456
      %v854 = vrot.slane %v805, 4
      %v855 = vrot.slane %v501, 4
      %v856 = vsel %vm853, %v854, %v855
      %v857 = vrot.slane %v806, 4
      %v858 = vrot.slane %v503, 4
      %v859 = vsel %vm853, %v857, %v858
      %v860 = vrot.slane %v807, 4
      %v861 = vrot.slane %v505, 4
      %v862 = vsel %vm853, %v860, %v861
      %v863 = vrot.slane %v808, 4
      %v864 = vrot.slane %v507, 4
      %v865 = vsel %vm853, %v863, %v864
      %v866 = vrot.slane %v809, 4
      %v867 = vrot.slane %v509, 4
      %v868 = vsel %vm853, %v866, %v867
      %v869 = vrot.slane %v810, 4
      %v870 = vrot.slane %v511, 4
      %v871 = vsel %vm853, %v869, %v870
      %v872 = vrot.slane %v811, 4
      %v873 = vrot.slane %v513, 4
      %v874 = vsel %vm853, %v872, %v873
      %v875 = vrot.slane %v812, 4
      %v876 = vrot.slane %v515, 4
      %v877 = vsel %vm853, %v875, %v876
      %v878 = vrot.slane %v813, 4
      %v879 = vrot.slane %v517, 4
      %v880 = vsel %vm853, %v878, %v879
      %v881 = vrot.slane %v814, 4
      %v882 = vrot.slane %v519, 4
      %v883 = vsel %vm853, %v881, %v882
      %v884 = vrot.slane %v815, 4
      %v885 = vrot.slane %v521, 4
      %v886 = vsel %vm853, %v884, %v885
      %v887 = vrot.slane %v816, 4
      %v888 = vrot.slane %v523, 4
      %v889 = vsel %vm853, %v887, %v888
      %v890 = vrot.slane %v817, 4
      %v891 = vrot.slane %v525, 4
      %v892 = vsel %vm853, %v890, %v891
      %v893 = vrot.slane %v818, 4
      %v894 = vrot.slane %v527, 4
      %v895 = vsel %vm853, %v893, %v894
      %v896 = vrot.slane %v819, 4
      %v897 = vrot.slane %v529, 4
      %v898 = vsel %vm853, %v896, %v897
      %v899 = vrot.slane %v820, 4
      %v900 = vrot.slane %v531, 4
      %v901 = vsel %vm853, %v899, %v900
      %v902 = vld [vmem:[#allocation2 + $0x8] sm:$0x1f]
      %v903 = vld [vmem:[#allocation2 + $0x18] sm:$0x1f]
      %v904 = vld [vmem:[#allocation2 + $0x28] sm:$0x1f]
      %v905 = vld [vmem:[#allocation2 + $0x38] sm:$0x1f]
      %v906 = vld [vmem:[#allocation2 + $0x48] sm:$0x1f]
      %v907 = vld [vmem:[#allocation2 + $0x58] sm:$0x1f]
      %v908 = vld [vmem:[#allocation2 + $0x68] sm:$0x1f]
      %v909 = vld [vmem:[#allocation2 + $0x78] sm:$0x1f]
      %v910 = vld [vmem:[#allocation2 + $0x88] sm:$0x1f]
      %v911 = vld [vmem:[#allocation2 + $0x98] sm:$0x1f]
      %v912 = vld [vmem:[#allocation2 + $0xa8] sm:$0x1f]
      %v913 = vld [vmem:[#allocation2 + $0xb8] sm:$0x1f]
      %v914 = vld [vmem:[#allocation2 + $0xc8] sm:$0x1f]
      %v915 = vld [vmem:[#allocation2 + $0xd8] sm:$0x1f]
      %v916 = vld [vmem:[#allocation2 + $0xe8] sm:$0x1f]
      %v917 = vld [vmem:[#allocation2 + $0xf8] sm:$0x1f]
      %vm918 = vsmask.f32 3328
      %v920 = vshrl.u32 %v805, 16
      %v922 = vrot.slane %v920, 4
      %v923 = vshll.u32 %v805, 16
      %v925 = vrot.slane %v923, 5
      %v926 = vor.u32 %v922, %v925
      %v928 = vshrl.u32 %v902, 16
      %v930 = vrot.slane %v928, 4
      %v931 = vshll.u32 %v902, 16
      %v933 = vrot.slane %v931, 5
      %v934 = vor.u32 %v930, %v933
      %v935 = vsel %vm918, %v926, %v934
      %v937 = vshrl.u32 %v806, 16
      %v939 = vrot.slane %v937, 4
      %v940 = vshll.u32 %v806, 16
      %v942 = vrot.slane %v940, 5
      %v943 = vor.u32 %v939, %v942
      %v945 = vshrl.u32 %v903, 16
      %v947 = vrot.slane %v945, 4
      %v948 = vshll.u32 %v903, 16
      %v950 = vrot.slane %v948, 5
      %v951 = vor.u32 %v947, %v950
      %v952 = vsel %vm918, %v943, %v951
      %v954 = vshrl.u32 %v807, 16
      %v956 = vrot.slane %v954, 4
      %v957 = vshll.u32 %v807, 16
      %v959 = vrot.slane %v957, 5
      %v960 = vor.u32 %v956, %v959
      %v962 = vshrl.u32 %v904, 16
      %v964 = vrot.slane %v962, 4
      %v965 = vshll.u32 %v904, 16
      %v967 = vrot.slane %v965, 5
      %v968 = vor.u32 %v964, %v967
      %v969 = vsel %vm918, %v960, %v968
      %v971 = vshrl.u32 %v808, 16
      %v973 = vrot.slane %v971, 4
      %v974 = vshll.u32 %v808, 16
      %v976 = vrot.slane %v974, 5
      %v977 = vor.u32 %v973, %v976
      %v979 = vshrl.u32 %v905, 16
      %v981 = vrot.slane %v979, 4
      %v982 = vshll.u32 %v905, 16
      %v984 = vrot.slane %v982, 5
      %v985 = vor.u32 %v981, %v984
      %v986 = vsel %vm918, %v977, %v985
      %v988 = vshrl.u32 %v809, 16
      %v990 = vrot.slane %v988, 4
      %v991 = vshll.u32 %v809, 16
      %v993 = vrot.slane %v991, 5
      %v994 = vor.u32 %v990, %v993
      %v996 = vshrl.u32 %v906, 16
      %v998 = vrot.slane %v996, 4
      %v999 = vshll.u32 %v906, 16
      %v1001 = vrot.slane %v999, 5
      %v1002 = vor.u32 %v998, %v1001
      %v1003 = vsel %vm918, %v994, %v1002
      %v1005 = vshrl.u32 %v810, 16
      %v1007 = vrot.slane %v1005, 4
      %v1008 = vshll.u32 %v810, 16
      %v1010 = vrot.slane %v1008, 5
      %v1011 = vor.u32 %v1007, %v1010
      %v1013 = vshrl.u32 %v907, 16
      %v1015 = vrot.slane %v1013, 4
      %v1016 = vshll.u32 %v907, 16
      %v1018 = vrot.slane %v1016, 5
      %v1019 = vor.u32 %v1015, %v1018
      %v1020 = vsel %vm918, %v1011, %v1019
      %v1022 = vshrl.u32 %v811, 16
      %v1024 = vrot.slane %v1022, 4
      %v1025 = vshll.u32 %v811, 16
      %v1027 = vrot.slane %v1025, 5
      %v1028 = vor.u32 %v1024, %v1027
      %v1030 = vshrl.u32 %v908, 16
      %v1032 = vrot.slane %v1030, 4
      %v1033 = vshll.u32 %v908, 16
      %v1035 = vrot.slane %v1033, 5
      %v1036 = vor.u32 %v1032, %v1035
      %v1037 = vsel %vm918, %v1028, %v1036
      %v1039 = vshrl.u32 %v812, 16
      %v1041 = vrot.slane %v1039, 4
      %v1042 = vshll.u32 %v812, 16
      %v1044 = vrot.slane %v1042, 5
      %v1045 = vor.u32 %v1041, %v1044
      %v1047 = vshrl.u32 %v909, 16
      %v1049 = vrot.slane %v1047, 4
      %v1050 = vshll.u32 %v909, 16
      %v1052 = vrot.slane %v1050, 5
      %v1053 = vor.u32 %v1049, %v1052
      %v1054 = vsel %vm918, %v1045, %v1053
      %v1056 = vshrl.u32 %v813, 16
      %v1058 = vrot.slane %v1056, 4
      %v1059 = vshll.u32 %v813, 16
      %v1061 = vrot.slane %v1059, 5
      %v1062 = vor.u32 %v1058, %v1061
      %v1064 = vshrl.u32 %v910, 16
      %v1066 = vrot.slane %v1064, 4
      %v1067 = vshll.u32 %v910, 16
      %v1069 = vrot.slane %v1067, 5
      %v1070 = vor.u32 %v1066, %v1069
      %v1071 = vsel %vm918, %v1062, %v1070
      %v1073 = vshrl.u32 %v814, 16
      %v1075 = vrot.slane %v1073, 4
      %v1076 = vshll.u32 %v814, 16
      %v1078 = vrot.slane %v1076, 5
      %v1079 = vor.u32 %v1075, %v1078
      %v1081 = vshrl.u32 %v911, 16
      %v1083 = vrot.slane %v1081, 4
      %v1084 = vshll.u32 %v911, 16
      %v1086 = vrot.slane %v1084, 5
      %v1087 = vor.u32 %v1083, %v1086
      %v1088 = vsel %vm918, %v1079, %v1087
      %v1090 = vshrl.u32 %v815, 16
      %v1092 = vrot.slane %v1090, 4
      %v1093 = vshll.u32 %v815, 16
      %v1095 = vrot.slane %v1093, 5
      %v1096 = vor.u32 %v1092, %v1095
      %v1098 = vshrl.u32 %v912, 16
      %v1100 = vrot.slane %v1098, 4
      %v1101 = vshll.u32 %v912, 16
      %v1103 = vrot.slane %v1101, 5
      %v1104 = vor.u32 %v1100, %v1103
      %v1105 = vsel %vm918, %v1096, %v1104
      %v1107 = vshrl.u32 %v816, 16
      %v1109 = vrot.slane %v1107, 4
      %v1110 = vshll.u32 %v816, 16
      %v1112 = vrot.slane %v1110, 5
      %v1113 = vor.u32 %v1109, %v1112
      %v1115 = vshrl.u32 %v913, 16
      %v1117 = vrot.slane %v1115, 4
      %v1118 = vshll.u32 %v913, 16
      %v1120 = vrot.slane %v1118, 5
      %v1121 = vor.u32 %v1117, %v1120
      %v1122 = vsel %vm918, %v1113, %v1121
      %v1124 = vshrl.u32 %v817, 16
      %v1126 = vrot.slane %v1124, 4
      %v1127 = vshll.u32 %v817, 16
      %v1129 = vrot.slane %v1127, 5
      %v1130 = vor.u32 %v1126, %v1129
      %v1132 = vshrl.u32 %v914, 16
      %v1134 = vrot.slane %v1132, 4
      %v1135 = vshll.u32 %v914, 16
      %v1137 = vrot.slane %v1135, 5
      %v1138 = vor.u32 %v1134, %v1137
      %v1139 = vsel %vm918, %v1130, %v1138
      %v1141 = vshrl.u32 %v818, 16
      %v1143 = vrot.slane %v1141, 4
      %v1144 = vshll.u32 %v818, 16
      %v1146 = vrot.slane %v1144, 5
      %v1147 = vor.u32 %v1143, %v1146
      %v1149 = vshrl.u32 %v915, 16
      %v1151 = vrot.slane %v1149, 4
      %v1152 = vshll.u32 %v915, 16
      %v1154 = vrot.slane %v1152, 5
      %v1155 = vor.u32 %v1151, %v1154
      %v1156 = vsel %vm918, %v1147, %v1155
      %v1158 = vshrl.u32 %v819, 16
      %v1160 = vrot.slane %v1158, 4
      %v1161 = vshll.u32 %v819, 16
      %v1163 = vrot.slane %v1161, 5
      %v1164 = vor.u32 %v1160, %v1163
      %v1166 = vshrl.u32 %v916, 16
      %v1168 = vrot.slane %v1166, 4
      %v1169 = vshll.u32 %v916, 16
      %v1171 = vrot.slane %v1169, 5
      %v1172 = vor.u32 %v1168, %v1171
      %v1173 = vsel %vm918, %v1164, %v1172
      %v1175 = vshrl.u32 %v820, 16
      %v1177 = vrot.slane %v1175, 4
      %v1178 = vshll.u32 %v820, 16
      %v1180 = vrot.slane %v1178, 5
      %v1181 = vor.u32 %v1177, %v1180
      %v1183 = vshrl.u32 %v917, 16
      %v1185 = vrot.slane %v1183, 4
      %v1186 = vshll.u32 %v917, 16
      %v1188 = vrot.slane %v1186, 5
      %v1189 = vor.u32 %v1185, %v1188
      %v1190 = vsel %vm918, %v1181, %v1189
      %s1191 = scalar_lea.vmem [#allocation2], 16
      %v1192 = vld [vmem:[%s1191] sm:$0xf8]
      %v1193 = vld [vmem:[%s1191 + $0x8] sm:$0xf]
      %v1194 = vld [vmem:[%s1191 + $0x10] sm:$0xf8]
      %v1195 = vld [vmem:[%s1191 + $0x18] sm:$0xf]
      %v1196 = vld [vmem:[%s1191 + $0x20] sm:$0xf8]
      %v1197 = vld [vmem:[%s1191 + $0x28] sm:$0xf]
      %v1198 = vld [vmem:[%s1191 + $0x30] sm:$0xf8]
      %v1199 = vld [vmem:[%s1191 + $0x38] sm:$0xf]
      %v1200 = vld [vmem:[%s1191 + $0x40] sm:$0xf8]
      %v1201 = vld [vmem:[%s1191 + $0x48] sm:$0xf]
      %v1202 = vld [vmem:[%s1191 + $0x50] sm:$0xf8]
      %v1203 = vld [vmem:[%s1191 + $0x58] sm:$0xf]
      %v1204 = vld [vmem:[%s1191 + $0x60] sm:$0xf8]
      %v1205 = vld [vmem:[%s1191 + $0x68] sm:$0xf]
      %v1206 = vld [vmem:[%s1191 + $0x70] sm:$0xf8]
      %v1207 = vld [vmem:[%s1191 + $0x78] sm:$0xf]
      %v1208 = vld [vmem:[%s1191 + $0x80] sm:$0xf8]
      %v1209 = vld [vmem:[%s1191 + $0x88] sm:$0xf]
      %v1210 = vld [vmem:[%s1191 + $0x90] sm:$0xf8]
      %v1211 = vld [vmem:[%s1191 + $0x98] sm:$0xf]
      %v1212 = vld [vmem:[%s1191 + $0xa0] sm:$0xf8]
      %v1213 = vld [vmem:[%s1191 + $0xa8] sm:$0xf]
      %v1214 = vld [vmem:[%s1191 + $0xb0] sm:$0xf8]
      %v1215 = vld [vmem:[%s1191 + $0xb8] sm:$0xf]
      %v1216 = vld [vmem:[%s1191 + $0xc0] sm:$0xf8]
      %v1217 = vld [vmem:[%s1191 + $0xc8] sm:$0xf]
      %v1218 = vld [vmem:[%s1191 + $0xd0] sm:$0xf8]
      %v1219 = vld [vmem:[%s1191 + $0xd8] sm:$0xf]
      %v1220 = vld [vmem:[%s1191 + $0xe0] sm:$0xf8]
      %v1221 = vld [vmem:[%s1191 + $0xe8] sm:$0xf]
      %v1222 = vld [vmem:[%s1191 + $0xf0] sm:$0xf8]
      %v1223 = vld [vmem:[%s1191 + $0xf8] sm:$0xf]
      %v1225 = vshrl.u32 %v1192, 16
      %v1227 = vrot.slane %v1225, 3
      %v1228 = vshll.u32 %v1192, 16
      %v1230 = vrot.slane %v1228, 4
      %v1231 = vor.u32 %v1227, %v1230
      %v1233 = vshrl.u32 %v1193, 16
      %v1235 = vrot.slane %v1233, 3
      %v1236 = vshll.u32 %v1193, 16
      %v1238 = vrot.slane %v1236, 4
      %v1239 = vor.u32 %v1235, %v1238
      %v1240 = vsel %vm532, %v1231, %v1239
      %v1242 = vshrl.u32 %v1194, 16
      %v1244 = vrot.slane %v1242, 3
      %v1245 = vshll.u32 %v1194, 16
      %v1247 = vrot.slane %v1245, 4
      %v1248 = vor.u32 %v1244, %v1247
      %v1250 = vshrl.u32 %v1195, 16
      %v1252 = vrot.slane %v1250, 3
      %v1253 = vshll.u32 %v1195, 16
      %v1255 = vrot.slane %v1253, 4
      %v1256 = vor.u32 %v1252, %v1255
      %v1257 = vsel %vm532, %v1248, %v1256
      %v1259 = vshrl.u32 %v1196, 16
      %v1261 = vrot.slane %v1259, 3
      %v1262 = vshll.u32 %v1196, 16
      %v1264 = vrot.slane %v1262, 4
      %v1265 = vor.u32 %v1261, %v1264
      %v1267 = vshrl.u32 %v1197, 16
      %v1269 = vrot.slane %v1267, 3
      %v1270 = vshll.u32 %v1197, 16
      %v1272 = vrot.slane %v1270, 4
      %v1273 = vor.u32 %v1269, %v1272
      %v1274 = vsel %vm532, %v1265, %v1273
      %v1276 = vshrl.u32 %v1198, 16
      %v1278 = vrot.slane %v1276, 3
      %v1279 = vshll.u32 %v1198, 16
      %v1281 = vrot.slane %v1279, 4
      %v1282 = vor.u32 %v1278, %v1281
      %v1284 = vshrl.u32 %v1199, 16
      %v1286 = vrot.slane %v1284, 3
      %v1287 = vshll.u32 %v1199, 16
      %v1289 = vrot.slane %v1287, 4
      %v1290 = vor.u32 %v1286, %v1289
      %v1291 = vsel %vm532, %v1282, %v1290
      %v1293 = vshrl.u32 %v1200, 16
      %v1295 = vrot.slane %v1293, 3
      %v1296 = vshll.u32 %v1200, 16
      %v1298 = vrot.slane %v1296, 4
      %v1299 = vor.u32 %v1295, %v1298
      %v1301 = vshrl.u32 %v1201, 16
      %v1303 = vrot.slane %v1301, 3
      %v1304 = vshll.u32 %v1201, 16
      %v1306 = vrot.slane %v1304, 4
      %v1307 = vor.u32 %v1303, %v1306
      %v1308 = vsel %vm532, %v1299, %v1307
      %v1310 = vshrl.u32 %v1202, 16
      %v1312 = vrot.slane %v1310, 3
      %v1313 = vshll.u32 %v1202, 16
      %v1315 = vrot.slane %v1313, 4
      %v1316 = vor.u32 %v1312, %v1315
      %v1318 = vshrl.u32 %v1203, 16
      %v1320 = vrot.slane %v1318, 3
      %v1321 = vshll.u32 %v1203, 16
      %v1323 = vrot.slane %v1321, 4
      %v1324 = vor.u32 %v1320, %v1323
      %v1325 = vsel %vm532, %v1316, %v1324
      %v1327 = vshrl.u32 %v1204, 16
      %v1329 = vrot.slane %v1327, 3
      %v1330 = vshll.u32 %v1204, 16
      %v1332 = vrot.slane %v1330, 4
      %v1333 = vor.u32 %v1329, %v1332
      %v1335 = vshrl.u32 %v1205, 16
      %v1337 = vrot.slane %v1335, 3
      %v1338 = vshll.u32 %v1205, 16
      %v1340 = vrot.slane %v1338, 4
      %v1341 = vor.u32 %v1337, %v1340
      %v1342 = vsel %vm532, %v1333, %v1341
      %v1344 = vshrl.u32 %v1206, 16
      %v1346 = vrot.slane %v1344, 3
      %v1347 = vshll.u32 %v1206, 16
      %v1349 = vrot.slane %v1347, 4
      %v1350 = vor.u32 %v1346, %v1349
      %v1352 = vshrl.u32 %v1207, 16
      %v1354 = vrot.slane %v1352, 3
      %v1355 = vshll.u32 %v1207, 16
      %v1357 = vrot.slane %v1355, 4
      %v1358 = vor.u32 %v1354, %v1357
      %v1359 = vsel %vm532, %v1350, %v1358
      %v1361 = vshrl.u32 %v1208, 16
      %v1363 = vrot.slane %v1361, 3
      %v1364 = vshll.u32 %v1208, 16
      %v1366 = vrot.slane %v1364, 4
      %v1367 = vor.u32 %v1363, %v1366
      %v1369 = vshrl.u32 %v1209, 16
      %v1371 = vrot.slane %v1369, 3
      %v1372 = vshll.u32 %v1209, 16
      %v1374 = vrot.slane %v1372, 4
      %v1375 = vor.u32 %v1371, %v1374
      %v1376 = vsel %vm532, %v1367, %v1375
      %v1378 = vshrl.u32 %v1210, 16
      %v1380 = vrot.slane %v1378, 3
      %v1381 = vshll.u32 %v1210, 16
      %v1383 = vrot.slane %v1381, 4
      %v1384 = vor.u32 %v1380, %v1383
      %v1386 = vshrl.u32 %v1211, 16
      %v1388 = vrot.slane %v1386, 3
      %v1389 = vshll.u32 %v1211, 16
      %v1391 = vrot.slane %v1389, 4
      %v1392 = vor.u32 %v1388, %v1391
      %v1393 = vsel %vm532, %v1384, %v1392
      %v1395 = vshrl.u32 %v1212, 16
      %v1397 = vrot.slane %v1395, 3
      %v1398 = vshll.u32 %v1212, 16
      %v1400 = vrot.slane %v1398, 4
      %v1401 = vor.u32 %v1397, %v1400
      %v1403 = vshrl.u32 %v1213, 16
      %v1405 = vrot.slane %v1403, 3
      %v1406 = vshll.u32 %v1213, 16
      %v1408 = vrot.slane %v1406, 4
      %v1409 = vor.u32 %v1405, %v1408
      %v1410 = vsel %vm532, %v1401, %v1409
      %v1412 = vshrl.u32 %v1214, 16
      %v1414 = vrot.slane %v1412, 3
      %v1415 = vshll.u32 %v1214, 16
      %v1417 = vrot.slane %v1415, 4
      %v1418 = vor.u32 %v1414, %v1417
      %v1420 = vshrl.u32 %v1215, 16
      %v1422 = vrot.slane %v1420, 3
      %v1423 = vshll.u32 %v1215, 16
      %v1425 = vrot.slane %v1423, 4
      %v1426 = vor.u32 %v1422, %v1425
      %v1427 = vsel %vm532, %v1418, %v1426
      %v1429 = vshrl.u32 %v1216, 16
      %v1431 = vrot.slane %v1429, 3
      %v1432 = vshll.u32 %v1216, 16
      %v1434 = vrot.slane %v1432, 4
      %v1435 = vor.u32 %v1431, %v1434
      %v1437 = vshrl.u32 %v1217, 16
      %v1439 = vrot.slane %v1437, 3
      %v1440 = vshll.u32 %v1217, 16
      %v1442 = vrot.slane %v1440, 4
      %v1443 = vor.u32 %v1439, %v1442
      %v1444 = vsel %vm532, %v1435, %v1443
      %v1446 = vshrl.u32 %v1218, 16
      %v1448 = vrot.slane %v1446, 3
      %v1449 = vshll.u32 %v1218, 16
      %v1451 = vrot.slane %v1449, 4
      %v1452 = vor.u32 %v1448, %v1451
      %v1454 = vshrl.u32 %v1219, 16
      %v1456 = vrot.slane %v1454, 3
      %v1457 = vshll.u32 %v1219, 16
      %v1459 = vrot.slane %v1457, 4
      %v1460 = vor.u32 %v1456, %v1459
      %v1461 = vsel %vm532, %v1452, %v1460
      %v1463 = vshrl.u32 %v1220, 16
      %v1465 = vrot.slane %v1463, 3
      %v1466 = vshll.u32 %v1220, 16
      %v1468 = vrot.slane %v1466, 4
      %v1469 = vor.u32 %v1465, %v1468
      %v1471 = vshrl.u32 %v1221, 16
      %v1473 = vrot.slane %v1471, 3
      %v1474 = vshll.u32 %v1221, 16
      %v1476 = vrot.slane %v1474, 4
      %v1477 = vor.u32 %v1473, %v1476
      %v1478 = vsel %vm532, %v1469, %v1477
      %v1480 = vshrl.u32 %v1222, 16
      %v1482 = vrot.slane %v1480, 3
      %v1483 = vshll.u32 %v1222, 16
      %v1485 = vrot.slane %v1483, 4
      %v1486 = vor.u32 %v1482, %v1485
      %v1488 = vshrl.u32 %v1223, 16
      %v1490 = vrot.slane %v1488, 3
      %v1491 = vshll.u32 %v1223, 16
      %v1493 = vrot.slane %v1491, 4
      %v1494 = vor.u32 %v1490, %v1493
      %v1495 = vsel %vm532, %v1486, %v1494
      %v1496 = vld [vmem:[%s1191] sm:$0xf0]
      %v1497 = vld [vmem:[%s1191 + $0x10] sm:$0xf0]
      %v1498 = vld [vmem:[%s1191 + $0x20] sm:$0xf0]
      %v1499 = vld [vmem:[%s1191 + $0x30] sm:$0xf0]
      %v1500 = vld [vmem:[%s1191 + $0x40] sm:$0xf0]
      %v1501 = vld [vmem:[%s1191 + $0x50] sm:$0xf0]
      %v1502 = vld [vmem:[%s1191 + $0x60] sm:$0xf0]
      %v1503 = vld [vmem:[%s1191 + $0x70] sm:$0xf0]
      %v1504 = vld [vmem:[%s1191 + $0x80] sm:$0xf0]
      %v1505 = vld [vmem:[%s1191 + $0x90] sm:$0xf0]
      %v1506 = vld [vmem:[%s1191 + $0xa0] sm:$0xf0]
      %v1507 = vld [vmem:[%s1191 + $0xb0] sm:$0xf0]
      %v1508 = vld [vmem:[%s1191 + $0xc0] sm:$0xf0]
      %v1509 = vld [vmem:[%s1191 + $0xd0] sm:$0xf0]
      %v1510 = vld [vmem:[%s1191 + $0xe0] sm:$0xf0]
      %v1511 = vld [vmem:[%s1191 + $0xf0] sm:$0xf0]
      %v1544 = vrot.slane %v1496, 4
      %v1545 = vrot.slane %v1193, 4
      %v1546 = vsel %vm853, %v1544, %v1545
      %v1547 = vrot.slane %v1497, 4
      %v1548 = vrot.slane %v1195, 4
      %v1549 = vsel %vm853, %v1547, %v1548
      %v1550 = vrot.slane %v1498, 4
      %v1551 = vrot.slane %v1197, 4
      %v1552 = vsel %vm853, %v1550, %v1551
      %v1553 = vrot.slane %v1499, 4
      %v1554 = vrot.slane %v1199, 4
      %v1555 = vsel %vm853, %v1553, %v1554
      %v1556 = vrot.slane %v1500, 4
      %v1557 = vrot.slane %v1201, 4
      %v1558 = vsel %vm853, %v1556, %v1557
      %v1559 = vrot.slane %v1501, 4
      %v1560 = vrot.slane %v1203, 4
      %v1561 = vsel %vm853, %v1559, %v1560
      %v1562 = vrot.slane %v1502, 4
      %v1563 = vrot.slane %v1205, 4
      %v1564 = vsel %vm853, %v1562, %v1563
      %v1565 = vrot.slane %v1503, 4
      %v1566 = vrot.slane %v1207, 4
      %v1567 = vsel %vm853, %v1565, %v1566
      %v1568 = vrot.slane %v1504, 4
      %v1569 = vrot.slane %v1209, 4
      %v1570 = vsel %vm853, %v1568, %v1569
      %v1571 = vrot.slane %v1505, 4
      %v1572 = vrot.slane %v1211, 4
      %v1573 = vsel %vm853, %v1571, %v1572
      %v1574 = vrot.slane %v1506, 4
      %v1575 = vrot.slane %v1213, 4
      %v1576 = vsel %vm853, %v1574, %v1575
      %v1577 = vrot.slane %v1507, 4
      %v1578 = vrot.slane %v1215, 4
      %v1579 = vsel %vm853, %v1577, %v1578
      %v1580 = vrot.slane %v1508, 4
      %v1581 = vrot.slane %v1217, 4
      %v1582 = vsel %vm853, %v1580, %v1581
      %v1583 = vrot.slane %v1509, 4
      %v1584 = vrot.slane %v1219, 4
      %v1585 = vsel %vm853, %v1583, %v1584
      %v1586 = vrot.slane %v1510, 4
      %v1587 = vrot.slane %v1221, 4
      %v1588 = vsel %vm853, %v1586, %v1587
      %v1589 = vrot.slane %v1511, 4
      %v1590 = vrot.slane %v1223, 4
      %v1591 = vsel %vm853, %v1589, %v1590
      %v1592 = vld [vmem:[%s1191 + $0x8] sm:$0x1f]
      %v1593 = vld [vmem:[%s1191 + $0x18] sm:$0x1f]
      %v1594 = vld [vmem:[%s1191 + $0x28] sm:$0x1f]
      %v1595 = vld [vmem:[%s1191 + $0x38] sm:$0x1f]
      %v1596 = vld [vmem:[%s1191 + $0x48] sm:$0x1f]
      %v1597 = vld [vmem:[%s1191 + $0x58] sm:$0x1f]
      %v1598 = vld [vmem:[%s1191 + $0x68] sm:$0x1f]
      %v1599 = vld [vmem:[%s1191 + $0x78] sm:$0x1f]
      %v1600 = vld [vmem:[%s1191 + $0x88] sm:$0x1f]
      %v1601 = vld [vmem:[%s1191 + $0x98] sm:$0x1f]
      %v1602 = vld [vmem:[%s1191 + $0xa8] sm:$0x1f]
      %v1603 = vld [vmem:[%s1191 + $0xb8] sm:$0x1f]
      %v1604 = vld [vmem:[%s1191 + $0xc8] sm:$0x1f]
      %v1605 = vld [vmem:[%s1191 + $0xd8] sm:$0x1f]
      %v1606 = vld [vmem:[%s1191 + $0xe8] sm:$0x1f]
      %v1607 = vld [vmem:[%s1191 + $0xf8] sm:$0x1f]
      %v1609 = vshrl.u32 %v1496, 16
      %v1611 = vrot.slane %v1609, 4
      %v1612 = vshll.u32 %v1496, 16
      %v1614 = vrot.slane %v1612, 5
      %v1615 = vor.u32 %v1611, %v1614
      %v1617 = vshrl.u32 %v1592, 16
      %v1619 = vrot.slane %v1617, 4
      %v1620 = vshll.u32 %v1592, 16
      %v1622 = vrot.slane %v1620, 5
      %v1623 = vor.u32 %v1619, %v1622
      %v1624 = vsel %vm918, %v1615, %v1623
      %v1626 = vshrl.u32 %v1497, 16
      %v1628 = vrot.slane %v1626, 4
      %v1629 = vshll.u32 %v1497, 16
      %v1631 = vrot.slane %v1629, 5
      %v1632 = vor.u32 %v1628, %v1631
      %v1634 = vshrl.u32 %v1593, 16
      %v1636 = vrot.slane %v1634, 4
      %v1637 = vshll.u32 %v1593, 16
      %v1639 = vrot.slane %v1637, 5
      %v1640 = vor.u32 %v1636, %v1639
      %v1641 = vsel %vm918, %v1632, %v1640
      %v1643 = vshrl.u32 %v1498, 16
      %v1645 = vrot.slane %v1643, 4
      %v1646 = vshll.u32 %v1498, 16
      %v1648 = vrot.slane %v1646, 5
      %v1649 = vor.u32 %v1645, %v1648
      %v1651 = vshrl.u32 %v1594, 16
      %v1653 = vrot.slane %v1651, 4
      %v1654 = vshll.u32 %v1594, 16
      %v1656 = vrot.slane %v1654, 5
      %v1657 = vor.u32 %v1653, %v1656
      %v1658 = vsel %vm918, %v1649, %v1657
      %v1660 = vshrl.u32 %v1499, 16
      %v1662 = vrot.slane %v1660, 4
      %v1663 = vshll.u32 %v1499, 16
      %v1665 = vrot.slane %v1663, 5
      %v1666 = vor.u32 %v1662, %v1665
      %v1668 = vshrl.u32 %v1595, 16
      %v1670 = vrot.slane %v1668, 4
      %v1671 = vshll.u32 %v1595, 16
      %v1673 = vrot.slane %v1671, 5
      %v1674 = vor.u32 %v1670, %v1673
      %v1675 = vsel %vm918, %v1666, %v1674
      %v1677 = vshrl.u32 %v1500, 16
      %v1679 = vrot.slane %v1677, 4
      %v1680 = vshll.u32 %v1500, 16
      %v1682 = vrot.slane %v1680, 5
      %v1683 = vor.u32 %v1679, %v1682
      %v1685 = vshrl.u32 %v1596, 16
      %v1687 = vrot.slane %v1685, 4
      %v1688 = vshll.u32 %v1596, 16
      %v1690 = vrot.slane %v1688, 5
      %v1691 = vor.u32 %v1687, %v1690
      %v1692 = vsel %vm918, %v1683, %v1691
      %v1694 = vshrl.u32 %v1501, 16
      %v1696 = vrot.slane %v1694, 4
      %v1697 = vshll.u32 %v1501, 16
      %v1699 = vrot.slane %v1697, 5
      %v1700 = vor.u32 %v1696, %v1699
      %v1702 = vshrl.u32 %v1597, 16
      %v1704 = vrot.slane %v1702, 4
      %v1705 = vshll.u32 %v1597, 16
      %v1707 = vrot.slane %v1705, 5
      %v1708 = vor.u32 %v1704, %v1707
      %v1709 = vsel %vm918, %v1700, %v1708
      %v1711 = vshrl.u32 %v1502, 16
      %v1713 = vrot.slane %v1711, 4
      %v1714 = vshll.u32 %v1502, 16
      %v1716 = vrot.slane %v1714, 5
      %v1717 = vor.u32 %v1713, %v1716
      %v1719 = vshrl.u32 %v1598, 16
      %v1721 = vrot.slane %v1719, 4
      %v1722 = vshll.u32 %v1598, 16
      %v1724 = vrot.slane %v1722, 5
      %v1725 = vor.u32 %v1721, %v1724
      %v1726 = vsel %vm918, %v1717, %v1725
      %v1728 = vshrl.u32 %v1503, 16
      %v1730 = vrot.slane %v1728, 4
      %v1731 = vshll.u32 %v1503, 16
      %v1733 = vrot.slane %v1731, 5
      %v1734 = vor.u32 %v1730, %v1733
      %v1736 = vshrl.u32 %v1599, 16
      %v1738 = vrot.slane %v1736, 4
      %v1739 = vshll.u32 %v1599, 16
      %v1741 = vrot.slane %v1739, 5
      %v1742 = vor.u32 %v1738, %v1741
      %v1743 = vsel %vm918, %v1734, %v1742
      %v1745 = vshrl.u32 %v1504, 16
      %v1747 = vrot.slane %v1745, 4
      %v1748 = vshll.u32 %v1504, 16
      %v1750 = vrot.slane %v1748, 5
      %v1751 = vor.u32 %v1747, %v1750
      %v1753 = vshrl.u32 %v1600, 16
      %v1755 = vrot.slane %v1753, 4
      %v1756 = vshll.u32 %v1600, 16
      %v1758 = vrot.slane %v1756, 5
      %v1759 = vor.u32 %v1755, %v1758
      %v1760 = vsel %vm918, %v1751, %v1759
      %v1762 = vshrl.u32 %v1505, 16
      %v1764 = vrot.slane %v1762, 4
      %v1765 = vshll.u32 %v1505, 16
      %v1767 = vrot.slane %v1765, 5
      %v1768 = vor.u32 %v1764, %v1767
      %v1770 = vshrl.u32 %v1601, 16
      %v1772 = vrot.slane %v1770, 4
      %v1773 = vshll.u32 %v1601, 16
      %v1775 = vrot.slane %v1773, 5
      %v1776 = vor.u32 %v1772, %v1775
      %v1777 = vsel %vm918, %v1768, %v1776
      %v1779 = vshrl.u32 %v1506, 16
      %v1781 = vrot.slane %v1779, 4
      %v1782 = vshll.u32 %v1506, 16
      %v1784 = vrot.slane %v1782, 5
      %v1785 = vor.u32 %v1781, %v1784
      %v1787 = vshrl.u32 %v1602, 16
      %v1789 = vrot.slane %v1787, 4
      %v1790 = vshll.u32 %v1602, 16
      %v1792 = vrot.slane %v1790, 5
      %v1793 = vor.u32 %v1789, %v1792
      %v1794 = vsel %vm918, %v1785, %v1793
      %v1796 = vshrl.u32 %v1507, 16
      %v1798 = vrot.slane %v1796, 4
      %v1799 = vshll.u32 %v1507, 16
      %v1801 = vrot.slane %v1799, 5
      %v1802 = vor.u32 %v1798, %v1801
      %v1804 = vshrl.u32 %v1603, 16
      %v1806 = vrot.slane %v1804, 4
      %v1807 = vshll.u32 %v1603, 16
      %v1809 = vrot.slane %v1807, 5
      %v1810 = vor.u32 %v1806, %v1809
      %v1811 = vsel %vm918, %v1802, %v1810
      %v1813 = vshrl.u32 %v1508, 16
      %v1815 = vrot.slane %v1813, 4
      %v1816 = vshll.u32 %v1508, 16
      %v1818 = vrot.slane %v1816, 5
      %v1819 = vor.u32 %v1815, %v1818
      %v1821 = vshrl.u32 %v1604, 16
      %v1823 = vrot.slane %v1821, 4
      %v1824 = vshll.u32 %v1604, 16
      %v1826 = vrot.slane %v1824, 5
      %v1827 = vor.u32 %v1823, %v1826
      %v1828 = vsel %vm918, %v1819, %v1827
      %v1830 = vshrl.u32 %v1509, 16
      %v1832 = vrot.slane %v1830, 4
      %v1833 = vshll.u32 %v1509, 16
      %v1835 = vrot.slane %v1833, 5
      %v1836 = vor.u32 %v1832, %v1835
      %v1838 = vshrl.u32 %v1605, 16
      %v1840 = vrot.slane %v1838, 4
      %v1841 = vshll.u32 %v1605, 16
      %v1843 = vrot.slane %v1841, 5
      %v1844 = vor.u32 %v1840, %v1843
      %v1845 = vsel %vm918, %v1836, %v1844
      %v1847 = vshrl.u32 %v1510, 16
      %v1849 = vrot.slane %v1847, 4
      %v1850 = vshll.u32 %v1510, 16
      %v1852 = vrot.slane %v1850, 5
      %v1853 = vor.u32 %v1849, %v1852
      %v1855 = vshrl.u32 %v1606, 16
      %v1857 = vrot.slane %v1855, 4
      %v1858 = vshll.u32 %v1606, 16
      %v1860 = vrot.slane %v1858, 5
      %v1861 = vor.u32 %v1857, %v1860
      %v1862 = vsel %vm918, %v1853, %v1861
      %v1864 = vshrl.u32 %v1511, 16
      %v1866 = vrot.slane %v1864, 4
      %v1867 = vshll.u32 %v1511, 16
      %v1869 = vrot.slane %v1867, 5
      %v1870 = vor.u32 %v1866, %v1869
      %v1872 = vshrl.u32 %v1607, 16
      %v1874 = vrot.slane %v1872, 4
      %v1875 = vshll.u32 %v1607, 16
      %v1877 = vrot.slane %v1875, 5
      %v1878 = vor.u32 %v1874, %v1877
      %v1879 = vsel %vm918, %v1870, %v1878
      %s1880 = scalar_lea.vmem [#allocation2], 32
      %v1881 = vld [vmem:[%s1880] sm:$0xf8]
      %v1882 = vld [vmem:[%s1880 + $0x8] sm:$0xf]
      %v1883 = vld [vmem:[%s1880 + $0x10] sm:$0xf8]
      %v1884 = vld [vmem:[%s1880 + $0x18] sm:$0xf]
      %v1885 = vld [vmem:[%s1880 + $0x20] sm:$0xf8]
      %v1886 = vld [vmem:[%s1880 + $0x28] sm:$0xf]
      %v1887 = vld [vmem:[%s1880 + $0x30] sm:$0xf8]
      %v1888 = vld [vmem:[%s1880 + $0x38] sm:$0xf]
      %v1889 = vld [vmem:[%s1880 + $0x40] sm:$0xf8]
      %v1890 = vld [vmem:[%s1880 + $0x48] sm:$0xf]
      %v1891 = vld [vmem:[%s1880 + $0x50] sm:$0xf8]
      %v1892 = vld [vmem:[%s1880 + $0x58] sm:$0xf]
      %v1893 = vld [vmem:[%s1880 + $0x60] sm:$0xf8]
      %v1894 = vld [vmem:[%s1880 + $0x68] sm:$0xf]
      %v1895 = vld [vmem:[%s1880 + $0x70] sm:$0xf8]
      %v1896 = vld [vmem:[%s1880 + $0x78] sm:$0xf]
      %v1897 = vld [vmem:[%s1880 + $0x80] sm:$0xf8]
      %v1898 = vld [vmem:[%s1880 + $0x88] sm:$0xf]
      %v1899 = vld [vmem:[%s1880 + $0x90] sm:$0xf8]
      %v1900 = vld [vmem:[%s1880 + $0x98] sm:$0xf]
      %v1901 = vld [vmem:[%s1880 + $0xa0] sm:$0xf8]
      %v1902 = vld [vmem:[%s1880 + $0xa8] sm:$0xf]
      %v1903 = vld [vmem:[%s1880 + $0xb0] sm:$0xf8]
      %v1904 = vld [vmem:[%s1880 + $0xb8] sm:$0xf]
      %v1905 = vld [vmem:[%s1880 + $0xc0] sm:$0xf8]
      %v1906 = vld [vmem:[%s1880 + $0xc8] sm:$0xf]
      %v1907 = vld [vmem:[%s1880 + $0xd0] sm:$0xf8]
      %v1908 = vld [vmem:[%s1880 + $0xd8] sm:$0xf]
      %v1909 = vld [vmem:[%s1880 + $0xe0] sm:$0xf8]
      %v1910 = vld [vmem:[%s1880 + $0xe8] sm:$0xf]
      %v1911 = vld [vmem:[%s1880 + $0xf0] sm:$0xf8]
      %v1912 = vld [vmem:[%s1880 + $0xf8] sm:$0xf]
      %v1914 = vshrl.u32 %v1881, 16
      %v1916 = vrot.slane %v1914, 3
      %v1917 = vshll.u32 %v1881, 16
      %v1919 = vrot.slane %v1917, 4
      %v1920 = vor.u32 %v1916, %v1919
      %v1922 = vshrl.u32 %v1882, 16
      %v1924 = vrot.slane %v1922, 3
      %v1925 = vshll.u32 %v1882, 16
      %v1927 = vrot.slane %v1925, 4
      %v1928 = vor.u32 %v1924, %v1927
      %v1929 = vsel %vm532, %v1920, %v1928
      %v1931 = vshrl.u32 %v1883, 16
      %v1933 = vrot.slane %v1931, 3
      %v1934 = vshll.u32 %v1883, 16
      %v1936 = vrot.slane %v1934, 4
      %v1937 = vor.u32 %v1933, %v1936
      %v1939 = vshrl.u32 %v1884, 16
      %v1941 = vrot.slane %v1939, 3
      %v1942 = vshll.u32 %v1884, 16
      %v1944 = vrot.slane %v1942, 4
      %v1945 = vor.u32 %v1941, %v1944
      %v1946 = vsel %vm532, %v1937, %v1945
      %v1948 = vshrl.u32 %v1885, 16
      %v1950 = vrot.slane %v1948, 3
      %v1951 = vshll.u32 %v1885, 16
      %v1953 = vrot.slane %v1951, 4
      %v1954 = vor.u32 %v1950, %v1953
      %v1956 = vshrl.u32 %v1886, 16
      %v1958 = vrot.slane %v1956, 3
      %v1959 = vshll.u32 %v1886, 16
      %v1961 = vrot.slane %v1959, 4
      %v1962 = vor.u32 %v1958, %v1961
      %v1963 = vsel %vm532, %v1954, %v1962
      %v1965 = vshrl.u32 %v1887, 16
      %v1967 = vrot.slane %v1965, 3
      %v1968 = vshll.u32 %v1887, 16
      %v1970 = vrot.slane %v1968, 4
      %v1971 = vor.u32 %v1967, %v1970
      %v1973 = vshrl.u32 %v1888, 16
      %v1975 = vrot.slane %v1973, 3
      %v1976 = vshll.u32 %v1888, 16
      %v1978 = vrot.slane %v1976, 4
      %v1979 = vor.u32 %v1975, %v1978
      %v1980 = vsel %vm532, %v1971, %v1979
      %v1982 = vshrl.u32 %v1889, 16
      %v1984 = vrot.slane %v1982, 3
      %v1985 = vshll.u32 %v1889, 16
      %v1987 = vrot.slane %v1985, 4
      %v1988 = vor.u32 %v1984, %v1987
      %v1990 = vshrl.u32 %v1890, 16
      %v1992 = vrot.slane %v1990, 3
      %v1993 = vshll.u32 %v1890, 16
      %v1995 = vrot.slane %v1993, 4
      %v1996 = vor.u32 %v1992, %v1995
      %v1997 = vsel %vm532, %v1988, %v1996
      %v1999 = vshrl.u32 %v1891, 16
      %v2001 = vrot.slane %v1999, 3
      %v2002 = vshll.u32 %v1891, 16
      %v2004 = vrot.slane %v2002, 4
      %v2005 = vor.u32 %v2001, %v2004
      %v2007 = vshrl.u32 %v1892, 16
      %v2009 = vrot.slane %v2007, 3
      %v2010 = vshll.u32 %v1892, 16
      %v2012 = vrot.slane %v2010, 4
      %v2013 = vor.u32 %v2009, %v2012
      %v2014 = vsel %vm532, %v2005, %v2013
      %v2016 = vshrl.u32 %v1893, 16
      %v2018 = vrot.slane %v2016, 3
      %v2019 = vshll.u32 %v1893, 16
      %v2021 = vrot.slane %v2019, 4
      %v2022 = vor.u32 %v2018, %v2021
      %v2024 = vshrl.u32 %v1894, 16
      %v2026 = vrot.slane %v2024, 3
      %v2027 = vshll.u32 %v1894, 16
      %v2029 = vrot.slane %v2027, 4
      %v2030 = vor.u32 %v2026, %v2029
      %v2031 = vsel %vm532, %v2022, %v2030
      %v2033 = vshrl.u32 %v1895, 16
      %v2035 = vrot.slane %v2033, 3
      %v2036 = vshll.u32 %v1895, 16
      %v2038 = vrot.slane %v2036, 4
      %v2039 = vor.u32 %v2035, %v2038
      %v2041 = vshrl.u32 %v1896, 16
      %v2043 = vrot.slane %v2041, 3
      %v2044 = vshll.u32 %v1896, 16
      %v2046 = vrot.slane %v2044, 4
      %v2047 = vor.u32 %v2043, %v2046
      %v2048 = vsel %vm532, %v2039, %v2047
      %v2050 = vshrl.u32 %v1897, 16
      %v2052 = vrot.slane %v2050, 3
      %v2053 = vshll.u32 %v1897, 16
      %v2055 = vrot.slane %v2053, 4
      %v2056 = vor.u32 %v2052, %v2055
      %v2058 = vshrl.u32 %v1898, 16
      %v2060 = vrot.slane %v2058, 3
      %v2061 = vshll.u32 %v1898, 16
      %v2063 = vrot.slane %v2061, 4
      %v2064 = vor.u32 %v2060, %v2063
      %v2065 = vsel %vm532, %v2056, %v2064
      %v2067 = vshrl.u32 %v1899, 16
      %v2069 = vrot.slane %v2067, 3
      %v2070 = vshll.u32 %v1899, 16
      %v2072 = vrot.slane %v2070, 4
      %v2073 = vor.u32 %v2069, %v2072
      %v2075 = vshrl.u32 %v1900, 16
      %v2077 = vrot.slane %v2075, 3
      %v2078 = vshll.u32 %v1900, 16
      %v2080 = vrot.slane %v2078, 4
      %v2081 = vor.u32 %v2077, %v2080
      %v2082 = vsel %vm532, %v2073, %v2081
      %v2084 = vshrl.u32 %v1901, 16
      %v2086 = vrot.slane %v2084, 3
      %v2087 = vshll.u32 %v1901, 16
      %v2089 = vrot.slane %v2087, 4
      %v2090 = vor.u32 %v2086, %v2089
      %v2092 = vshrl.u32 %v1902, 16
      %v2094 = vrot.slane %v2092, 3
      %v2095 = vshll.u32 %v1902, 16
      %v2097 = vrot.slane %v2095, 4
      %v2098 = vor.u32 %v2094, %v2097
      %v2099 = vsel %vm532, %v2090, %v2098
      %v2101 = vshrl.u32 %v1903, 16
      %v2103 = vrot.slane %v2101, 3
      %v2104 = vshll.u32 %v1903, 16
      %v2106 = vrot.slane %v2104, 4
      %v2107 = vor.u32 %v2103, %v2106
      %v2109 = vshrl.u32 %v1904, 16
      %v2111 = vrot.slane %v2109, 3
      %v2112 = vshll.u32 %v1904, 16
      %v2114 = vrot.slane %v2112, 4
      %v2115 = vor.u32 %v2111, %v2114
      %v2116 = vsel %vm532, %v2107, %v2115
      %v2118 = vshrl.u32 %v1905, 16
      %v2120 = vrot.slane %v2118, 3
      %v2121 = vshll.u32 %v1905, 16
      %v2123 = vrot.slane %v2121, 4
      %v2124 = vor.u32 %v2120, %v2123
      %v2126 = vshrl.u32 %v1906, 16
      %v2128 = vrot.slane %v2126, 3
      %v2129 = vshll.u32 %v1906, 16
      %v2131 = vrot.slane %v2129, 4
      %v2132 = vor.u32 %v2128, %v2131
      %v2133 = vsel %vm532, %v2124, %v2132
      %v2135 = vshrl.u32 %v1907, 16
      %v2137 = vrot.slane %v2135, 3
      %v2138 = vshll.u32 %v1907, 16
      %v2140 = vrot.slane %v2138, 4
      %v2141 = vor.u32 %v2137, %v2140
      %v2143 = vshrl.u32 %v1908, 16
      %v2145 = vrot.slane %v2143, 3
      %v2146 = vshll.u32 %v1908, 16
      %v2148 = vrot.slane %v2146, 4
      %v2149 = vor.u32 %v2145, %v2148
      %v2150 = vsel %vm532, %v2141, %v2149
      %v2152 = vshrl.u32 %v1909, 16
      %v2154 = vrot.slane %v2152, 3
      %v2155 = vshll.u32 %v1909, 16
      %v2157 = vrot.slane %v2155, 4
      %v2158 = vor.u32 %v2154, %v2157
      %v2160 = vshrl.u32 %v1910, 16
      %v2162 = vrot.slane %v2160, 3
      %v2163 = vshll.u32 %v1910, 16
      %v2165 = vrot.slane %v2163, 4
      %v2166 = vor.u32 %v2162, %v2165
      %v2167 = vsel %vm532, %v2158, %v2166
      %v2169 = vshrl.u32 %v1911, 16
      %v2171 = vrot.slane %v2169, 3
      %v2172 = vshll.u32 %v1911, 16
      %v2174 = vrot.slane %v2172, 4
      %v2175 = vor.u32 %v2171, %v2174
      %v2177 = vshrl.u32 %v1912, 16
      %v2179 = vrot.slane %v2177, 3
      %v2180 = vshll.u32 %v1912, 16
      %v2182 = vrot.slane %v2180, 4
      %v2183 = vor.u32 %v2179, %v2182
      %v2184 = vsel %vm532, %v2175, %v2183
      %v2185 = vld [vmem:[%s1880] sm:$0xf0]
      %v2186 = vld [vmem:[%s1880 + $0x10] sm:$0xf0]
      %v2187 = vld [vmem:[%s1880 + $0x20] sm:$0xf0]
      %v2188 = vld [vmem:[%s1880 + $0x30] sm:$0xf0]
      %v2189 = vld [vmem:[%s1880 + $0x40] sm:$0xf0]
      %v2190 = vld [vmem:[%s1880 + $0x50] sm:$0xf0]
      %v2191 = vld [vmem:[%s1880 + $0x60] sm:$0xf0]
      %v2192 = vld [vmem:[%s1880 + $0x70] sm:$0xf0]
      %v2193 = vld [vmem:[%s1880 + $0x80] sm:$0xf0]
      %v2194 = vld [vmem:[%s1880 + $0x90] sm:$0xf0]
      %v2195 = vld [vmem:[%s1880 + $0xa0] sm:$0xf0]
      %v2196 = vld [vmem:[%s1880 + $0xb0] sm:$0xf0]
      %v2197 = vld [vmem:[%s1880 + $0xc0] sm:$0xf0]
      %v2198 = vld [vmem:[%s1880 + $0xd0] sm:$0xf0]
      %v2199 = vld [vmem:[%s1880 + $0xe0] sm:$0xf0]
      %v2200 = vld [vmem:[%s1880 + $0xf0] sm:$0xf0]
      %v2233 = vrot.slane %v2185, 4
      %v2234 = vrot.slane %v1882, 4
      %v2235 = vsel %vm853, %v2233, %v2234
      %v2236 = vrot.slane %v2186, 4
      %v2237 = vrot.slane %v1884, 4
      %v2238 = vsel %vm853, %v2236, %v2237
      %v2239 = vrot.slane %v2187, 4
      %v2240 = vrot.slane %v1886, 4
      %v2241 = vsel %vm853, %v2239, %v2240
      %v2242 = vrot.slane %v2188, 4
      %v2243 = vrot.slane %v1888, 4
      %v2244 = vsel %vm853, %v2242, %v2243
      %v2245 = vrot.slane %v2189, 4
      %v2246 = vrot.slane %v1890, 4
      %v2247 = vsel %vm853, %v2245, %v2246
      %v2248 = vrot.slane %v2190, 4
      %v2249 = vrot.slane %v1892, 4
      %v2250 = vsel %vm853, %v2248, %v2249
      %v2251 = vrot.slane %v2191, 4
      %v2252 = vrot.slane %v1894, 4
      %v2253 = vsel %vm853, %v2251, %v2252
      %v2254 = vrot.slane %v2192, 4
      %v2255 = vrot.slane %v1896, 4
      %v2256 = vsel %vm853, %v2254, %v2255
      %v2257 = vrot.slane %v2193, 4
      %v2258 = vrot.slane %v1898, 4
      %v2259 = vsel %vm853, %v2257, %v2258
      %v2260 = vrot.slane %v2194, 4
      %v2261 = vrot.slane %v1900, 4
      %v2262 = vsel %vm853, %v2260, %v2261
      %v2263 = vrot.slane %v2195, 4
      %v2264 = vrot.slane %v1902, 4
      %v2265 = vsel %vm853, %v2263, %v2264
      %v2266 = vrot.slane %v2196, 4
      %v2267 = vrot.slane %v1904, 4
      %v2268 = vsel %vm853, %v2266, %v2267
      %v2269 = vrot.slane %v2197, 4
      %v2270 = vrot.slane %v1906, 4
      %v2271 = vsel %vm853, %v2269, %v2270
      %v2272 = vrot.slane %v2198, 4
      %v2273 = vrot.slane %v1908, 4
      %v2274 = vsel %vm853, %v2272, %v2273
      %v2275 = vrot.slane %v2199, 4
      %v2276 = vrot.slane %v1910, 4
      %v2277 = vsel %vm853, %v2275, %v2276
      %v2278 = vrot.slane %v2200, 4
      %v2279 = vrot.slane %v1912, 4
      %v2280 = vsel %vm853, %v2278, %v2279
      %v2281 = vld [vmem:[%s1880 + $0x8] sm:$0x1f]
      %v2282 = vld [vmem:[%s1880 + $0x18] sm:$0x1f]
      %v2283 = vld [vmem:[%s1880 + $0x28] sm:$0x1f]
      %v2284 = vld [vmem:[%s1880 + $0x38] sm:$0x1f]
      %v2285 = vld [vmem:[%s1880 + $0x48] sm:$0x1f]
      %v2286 = vld [vmem:[%s1880 + $0x58] sm:$0x1f]
      %v2287 = vld [vmem:[%s1880 + $0x68] sm:$0x1f]
      %v2288 = vld [vmem:[%s1880 + $0x78] sm:$0x1f]
      %v2289 = vld [vmem:[%s1880 + $0x88] sm:$0x1f]
      %v2290 = vld [vmem:[%s1880 + $0x98] sm:$0x1f]
      %v2291 = vld [vmem:[%s1880 + $0xa8] sm:$0x1f]
      %v2292 = vld [vmem:[%s1880 + $0xb8] sm:$0x1f]
      %v2293 = vld [vmem:[%s1880 + $0xc8] sm:$0x1f]
      %v2294 = vld [vmem:[%s1880 + $0xd8] sm:$0x1f]
      %v2295 = vld [vmem:[%s1880 + $0xe8] sm:$0x1f]
      %v2296 = vld [vmem:[%s1880 + $0xf8] sm:$0x1f]
      %v2298 = vshrl.u32 %v2185, 16
      %v2300 = vrot.slane %v2298, 4
      %v2301 = vshll.u32 %v2185, 16
      %v2303 = vrot.slane %v2301, 5
      %v2304 = vor.u32 %v2300, %v2303
      %v2306 = vshrl.u32 %v2281, 16
      %v2308 = vrot.slane %v2306, 4
      %v2309 = vshll.u32 %v2281, 16
      %v2311 = vrot.slane %v2309, 5
      %v2312 = vor.u32 %v2308, %v2311
      %v2313 = vsel %vm918, %v2304, %v2312
      %v2315 = vshrl.u32 %v2186, 16
      %v2317 = vrot.slane %v2315, 4
      %v2318 = vshll.u32 %v2186, 16
      %v2320 = vrot.slane %v2318, 5
      %v2321 = vor.u32 %v2317, %v2320
      %v2323 = vshrl.u32 %v2282, 16
      %v2325 = vrot.slane %v2323, 4
      %v2326 = vshll.u32 %v2282, 16
      %v2328 = vrot.slane %v2326, 5
      %v2329 = vor.u32 %v2325, %v2328
      %v2330 = vsel %vm918, %v2321, %v2329
      %v2332 = vshrl.u32 %v2187, 16
      %v2334 = vrot.slane %v2332, 4
      %v2335 = vshll.u32 %v2187, 16
      %v2337 = vrot.slane %v2335, 5
      %v2338 = vor.u32 %v2334, %v2337
      %v2340 = vshrl.u32 %v2283, 16
      %v2342 = vrot.slane %v2340, 4
      %v2343 = vshll.u32 %v2283, 16
      %v2345 = vrot.slane %v2343, 5
      %v2346 = vor.u32 %v2342, %v2345
      %v2347 = vsel %vm918, %v2338, %v2346
      %v2349 = vshrl.u32 %v2188, 16
      %v2351 = vrot.slane %v2349, 4
      %v2352 = vshll.u32 %v2188, 16
      %v2354 = vrot.slane %v2352, 5
      %v2355 = vor.u32 %v2351, %v2354
      %v2357 = vshrl.u32 %v2284, 16
      %v2359 = vrot.slane %v2357, 4
      %v2360 = vshll.u32 %v2284, 16
      %v2362 = vrot.slane %v2360, 5
      %v2363 = vor.u32 %v2359, %v2362
      %v2364 = vsel %vm918, %v2355, %v2363
      %v2366 = vshrl.u32 %v2189, 16
      %v2368 = vrot.slane %v2366, 4
      %v2369 = vshll.u32 %v2189, 16
      %v2371 = vrot.slane %v2369, 5
      %v2372 = vor.u32 %v2368, %v2371
      %v2374 = vshrl.u32 %v2285, 16
      %v2376 = vrot.slane %v2374, 4
      %v2377 = vshll.u32 %v2285, 16
      %v2379 = vrot.slane %v2377, 5
      %v2380 = vor.u32 %v2376, %v2379
      %v2381 = vsel %vm918, %v2372, %v2380
      %v2383 = vshrl.u32 %v2190, 16
      %v2385 = vrot.slane %v2383, 4
      %v2386 = vshll.u32 %v2190, 16
      %v2388 = vrot.slane %v2386, 5
      %v2389 = vor.u32 %v2385, %v2388
      %v2391 = vshrl.u32 %v2286, 16
      %v2393 = vrot.slane %v2391, 4
      %v2394 = vshll.u32 %v2286, 16
      %v2396 = vrot.slane %v2394, 5
      %v2397 = vor.u32 %v2393, %v2396
      %v2398 = vsel %vm918, %v2389, %v2397
      %v2400 = vshrl.u32 %v2191, 16
      %v2402 = vrot.slane %v2400, 4
      %v2403 = vshll.u32 %v2191, 16
      %v2405 = vrot.slane %v2403, 5
      %v2406 = vor.u32 %v2402, %v2405
      %v2408 = vshrl.u32 %v2287, 16
      %v2410 = vrot.slane %v2408, 4
      %v2411 = vshll.u32 %v2287, 16
      %v2413 = vrot.slane %v2411, 5
      %v2414 = vor.u32 %v2410, %v2413
      %v2415 = vsel %vm918, %v2406, %v2414
      %v2417 = vshrl.u32 %v2192, 16
      %v2419 = vrot.slane %v2417, 4
      %v2420 = vshll.u32 %v2192, 16
      %v2422 = vrot.slane %v2420, 5
      %v2423 = vor.u32 %v2419, %v2422
      %v2425 = vshrl.u32 %v2288, 16
      %v2427 = vrot.slane %v2425, 4
      %v2428 = vshll.u32 %v2288, 16
      %v2430 = vrot.slane %v2428, 5
      %v2431 = vor.u32 %v2427, %v2430
      %v2432 = vsel %vm918, %v2423, %v2431
      %v2434 = vshrl.u32 %v2193, 16
      %v2436 = vrot.slane %v2434, 4
      %v2437 = vshll.u32 %v2193, 16
      %v2439 = vrot.slane %v2437, 5
      %v2440 = vor.u32 %v2436, %v2439
      %v2442 = vshrl.u32 %v2289, 16
      %v2444 = vrot.slane %v2442, 4
      %v2445 = vshll.u32 %v2289, 16
      %v2447 = vrot.slane %v2445, 5
      %v2448 = vor.u32 %v2444, %v2447
      %v2449 = vsel %vm918, %v2440, %v2448
      %v2451 = vshrl.u32 %v2194, 16
      %v2453 = vrot.slane %v2451, 4
      %v2454 = vshll.u32 %v2194, 16
      %v2456 = vrot.slane %v2454, 5
      %v2457 = vor.u32 %v2453, %v2456
      %v2459 = vshrl.u32 %v2290, 16
      %v2461 = vrot.slane %v2459, 4
      %v2462 = vshll.u32 %v2290, 16
      %v2464 = vrot.slane %v2462, 5
      %v2465 = vor.u32 %v2461, %v2464
      %v2466 = vsel %vm918, %v2457, %v2465
      %v2468 = vshrl.u32 %v2195, 16
      %v2470 = vrot.slane %v2468, 4
      %v2471 = vshll.u32 %v2195, 16
      %v2473 = vrot.slane %v2471, 5
      %v2474 = vor.u32 %v2470, %v2473
      %v2476 = vshrl.u32 %v2291, 16
      %v2478 = vrot.slane %v2476, 4
      %v2479 = vshll.u32 %v2291, 16
      %v2481 = vrot.slane %v2479, 5
      %v2482 = vor.u32 %v2478, %v2481
      %v2483 = vsel %vm918, %v2474, %v2482
      %v2485 = vshrl.u32 %v2196, 16
      %v2487 = vrot.slane %v2485, 4
      %v2488 = vshll.u32 %v2196, 16
      %v2490 = vrot.slane %v2488, 5
      %v2491 = vor.u32 %v2487, %v2490
      %v2493 = vshrl.u32 %v2292, 16
      %v2495 = vrot.slane %v2493, 4
      %v2496 = vshll.u32 %v2292, 16
      %v2498 = vrot.slane %v2496, 5
      %v2499 = vor.u32 %v2495, %v2498
      %v2500 = vsel %vm918, %v2491, %v2499
      %v2502 = vshrl.u32 %v2197, 16
      %v2504 = vrot.slane %v2502, 4
      %v2505 = vshll.u32 %v2197, 16
      %v2507 = vrot.slane %v2505, 5
      %v2508 = vor.u32 %v2504, %v2507
      %v2510 = vshrl.u32 %v2293, 16
      %v2512 = vrot.slane %v2510, 4
      %v2513 = vshll.u32 %v2293, 16
      %v2515 = vrot.slane %v2513, 5
      %v2516 = vor.u32 %v2512, %v2515
      %v2517 = vsel %vm918, %v2508, %v2516
      %v2519 = vshrl.u32 %v2198, 16
      %v2521 = vrot.slane %v2519, 4
      %v2522 = vshll.u32 %v2198, 16
      %v2524 = vrot.slane %v2522, 5
      %v2525 = vor.u32 %v2521, %v2524
      %v2527 = vshrl.u32 %v2294, 16
      %v2529 = vrot.slane %v2527, 4
      %v2530 = vshll.u32 %v2294, 16
      %v2532 = vrot.slane %v2530, 5
      %v2533 = vor.u32 %v2529, %v2532
      %v2534 = vsel %vm918, %v2525, %v2533
      %v2536 = vshrl.u32 %v2199, 16
      %v2538 = vrot.slane %v2536, 4
      %v2539 = vshll.u32 %v2199, 16
      %v2541 = vrot.slane %v2539, 5
      %v2542 = vor.u32 %v2538, %v2541
      %v2544 = vshrl.u32 %v2295, 16
      %v2546 = vrot.slane %v2544, 4
      %v2547 = vshll.u32 %v2295, 16
      %v2549 = vrot.slane %v2547, 5
      %v2550 = vor.u32 %v2546, %v2549
      %v2551 = vsel %vm918, %v2542, %v2550
      %v2553 = vshrl.u32 %v2200, 16
      %v2555 = vrot.slane %v2553, 4
      %v2556 = vshll.u32 %v2200, 16
      %v2558 = vrot.slane %v2556, 5
      %v2559 = vor.u32 %v2555, %v2558
      %v2561 = vshrl.u32 %v2296, 16
      %v2563 = vrot.slane %v2561, 4
      %v2564 = vshll.u32 %v2296, 16
      %v2566 = vrot.slane %v2564, 5
      %v2567 = vor.u32 %v2563, %v2566
      %v2568 = vsel %vm918, %v2559, %v2567
      %2569 = vrot.lane.b32.xlu0 %v856, 64
      %v2570 = vpop.permute.xlu0 %2569
      %2571 = vrot.lane.b32.xlu0 %v859, 64
      %v2572 = vpop.permute.xlu0 %2571
      %2573 = vrot.lane.b32.xlu0 %v862, 64
      %v2574 = vpop.permute.xlu0 %2573
      %2575 = vrot.lane.b32.xlu0 %v865, 64
      %v2576 = vpop.permute.xlu0 %2575
      %2577 = vrot.lane.b32.xlu0 %v868, 64
      %v2578 = vpop.permute.xlu0 %2577
      %2579 = vrot.lane.b32.xlu0 %v871, 64
      %v2580 = vpop.permute.xlu0 %2579
      %2581 = vrot.lane.b32.xlu0 %v874, 64
      %v2582 = vpop.permute.xlu0 %2581
      %2583 = vrot.lane.b32.xlu0 %v877, 64
      %v2584 = vpop.permute.xlu0 %2583
      %2585 = vrot.lane.b32.xlu0 %v880, 64
      %v2586 = vpop.permute.xlu0 %2585
      %2587 = vrot.lane.b32.xlu0 %v883, 64
      %v2588 = vpop.permute.xlu0 %2587
      %2589 = vrot.lane.b32.xlu0 %v886, 64
      %v2590 = vpop.permute.xlu0 %2589
      %2591 = vrot.lane.b32.xlu0 %v889, 64
      %v2592 = vpop.permute.xlu0 %2591
      %2593 = vrot.lane.b32.xlu0 %v892, 64
      %v2594 = vpop.permute.xlu0 %2593
      %2595 = vrot.lane.b32.xlu0 %v895, 64
      %v2596 = vpop.permute.xlu0 %2595
      %2597 = vrot.lane.b32.xlu0 %v898, 64
      %v2598 = vpop.permute.xlu0 %2597
      %2599 = vrot.lane.b32.xlu0 %v901, 64
      %v2600 = vpop.permute.xlu0 %2599
      %2601 = vrot.lane.b32.xlu0 %v1240, 64
      %v2602 = vpop.permute.xlu0 %2601
      %2603 = vrot.lane.b32.xlu0 %v1257, 64
      %v2604 = vpop.permute.xlu0 %2603
      %2605 = vrot.lane.b32.xlu0 %v1274, 64
      %v2606 = vpop.permute.xlu0 %2605
      %2607 = vrot.lane.b32.xlu0 %v1291, 64
      %v2608 = vpop.permute.xlu0 %2607
      %2609 = vrot.lane.b32.xlu0 %v1308, 64
      %v2610 = vpop.permute.xlu0 %2609
      %2611 = vrot.lane.b32.xlu0 %v1325, 64
      %v2612 = vpop.permute.xlu0 %2611
      %2613 = vrot.lane.b32.xlu0 %v1342, 64
      %v2614 = vpop.permute.xlu0 %2613
      %2615 = vrot.lane.b32.xlu0 %v1359, 64
      %v2616 = vpop.permute.xlu0 %2615
      %2617 = vrot.lane.b32.xlu0 %v1376, 64
      %v2618 = vpop.permute.xlu0 %2617
      %2619 = vrot.lane.b32.xlu0 %v1393, 64
      %v2620 = vpop.permute.xlu0 %2619
      %2621 = vrot.lane.b32.xlu0 %v1410, 64
      %v2622 = vpop.permute.xlu0 %2621
      %2623 = vrot.lane.b32.xlu0 %v1427, 64
      %v2624 = vpop.permute.xlu0 %2623
      %2625 = vrot.lane.b32.xlu0 %v1444, 64
      %v2626 = vpop.permute.xlu0 %2625
      %2627 = vrot.lane.b32.xlu0 %v1461, 64
      %v2628 = vpop.permute.xlu0 %2627
      %2629 = vrot.lane.b32.xlu0 %v1478, 64
      %v2630 = vpop.permute.xlu0 %2629
      %2631 = vrot.lane.b32.xlu0 %v1495, 64
      %v2632 = vpop.permute.xlu0 %2631
      %2633 = vrot.lane.b32.xlu0 %v1624, 64
      %v2634 = vpop.permute.xlu0 %2633
      %2635 = vrot.lane.b32.xlu0 %v1641, 64
      %v2636 = vpop.permute.xlu0 %2635
      %2637 = vrot.lane.b32.xlu0 %v1658, 64
      %v2638 = vpop.permute.xlu0 %2637
      %2639 = vrot.lane.b32.xlu0 %v1675, 64
      %v2640 = vpop.permute.xlu0 %2639
      %2641 = vrot.lane.b32.xlu0 %v1692, 64
      %v2642 = vpop.permute.xlu0 %2641
      %2643 = vrot.lane.b32.xlu0 %v1709, 64
      %v2644 = vpop.permute.xlu0 %2643
      %2645 = vrot.lane.b32.xlu0 %v1726, 64
      %v2646 = vpop.permute.xlu0 %2645
      %2647 = vrot.lane.b32.xlu0 %v1743, 64
      %v2648 = vpop.permute.xlu0 %2647
      %2649 = vrot.lane.b32.xlu0 %v1760, 64
      %v2650 = vpop.permute.xlu0 %2649
      %2651 = vrot.lane.b32.xlu0 %v1777, 64
      %v2652 = vpop.permute.xlu0 %2651
      %2653 = vrot.lane.b32.xlu0 %v1794, 64
      %v2654 = vpop.permute.xlu0 %2653
      %2655 = vrot.lane.b32.xlu0 %v1811, 64
      %v2656 = vpop.permute.xlu0 %2655
      %2657 = vrot.lane.b32.xlu0 %v1828, 64
      %v2658 = vpop.permute.xlu0 %2657
      %2659 = vrot.lane.b32.xlu0 %v1845, 64
      %v2660 = vpop.permute.xlu0 %2659
      %2661 = vrot.lane.b32.xlu0 %v1862, 64
      %v2662 = vpop.permute.xlu0 %2661
      %2663 = vrot.lane.b32.xlu0 %v1879, 64
      %v2664 = vpop.permute.xlu0 %2663
      %2665 = vrot.lane.b32.xlu0 %v2235, 64
      %v2666 = vpop.permute.xlu0 %2665
      %2667 = vrot.lane.b32.xlu0 %v2238, 64
      %v2668 = vpop.permute.xlu0 %2667
      %2669 = vrot.lane.b32.xlu0 %v2241, 64
      %v2670 = vpop.permute.xlu0 %2669
      %2671 = vrot.lane.b32.xlu0 %v2244, 64
      %v2672 = vpop.permute.xlu0 %2671
      %2673 = vrot.lane.b32.xlu0 %v2247, 64
      %v2674 = vpop.permute.xlu0 %2673
      %2675 = vrot.lane.b32.xlu0 %v2250, 64
      %v2676 = vpop.permute.xlu0 %2675
      %2677 = vrot.lane.b32.xlu0 %v2253, 64
      %v2678 = vpop.permute.xlu0 %2677
      %2679 = vrot.lane.b32.xlu0 %v2256, 64
      %v2680 = vpop.permute.xlu0 %2679
      %2681 = vrot.lane.b32.xlu0 %v2259, 64
      %v2682 = vpop.permute.xlu0 %2681
      %2683 = vrot.lane.b32.xlu0 %v2262, 64
      %v2684 = vpop.permute.xlu0 %2683
      %2685 = vrot.lane.b32.xlu0 %v2265, 64
      %v2686 = vpop.permute.xlu0 %2685
      %2687 = vrot.lane.b32.xlu0 %v2268, 64
      %v2688 = vpop.permute.xlu0 %2687
      %2689 = vrot.lane.b32.xlu0 %v2271, 64
      %v2690 = vpop.permute.xlu0 %2689
      %2691 = vrot.lane.b32.xlu0 %v2274, 64
      %v2692 = vpop.permute.xlu0 %2691
      %2693 = vrot.lane.b32.xlu0 %v2277, 64
      %v2694 = vpop.permute.xlu0 %2693
      %2695 = vrot.lane.b32.xlu0 %v2280, 64
      %v2696 = vpop.permute.xlu0 %2695
      %vm2697 = vcmask 523264
      %v2700 = vsel %vm2697, %v549, %v2570
      %v2704 = vsel %vm2697, %v566, %v2572
      %v2708 = vsel %vm2697, %v583, %v2574
      %v2712 = vsel %vm2697, %v600, %v2576
      %v2716 = vsel %vm2697, %v617, %v2578
      %v2720 = vsel %vm2697, %v634, %v2580
      %v2724 = vsel %vm2697, %v651, %v2582
      %v2728 = vsel %vm2697, %v668, %v2584
      %v2732 = vsel %vm2697, %v685, %v2586
      %v2736 = vsel %vm2697, %v702, %v2588
      %v2740 = vsel %vm2697, %v719, %v2590
      %v2744 = vsel %vm2697, %v736, %v2592
      %v2748 = vsel %vm2697, %v753, %v2594
      %v2752 = vsel %vm2697, %v770, %v2596
      %v2756 = vsel %vm2697, %v787, %v2598
      %v2760 = vsel %vm2697, %v804, %v2600
      %v2764 = vsel %vm2697, %v935, %v2602
      %v2768 = vsel %vm2697, %v952, %v2604
      %v2772 = vsel %vm2697, %v969, %v2606
      %v2776 = vsel %vm2697, %v986, %v2608
      %v2780 = vsel %vm2697, %v1003, %v2610
      %v2784 = vsel %vm2697, %v1020, %v2612
      %v2788 = vsel %vm2697, %v1037, %v2614
      %v2792 = vsel %vm2697, %v1054, %v2616
      %v2796 = vsel %vm2697, %v1071, %v2618
      %v2800 = vsel %vm2697, %v1088, %v2620
      %v2804 = vsel %vm2697, %v1105, %v2622
      %v2808 = vsel %vm2697, %v1122, %v2624
      %v2812 = vsel %vm2697, %v1139, %v2626
      %v2816 = vsel %vm2697, %v1156, %v2628
      %v2820 = vsel %vm2697, %v1173, %v2630
      %v2824 = vsel %vm2697, %v1190, %v2632
      %v2828 = vsel %vm2697, %v1546, %v2634
      %v2832 = vsel %vm2697, %v1549, %v2636
      %v2836 = vsel %vm2697, %v1552, %v2638
      %v2840 = vsel %vm2697, %v1555, %v2640
      %v2844 = vsel %vm2697, %v1558, %v2642
      %v2848 = vsel %vm2697, %v1561, %v2644
      %v2852 = vsel %vm2697, %v1564, %v2646
      %v2856 = vsel %vm2697, %v1567, %v2648
      %v2860 = vsel %vm2697, %v1570, %v2650
      %v2864 = vsel %vm2697, %v1573, %v2652
      %v2868 = vsel %vm2697, %v1576, %v2654
      %v2872 = vsel %vm2697, %v1579, %v2656
      %v2876 = vsel %vm2697, %v1582, %v2658
      %v2880 = vsel %vm2697, %v1585, %v2660
      %v2884 = vsel %vm2697, %v1588, %v2662
      %v2888 = vsel %vm2697, %v1591, %v2664
      %v2892 = vsel %vm2697, %v1929, %v2666
      %v2896 = vsel %vm2697, %v1946, %v2668
      %v2900 = vsel %vm2697, %v1963, %v2670
      %v2904 = vsel %vm2697, %v1980, %v2672
      %v2908 = vsel %vm2697, %v1997, %v2674
      %v2912 = vsel %vm2697, %v2014, %v2676
      %v2916 = vsel %vm2697, %v2031, %v2678
      %v2920 = vsel %vm2697, %v2048, %v2680
      %v2924 = vsel %vm2697, %v2065, %v2682
      %v2928 = vsel %vm2697, %v2082, %v2684
      %v2932 = vsel %vm2697, %v2099, %v2686
      %v2936 = vsel %vm2697, %v2116, %v2688
      %v2940 = vsel %vm2697, %v2133, %v2690
      %v2944 = vsel %vm2697, %v2150, %v2692
      %v2948 = vsel %vm2697, %v2167, %v2694
      %v2952 = vsel %vm2697, %v2184, %v2696
      %v2954 = vld [vmem:[%s246] sm:$0xf]
      %v2955 = vld [vmem:[%s246 + $0x4] sm:$0xf]
      %v2956 = vld [vmem:[%s246 + $0x8] sm:$0xf]
      %v2957 = vld [vmem:[%s246 + $0xc] sm:$0xf]
      %v2958 = vld [vmem:[%s246 + $0x10] sm:$0xf]
      %v2959 = vld [vmem:[%s246 + $0x14] sm:$0xf]
      %v2960 = vld [vmem:[%s246 + $0x18] sm:$0xf]
      %v2961 = vld [vmem:[%s246 + $0x1c] sm:$0xf]
      %v2962 = vld [vmem:[%s246 + $0x20] sm:$0xf]
      %v2963 = vld [vmem:[%s246 + $0x24] sm:$0xf]
      %v2964 = vld [vmem:[%s246 + $0x28] sm:$0xf]
      %v2965 = vld [vmem:[%s246 + $0x2c] sm:$0xf]
      %v2966 = vld [vmem:[%s246 + $0x30] sm:$0xf]
      %v2967 = vld [vmem:[%s246 + $0x34] sm:$0xf]
      %v2968 = vld [vmem:[%s246 + $0x38] sm:$0xf]
      %v2969 = vld [vmem:[%s246 + $0x3c] sm:$0xf]
      %v2970 = vld [vmem:[%s246 + $0x40] sm:$0xf]
      %v2971 = vld [vmem:[%s246 + $0x44] sm:$0xf]
      %v2972 = vld [vmem:[%s246 + $0x48] sm:$0xf]
      %v2973 = vld [vmem:[%s246 + $0x4c] sm:$0xf]
      %v2974 = vld [vmem:[%s246 + $0x50] sm:$0xf]
      %v2975 = vld [vmem:[%s246 + $0x54] sm:$0xf]
      %v2976 = vld [vmem:[%s246 + $0x58] sm:$0xf]
      %v2977 = vld [vmem:[%s246 + $0x5c] sm:$0xf]
      %v2978 = vld [vmem:[%s246 + $0x60] sm:$0xf]
      %v2979 = vld [vmem:[%s246 + $0x64] sm:$0xf]
      %v2980 = vld [vmem:[%s246 + $0x68] sm:$0xf]
      %v2981 = vld [vmem:[%s246 + $0x6c] sm:$0xf]
      %v2982 = vld [vmem:[%s246 + $0x70] sm:$0xf]
      %v2983 = vld [vmem:[%s246 + $0x74] sm:$0xf]
      %v2984 = vld [vmem:[%s246 + $0x78] sm:$0xf]
      %v2985 = vld [vmem:[%s246 + $0x7c] sm:$0xf]
      %v2986 = vld [vmem:[%s246 + $0x80] sm:$0xf]
      %v2987 = vld [vmem:[%s246 + $0x84] sm:$0xf]
      %v2988 = vld [vmem:[%s246 + $0x88] sm:$0xf]
      %v2989 = vld [vmem:[%s246 + $0x8c] sm:$0xf]
      %v2990 = vld [vmem:[%s246 + $0x90] sm:$0xf]
      %v2991 = vld [vmem:[%s246 + $0x94] sm:$0xf]
      %v2992 = vld [vmem:[%s246 + $0x98] sm:$0xf]
      %v2993 = vld [vmem:[%s246 + $0x9c] sm:$0xf]
      %v2994 = vld [vmem:[%s246 + $0xa0] sm:$0xf]
      %v2995 = vld [vmem:[%s246 + $0xa4] sm:$0xf]
      %v2996 = vld [vmem:[%s246 + $0xa8] sm:$0xf]
      %v2997 = vld [vmem:[%s246 + $0xac] sm:$0xf]
      %v2998 = vld [vmem:[%s246 + $0xb0] sm:$0xf]
      %v2999 = vld [vmem:[%s246 + $0xb4] sm:$0xf]
      %v3000 = vld [vmem:[%s246 + $0xb8] sm:$0xf]
      %v3001 = vld [vmem:[%s246 + $0xbc] sm:$0xf]
      %v3002 = vld [vmem:[%s246 + $0xc0] sm:$0xf]
      %v3003 = vld [vmem:[%s246 + $0xc4] sm:$0xf]
      %v3004 = vld [vmem:[%s246 + $0xc8] sm:$0xf]
      %v3005 = vld [vmem:[%s246 + $0xcc] sm:$0xf]
      %v3006 = vld [vmem:[%s246 + $0xd0] sm:$0xf]
      %v3007 = vld [vmem:[%s246 + $0xd4] sm:$0xf]
      %v3008 = vld [vmem:[%s246 + $0xd8] sm:$0xf]
      %v3009 = vld [vmem:[%s246 + $0xdc] sm:$0xf]
      %v3010 = vld [vmem:[%s246 + $0xe0] sm:$0xf]
      %v3011 = vld [vmem:[%s246 + $0xe4] sm:$0xf]
      %v3012 = vld [vmem:[%s246 + $0xe8] sm:$0xf]
      %v3013 = vld [vmem:[%s246 + $0xec] sm:$0xf]
      %v3014 = vld [vmem:[%s246 + $0xf0] sm:$0xf]
      %v3015 = vld [vmem:[%s246 + $0xf4] sm:$0xf]
      %v3016 = vld [vmem:[%s246 + $0xf8] sm:$0xf]
      %v3017 = vld [vmem:[%s246 + $0xfc] sm:$0xf]
      %v3018 = vld [vmem:[%s246 + $0x100] sm:$0xf]
      %v3019 = vld [vmem:[%s246 + $0x104] sm:$0xf]
      %v3020 = vld [vmem:[%s246 + $0x108] sm:$0xf]
      %v3021 = vld [vmem:[%s246 + $0x10c] sm:$0xf]
      %v3022 = vld [vmem:[%s246 + $0x110] sm:$0xf]
      %v3023 = vld [vmem:[%s246 + $0x114] sm:$0xf]
      %v3024 = vld [vmem:[%s246 + $0x118] sm:$0xf]
      %v3025 = vld [vmem:[%s246 + $0x11c] sm:$0xf]
      %v3098 = vunpack.c.l.b16 %v2954
      %v3099 = vunpack.c.l.b16 %v2955
      %v3100 = vunpack.c.l.b16 %v2956
      %v3101 = vunpack.c.l.b16 %v2957
      %v3102 = vunpack.c.l.b16 %v2958
      %v3103 = vunpack.c.l.b16 %v2959
      %v3104 = vunpack.c.l.b16 %v2960
      %v3105 = vunpack.c.l.b16 %v2961
      %v3106 = vunpack.c.l.b16 %v2962
      %v3107 = vunpack.c.l.b16 %v2963
      %v3108 = vunpack.c.l.b16 %v2964
      %v3109 = vunpack.c.l.b16 %v2965
      %v3110 = vunpack.c.l.b16 %v2966
      %v3111 = vunpack.c.l.b16 %v2967
      %v3112 = vunpack.c.l.b16 %v2968
      %v3113 = vunpack.c.l.b16 %v2969
      %v3114 = vunpack.c.l.b16 %v2970
      %v3115 = vunpack.c.l.b16 %v2971
      %v3116 = vunpack.c.l.b16 %v2972
      %v3117 = vunpack.c.l.b16 %v2973
      %v3118 = vunpack.c.l.b16 %v2974
      %v3119 = vunpack.c.l.b16 %v2975
      %v3120 = vunpack.c.l.b16 %v2976
      %v3121 = vunpack.c.l.b16 %v2977
      %v3122 = vunpack.c.l.b16 %v2978
      %v3123 = vunpack.c.l.b16 %v2979
      %v3124 = vunpack.c.l.b16 %v2980
      %v3125 = vunpack.c.l.b16 %v2981
      %v3126 = vunpack.c.l.b16 %v2982
      %v3127 = vunpack.c.l.b16 %v2983
      %v3128 = vunpack.c.l.b16 %v2984
      %v3129 = vunpack.c.l.b16 %v2985
      %v3130 = vunpack.c.l.b16 %v2986
      %v3131 = vunpack.c.l.b16 %v2987
      %v3132 = vunpack.c.l.b16 %v2988
      %v3133 = vunpack.c.l.b16 %v2989
      %v3134 = vunpack.c.l.b16 %v2990
      %v3135 = vunpack.c.l.b16 %v2991
      %v3136 = vunpack.c.l.b16 %v2992
      %v3137 = vunpack.c.l.b16 %v2993
      %v3138 = vunpack.c.l.b16 %v2994
      %v3139 = vunpack.c.l.b16 %v2995
      %v3140 = vunpack.c.l.b16 %v2996
      %v3141 = vunpack.c.l.b16 %v2997
      %v3142 = vunpack.c.l.b16 %v2998
      %v3143 = vunpack.c.l.b16 %v2999
      %v3144 = vunpack.c.l.b16 %v3000
      %v3145 = vunpack.c.l.b16 %v3001
      %v3146 = vunpack.c.l.b16 %v3002
      %v3147 = vunpack.c.l.b16 %v3003
      %v3148 = vunpack.c.l.b16 %v3004
      %v3149 = vunpack.c.l.b16 %v3005
      %v3150 = vunpack.c.l.b16 %v3006
      %v3151 = vunpack.c.l.b16 %v3007
      %v3152 = vunpack.c.l.b16 %v3008
      %v3153 = vunpack.c.l.b16 %v3009
      %v3154 = vunpack.c.l.b16 %v3010
      %v3155 = vunpack.c.l.b16 %v3011
      %v3156 = vunpack.c.l.b16 %v3012
      %v3157 = vunpack.c.l.b16 %v3013
      %v3158 = vunpack.c.l.b16 %v3014
      %v3159 = vunpack.c.l.b16 %v3015
      %v3160 = vunpack.c.l.b16 %v3016
      %v3161 = vunpack.c.l.b16 %v3017
      %v3162 = vunpack.c.l.b16 %v3018
      %v3163 = vunpack.c.l.b16 %v3019
      %v3164 = vunpack.c.l.b16 %v3020
      %v3165 = vunpack.c.l.b16 %v3021
      %v3166 = vunpack.c.l.b16 %v3022
      %v3167 = vunpack.c.l.b16 %v3023
      %v3168 = vunpack.c.l.b16 %v3024
      %v3169 = vunpack.c.l.b16 %v3025
      %v3170 = vpack.c.b16 %v3099, %v3098
      %v3171 = vpack.c.b16 %v3101, %v3100
      %v3172 = vpack.c.b16 %v3103, %v3102
      %v3173 = vpack.c.b16 %v3105, %v3104
      %v3174 = vpack.c.b16 %v3107, %v3106
      %v3175 = vpack.c.b16 %v3109, %v3108
      %v3176 = vpack.c.b16 %v3111, %v3110
      %v3177 = vpack.c.b16 %v3113, %v3112
      %v3178 = vpack.c.b16 %v3115, %v3114
      %v3179 = vpack.c.b16 %v3117, %v3116
      %v3180 = vpack.c.b16 %v3119, %v3118
      %v3181 = vpack.c.b16 %v3121, %v3120
      %v3182 = vpack.c.b16 %v3123, %v3122
      %v3183 = vpack.c.b16 %v3125, %v3124
      %v3184 = vpack.c.b16 %v3127, %v3126
      %v3185 = vpack.c.b16 %v3129, %v3128
      %v3186 = vpack.c.b16 %v3131, %v3130
      %v3187 = vpack.c.b16 %v3133, %v3132
      %v3188 = vpack.c.b16 %v3135, %v3134
      %v3189 = vpack.c.b16 %v3137, %v3136
      %v3190 = vpack.c.b16 %v3139, %v3138
      %v3191 = vpack.c.b16 %v3141, %v3140
      %v3192 = vpack.c.b16 %v3143, %v3142
      %v3193 = vpack.c.b16 %v3145, %v3144
      %v3194 = vpack.c.b16 %v3147, %v3146
      %v3195 = vpack.c.b16 %v3149, %v3148
      %v3196 = vpack.c.b16 %v3151, %v3150
      %v3197 = vpack.c.b16 %v3153, %v3152
      %v3198 = vpack.c.b16 %v3155, %v3154
      %v3199 = vpack.c.b16 %v3157, %v3156
      %v3200 = vpack.c.b16 %v3159, %v3158
      %v3201 = vpack.c.b16 %v3161, %v3160
      %v3202 = vpack.c.b16 %v3163, %v3162
      %v3203 = vpack.c.b16 %v3165, %v3164
      %v3204 = vpack.c.b16 %v3167, %v3166
      %v3205 = vpack.c.b16 %v3169, %v3168
      %v3243 = vsel %vm2697, %v2313, 0
      %v3246 = vsel %vm2697, %v2330, 0
      %v3249 = vsel %vm2697, %v2347, 0
      %v3252 = vsel %vm2697, %v2364, 0
      %v3255 = vsel %vm2697, %v2381, 0
      %v3258 = vsel %vm2697, %v2398, 0
      %v3261 = vsel %vm2697, %v2415, 0
      %v3264 = vsel %vm2697, %v2432, 0
      %v3267 = vsel %vm2697, %v2449, 0
      %v3270 = vsel %vm2697, %v2466, 0
      %v3273 = vsel %vm2697, %v2483, 0
      %v3276 = vsel %vm2697, %v2500, 0
      %v3279 = vsel %vm2697, %v2517, 0
      %v3282 = vsel %vm2697, %v2534, 0
      %v3285 = vsel %vm2697, %v2551, 0
      %v3288 = vsel %vm2697, %v2568, 0
      %3290 = vmatprep.subr.bf16.mxu0 0
      %3291 = vmatpush1.bf16.msra.mxu0 %v3170
      %3292 = vmatprep.subr.bf16.mxu0 0
      %3293 = vmatpush1.bf16.msra.mxu0 %v3171
      %3294 = vmatprep.subr.bf16.mxu0 0
      %3295 = vmatpush1.bf16.msra.mxu0 %v3172
      %3296 = vmatprep.subr.bf16.mxu0 0
      %3297 = vmatpush1.bf16.msra.mxu0 %v3173
      %3298 = vmatprep.subr.bf16.mxu0 0
      %3299 = vmatpush1.bf16.msra.mxu0 %v3174
      %3300 = vmatprep.subr.bf16.mxu0 0
      %3301 = vmatpush1.bf16.msra.mxu0 %v3175
      %3302 = vmatprep.subr.bf16.mxu0 0
      %3303 = vmatpush1.bf16.msra.mxu0 %v3176
      %3304 = vmatprep.subr.bf16.mxu0 0
      %3305 = vmatpush1.bf16.msra.mxu0 %v3177
      %3306 = vmatprep.subr.bf16.mxu0 0
      %3307 = vmatpush1.bf16.msra.mxu0 %v3178
      %3308 = vmatprep.subr.bf16.mxu0 0
      %3309 = vmatpush1.bf16.msra.mxu0 %v3179
      %3310 = vmatprep.subr.bf16.mxu0 0
      %3311 = vmatpush1.bf16.msra.mxu0 %v3180
      %3312 = vmatprep.subr.bf16.mxu0 0
      %3313 = vmatpush1.bf16.msra.mxu0 %v3181
      %3314 = vmatprep.subr.bf16.mxu0 0
      %3315 = vmatpush1.bf16.msra.mxu0 %v3182
      %3316 = vmatprep.subr.bf16.mxu0 0
      %3317 = vmatpush1.bf16.msra.mxu0 %v3183
      %3318 = vmatprep.subr.bf16.mxu0 0
      %3319 = vmatpush1.bf16.msra.mxu0 %v3184
      %3320 = vmatprep.subr.bf16.mxu0 0
      %3321 = vmatpush1.bf16.msra.mxu0 %v3185
      %3322 = vmatprep.mubr.bf16.mxu0 %v2764
      %3323 = vmatmul.mubr.bf16.gmra.mrb[0].mxu0 %v2700
      %v3324 = vpop.f32.mrb[0].mxu0
      %v3325 = vadd.f32 0.0, %v3324
      %v3326 = vpop.f32.mrb[0].mxu0
      %v3327 = vpop.f32.mrb[0].mxu0
      %v3328 = vadd.f32 0.0, %v3327
      %v3329 = vpop.f32.mrb[0].mxu0
      %3330 = vmatprep.mubr.bf16.mxu0 %v2768
      %3331 = vmatmul.mubr.bf16.gmra.mrb[0].mxu0 %v2704
      %v3332 = vpop.f32.mrb[0].mxu0
      %v3333 = vadd.f32 0.0, %v3332
      %v3334 = vpop.f32.mrb[0].mxu0
      %v3335 = vpop.f32.mrb[0].mxu0
      %v3336 = vadd.f32 0.0, %v3335
      %v3337 = vpop.f32.mrb[0].mxu0
      %3338 = vmatprep.mubr.bf16.mxu0 %v2772
      %3339 = vmatmul.mubr.bf16.gmra.mrb[0].mxu0 %v2708
      %v3340 = vpop.f32.mrb[0].mxu0
      %v3341 = vadd.f32 0.0, %v3340
      %v3342 = vpop.f32.mrb[0].mxu0
      %v3343 = vpop.f32.mrb[0].mxu0
      %v3344 = vadd.f32 0.0, %v3343
      %v3345 = vpop.f32.mrb[0].mxu0
      %3346 = vmatprep.mubr.bf16.mxu0 %v2776
      %3347 = vmatmul.mubr.bf16.gmra.mrb[0].mxu0 %v2712
      %v3348 = vpop.f32.mrb[0].mxu0
      %v3349 = vadd.f32 0.0, %v3348
      %v3350 = vpop.f32.mrb[0].mxu0
      %v3351 = vpop.f32.mrb[0].mxu0
      %v3352 = vadd.f32 0.0, %v3351
      %v3353 = vpop.f32.mrb[0].mxu0
      %3354 = vmatprep.mubr.bf16.mxu0 %v2780
      %3355 = vmatmul.mubr.bf16.gmra.mrb[0].mxu0 %v2716
      %v3356 = vpop.f32.mrb[0].mxu0
      %v3357 = vadd.f32 0.0, %v3356
      %v3358 = vpop.f32.mrb[0].mxu0
      %v3359 = vpop.f32.mrb[0].mxu0
      %v3360 = vadd.f32 0.0, %v3359
      %v3361 = vpop.f32.mrb[0].mxu0
      %3362 = vmatprep.mubr.bf16.mxu0 %v2784
      %3363 = vmatmul.mubr.bf16.gmra.mrb[0].mxu0 %v2720
      %v3364 = vpop.f32.mrb[0].mxu0
      %v3365 = vadd.f32 0.0, %v3364
      %v3366 = vpop.f32.mrb[0].mxu0
      %v3367 = vpop.f32.mrb[0].mxu0
      %v3368 = vadd.f32 0.0, %v3367
      %v3369 = vpop.f32.mrb[0].mxu0
      %3370 = vmatprep.mubr.bf16.mxu0 %v2788
      %3371 = vmatmul.mubr.bf16.gmra.mrb[0].mxu0 %v2724
      %v3372 = vpop.f32.mrb[0].mxu0
      %v3373 = vadd.f32 0.0, %v3372
      %v3374 = vpop.f32.mrb[0].mxu0
      %v3375 = vpop.f32.mrb[0].mxu0
      %v3376 = vadd.f32 0.0, %v3375
      %v3377 = vpop.f32.mrb[0].mxu0
      %3378 = vmatprep.mubr.bf16.mxu0 %v2792
      %3379 = vmatmul.mubr.bf16.gmra.mrb[0].mxu0 %v2728
      %v3380 = vpop.f32.mrb[0].mxu0
      %v3381 = vadd.f32 0.0, %v3380
      %v3382 = vpop.f32.mrb[0].mxu0
      %v3383 = vpop.f32.mrb[0].mxu0
      %v3384 = vadd.f32 0.0, %v3383
      %v3385 = vpop.f32.mrb[0].mxu0
      %3386 = vmatprep.mubr.bf16.mxu0 %v2796
      %3387 = vmatmul.mubr.bf16.gmra.mrb[0].mxu0 %v2732
      %v3388 = vpop.f32.mrb[0].mxu0
      %v3389 = vadd.f32 0.0, %v3388
      %v3390 = vpop.f32.mrb[0].mxu0
      %v3391 = vpop.f32.mrb[0].mxu0
      %v3392 = vadd.f32 0.0, %v3391
      %v3393 = vpop.f32.mrb[0].mxu0
      %3394 = vmatprep.mubr.bf16.mxu0 %v2800
      %3395 = vmatmul.mubr.bf16.gmra.mrb[0].mxu0 %v2736
      %v3396 = vpop.f32.mrb[0].mxu0
      %v3397 = vadd.f32 0.0, %v3396
      %v3398 = vpop.f32.mrb[0].mxu0
      %v3399 = vpop.f32.mrb[0].mxu0
      %v3400 = vadd.f32 0.0, %v3399
      %v3401 = vpop.f32.mrb[0].mxu0
      %3402 = vmatprep.mubr.bf16.mxu0 %v2804
      %3403 = vmatmul.mubr.bf16.gmra.mrb[0].mxu0 %v2740
      %v3404 = vpop.f32.mrb[0].mxu0
      %v3405 = vadd.f32 0.0, %v3404
      %v3406 = vpop.f32.mrb[0].mxu0
      %v3407 = vpop.f32.mrb[0].mxu0
      %v3408 = vadd.f32 0.0, %v3407
      %v3409 = vpop.f32.mrb[0].mxu0
      %3410 = vmatprep.mubr.bf16.mxu0 %v2808
      %3411 = vmatmul.mubr.bf16.gmra.mrb[0].mxu0 %v2744
      %v3412 = vpop.f32.mrb[0].mxu0
      %v3413 = vadd.f32 0.0, %v3412
      %v3414 = vpop.f32.mrb[0].mxu0
      %v3415 = vpop.f32.mrb[0].mxu0
      %v3416 = vadd.f32 0.0, %v3415
      %v3417 = vpop.f32.mrb[0].mxu0
      %3418 = vmatprep.mubr.bf16.mxu0 %v2812
      %3419 = vmatmul.mubr.bf16.gmra.mrb[0].mxu0 %v2748
      %v3420 = vpop.f32.mrb[0].mxu0
      %v3421 = vadd.f32 0.0, %v3420
      %v3422 = vpop.f32.mrb[0].mxu0
      %v3423 = vpop.f32.mrb[0].mxu0
      %v3424 = vadd.f32 0.0, %v3423
      %v3425 = vpop.f32.mrb[0].mxu0
      %3426 = vmatprep.mubr.bf16.mxu0 %v2816
      %3427 = vmatmul.mubr.bf16.gmra.mrb[0].mxu0 %v2752
      %v3428 = vpop.f32.mrb[0].mxu0
      %v3429 = vadd.f32 0.0, %v3428
      %v3430 = vpop.f32.mrb[0].mxu0
      %v3431 = vpop.f32.mrb[0].mxu0
      %v3432 = vadd.f32 0.0, %v3431
      %v3433 = vpop.f32.mrb[0].mxu0
      %3434 = vmatprep.mubr.bf16.mxu0 %v2820
      %3435 = vmatmul.mubr.bf16.gmra.mrb[0].mxu0 %v2756
      %v3436 = vpop.f32.mrb[0].mxu0
      %v3437 = vadd.f32 0.0, %v3436
      %v3438 = vpop.f32.mrb[0].mxu0
      %v3439 = vpop.f32.mrb[0].mxu0
      %v3440 = vadd.f32 0.0, %v3439
      %v3441 = vpop.f32.mrb[0].mxu0
      %3442 = vmatprep.mubr.bf16.mxu0 %v2824
      %3443 = vmatmul.mubr.bf16.gmra.mrb[0].mxu0 %v2760
      %v3444 = vpop.f32.mrb[0].mxu0
      %v3445 = vadd.f32 0.0, %v3444
      %v3446 = vpop.f32.mrb[0].mxu0
      %v3447 = vpop.f32.mrb[0].mxu0
      %v3448 = vadd.f32 0.0, %v3447
      %v3449 = vpop.f32.mrb[0].mxu0
      %3450 = vdwg.mxu0
      %3451 = vmatprep.subr.bf16.mxu0 0
      %3452 = vmatpush1.bf16.msra.mxu0 %v3186
      %3453 = vmatprep.subr.bf16.mxu0 0
      %3454 = vmatpush1.bf16.msra.mxu0 %v3187
      %3455 = vmatprep.subr.bf16.mxu0 0
      %3456 = vmatpush1.bf16.msra.mxu0 %v3188
      %3457 = vmatprep.subr.bf16.mxu0 0
      %3458 = vmatpush1.bf16.msra.mxu0 %v3189
      %3459 = vmatprep.subr.bf16.mxu0 0
      %3460 = vmatpush1.bf16.msra.mxu0 %v3190
      %3461 = vmatprep.subr.bf16.mxu0 0
      %3462 = vmatpush1.bf16.msra.mxu0 %v3191
      %3463 = vmatprep.subr.bf16.mxu0 0
      %3464 = vmatpush1.bf16.msra.mxu0 %v3192
      %3465 = vmatprep.subr.bf16.mxu0 0
      %3466 = vmatpush1.bf16.msra.mxu0 %v3193
      %3467 = vmatprep.subr.bf16.mxu0 0
      %3468 = vmatpush1.bf16.msra.mxu0 %v3194
      %3469 = vmatprep.subr.bf16.mxu0 0
      %3470 = vmatpush1.bf16.msra.mxu0 %v3195
      %3471 = vmatprep.subr.bf16.mxu0 0
      %3472 = vmatpush1.bf16.msra.mxu0 %v3196
      %3473 = vmatprep.subr.bf16.mxu0 0
      %3474 = vmatpush1.bf16.msra.mxu0 %v3197
      %3475 = vmatprep.subr.bf16.mxu0 0
      %3476 = vmatpush1.bf16.msra.mxu0 %v3198
      %3477 = vmatprep.subr.bf16.mxu0 0
      %3478 = vmatpush1.bf16.msra.mxu0 %v3199
      %3479 = vmatprep.subr.bf16.mxu0 0
      %3480 = vmatpush1.bf16.msra.mxu0 %v3200
      %3481 = vmatprep.subr.bf16.mxu0 0
      %3482 = vmatpush1.bf16.msra.mxu0 %v3201
      %3483 = vmatprep.mubr.bf16.mxu0 %v2892
      %3484 = vmatmul.mubr.bf16.gmra.mrb[0].mxu0 %v2828
      %v3485 = vpop.f32.mrb[0].mxu0
      %v3486 = vadd.f32 %v3325, %v3485
      %v3487 = vpop.f32.mrb[0].mxu0
      %v3488 = vpop.f32.mrb[0].mxu0
      %v3489 = vadd.f32 %v3328, %v3488
      %v3490 = vpop.f32.mrb[0].mxu0
      %3491 = vmatprep.mubr.bf16.mxu0 %v2896
      %3492 = vmatmul.mubr.bf16.gmra.mrb[0].mxu0 %v2832
      %v3493 = vpop.f32.mrb[0].mxu0
      %v3494 = vadd.f32 %v3333, %v3493
      %v3495 = vpop.f32.mrb[0].mxu0
      %v3496 = vpop.f32.mrb[0].mxu0
      %v3497 = vadd.f32 %v3336, %v3496
      %v3498 = vpop.f32.mrb[0].mxu0
      %3499 = vmatprep.mubr.bf16.mxu0 %v2900
      %3500 = vmatmul.mubr.bf16.gmra.mrb[0].mxu0 %v2836
      %v3501 = vpop.f32.mrb[0].mxu0
      %v3502 = vadd.f32 %v3341, %v3501
      %v3503 = vpop.f32.mrb[0].mxu0
      %v3504 = vpop.f32.mrb[0].mxu0
      %v3505 = vadd.f32 %v3344, %v3504
      %v3506 = vpop.f32.mrb[0].mxu0
      %3507 = vmatprep.mubr.bf16.mxu0 %v2904
      %3508 = vmatmul.mubr.bf16.gmra.mrb[0].mxu0 %v2840
      %v3509 = vpop.f32.mrb[0].mxu0
      %v3510 = vadd.f32 %v3349, %v3509
      %v3511 = vpop.f32.mrb[0].mxu0
      %v3512 = vpop.f32.mrb[0].mxu0
      %v3513 = vadd.f32 %v3352, %v3512
      %v3514 = vpop.f32.mrb[0].mxu0
      %3515 = vmatprep.mubr.bf16.mxu0 %v2908
      %3516 = vmatmul.mubr.bf16.gmra.mrb[0].mxu0 %v2844
      %v3517 = vpop.f32.mrb[0].mxu0
      %v3518 = vadd.f32 %v3357, %v3517
      %v3519 = vpop.f32.mrb[0].mxu0
      %v3520 = vpop.f32.mrb[0].mxu0
      %v3521 = vadd.f32 %v3360, %v3520
      %v3522 = vpop.f32.mrb[0].mxu0
      %3523 = vmatprep.mubr.bf16.mxu0 %v2912
      %3524 = vmatmul.mubr.bf16.gmra.mrb[0].mxu0 %v2848
      %v3525 = vpop.f32.mrb[0].mxu0
      %v3526 = vadd.f32 %v3365, %v3525
      %v3527 = vpop.f32.mrb[0].mxu0
      %v3528 = vpop.f32.mrb[0].mxu0
      %v3529 = vadd.f32 %v3368, %v3528
      %v3530 = vpop.f32.mrb[0].mxu0
      %3531 = vmatprep.mubr.bf16.mxu0 %v2916
      %3532 = vmatmul.mubr.bf16.gmra.mrb[0].mxu0 %v2852
      %v3533 = vpop.f32.mrb[0].mxu0
      %v3534 = vadd.f32 %v3373, %v3533
      %v3535 = vpop.f32.mrb[0].mxu0
      %v3536 = vpop.f32.mrb[0].mxu0
      %v3537 = vadd.f32 %v3376, %v3536
      %v3538 = vpop.f32.mrb[0].mxu0
      %3539 = vmatprep.mubr.bf16.mxu0 %v2920
      %3540 = vmatmul.mubr.bf16.gmra.mrb[0].mxu0 %v2856
      %v3541 = vpop.f32.mrb[0].mxu0
      %v3542 = vadd.f32 %v3381, %v3541
      %v3543 = vpop.f32.mrb[0].mxu0
      %v3544 = vpop.f32.mrb[0].mxu0
      %v3545 = vadd.f32 %v3384, %v3544
      %v3546 = vpop.f32.mrb[0].mxu0
      %3547 = vmatprep.mubr.bf16.mxu0 %v2924
      %3548 = vmatmul.mubr.bf16.gmra.mrb[0].mxu0 %v2860
      %v3549 = vpop.f32.mrb[0].mxu0
      %v3550 = vadd.f32 %v3389, %v3549
      %v3551 = vpop.f32.mrb[0].mxu0
      %v3552 = vpop.f32.mrb[0].mxu0
      %v3553 = vadd.f32 %v3392, %v3552
      %v3554 = vpop.f32.mrb[0].mxu0
      %3555 = vmatprep.mubr.bf16.mxu0 %v2928
      %3556 = vmatmul.mubr.bf16.gmra.mrb[0].mxu0 %v2864
      %v3557 = vpop.f32.mrb[0].mxu0
      %v3558 = vadd.f32 %v3397, %v3557
      %v3559 = vpop.f32.mrb[0].mxu0
      %v3560 = vpop.f32.mrb[0].mxu0
      %v3561 = vadd.f32 %v3400, %v3560
      %v3562 = vpop.f32.mrb[0].mxu0
      %3563 = vmatprep.mubr.bf16.mxu0 %v2932
      %3564 = vmatmul.mubr.bf16.gmra.mrb[0].mxu0 %v2868
      %v3565 = vpop.f32.mrb[0].mxu0
      %v3566 = vadd.f32 %v3405, %v3565
      %v3567 = vpop.f32.mrb[0].mxu0
      %v3568 = vpop.f32.mrb[0].mxu0
      %v3569 = vadd.f32 %v3408, %v3568
      %v3570 = vpop.f32.mrb[0].mxu0
      %3571 = vmatprep.mubr.bf16.mxu0 %v2936
      %3572 = vmatmul.mubr.bf16.gmra.mrb[0].mxu0 %v2872
      %v3573 = vpop.f32.mrb[0].mxu0
      %v3574 = vadd.f32 %v3413, %v3573
      %v3575 = vpop.f32.mrb[0].mxu0
      %v3576 = vpop.f32.mrb[0].mxu0
      %v3577 = vadd.f32 %v3416, %v3576
      %v3578 = vpop.f32.mrb[0].mxu0
      %3579 = vmatprep.mubr.bf16.mxu0 %v2940
      %3580 = vmatmul.mubr.bf16.gmra.mrb[0].mxu0 %v2876
      %v3581 = vpop.f32.mrb[0].mxu0
      %v3582 = vadd.f32 %v3421, %v3581
      %v3583 = vpop.f32.mrb[0].mxu0
      %v3584 = vpop.f32.mrb[0].mxu0
      %v3585 = vadd.f32 %v3424, %v3584
      %v3586 = vpop.f32.mrb[0].mxu0
      %3587 = vmatprep.mubr.bf16.mxu0 %v2944
      %3588 = vmatmul.mubr.bf16.gmra.mrb[0].mxu0 %v2880
      %v3589 = vpop.f32.mrb[0].mxu0
      %v3590 = vadd.f32 %v3429, %v3589
      %v3591 = vpop.f32.mrb[0].mxu0
      %v3592 = vpop.f32.mrb[0].mxu0
      %v3593 = vadd.f32 %v3432, %v3592
      %v3594 = vpop.f32.mrb[0].mxu0
      %3595 = vmatprep.mubr.bf16.mxu0 %v2948
      %3596 = vmatmul.mubr.bf16.gmra.mrb[0].mxu0 %v2884
      %v3597 = vpop.f32.mrb[0].mxu0
      %v3598 = vadd.f32 %v3437, %v3597
      %v3599 = vpop.f32.mrb[0].mxu0
      %v3600 = vpop.f32.mrb[0].mxu0
      %v3601 = vadd.f32 %v3440, %v3600
      %v3602 = vpop.f32.mrb[0].mxu0
      %3603 = vmatprep.mubr.bf16.mxu0 %v2952
      %3604 = vmatmul.mubr.bf16.gmra.mrb[0].mxu0 %v2888
      %v3605 = vpop.f32.mrb[0].mxu0
      %v3606 = vadd.f32 %v3445, %v3605
      %v3607 = vpop.f32.mrb[0].mxu0
      %v3608 = vpop.f32.mrb[0].mxu0
      %v3609 = vadd.f32 %v3448, %v3608
      %v3610 = vpop.f32.mrb[0].mxu0
      %3611 = vdwg.mxu0
      %3612 = vmatprep.subr.bf16.mxu0 0
      %3613 = vmatpush1.bf16.msra.mxu0 %v3202
      %3614 = vmatprep.subr.bf16.mxu0 0
      %3615 = vmatpush1.bf16.msra.mxu0 %v3203
      %3616 = vmatprep.subr.bf16.mxu0 0
      %3617 = vmatpush1.bf16.msra.mxu0 %v3204
      %3618 = vmatprep.subr.bf16.mxu0 0
      %3619 = vmatpush1.bf16.msra.mxu0 %v3205
      %3620 = vmatprep.subr.bf16.mxu0 0
      %3621 = vmatpush1.bf16.msra.mxu0 0
      %3622 = vmatprep.subr.bf16.mxu0 0
      %3623 = vmatpush1.bf16.msra.mxu0 0
      %3624 = vmatprep.subr.bf16.mxu0 0
      %3625 = vmatpush1.bf16.msra.mxu0 0
      %3626 = vmatprep.subr.bf16.mxu0 0
      %3627 = vmatpush1.bf16.msra.mxu0 0
      %3628 = vmatprep.subr.bf16.mxu0 0
      %3629 = vmatpush1.bf16.msra.mxu0 0
      %3630 = vmatprep.subr.bf16.mxu0 0
      %3631 = vmatpush1.bf16.msra.mxu0 0
      %3632 = vmatprep.subr.bf16.mxu0 0
      %3633 = vmatpush1.bf16.msra.mxu0 0
      %3634 = vmatprep.subr.bf16.mxu0 0
      %3635 = vmatpush1.bf16.msra.mxu0 0
      %3636 = vmatprep.subr.bf16.mxu0 0
      %3637 = vmatpush1.bf16.msra.mxu0 0
      %3638 = vmatprep.subr.bf16.mxu0 0
      %3639 = vmatpush1.bf16.msra.mxu0 0
      %3640 = vmatprep.subr.bf16.mxu0 0
      %3641 = vmatpush1.bf16.msra.mxu0 0
      %3642 = vmatprep.subr.bf16.mxu0 0
      %3643 = vmatpush1.bf16.msra.mxu0 0
      %3644 = vmatprep.mubr.bf16.mxu0 0
      %3645 = vmatmul.mubr.bf16.gmra.mrb[0].mxu0 %v3243
      %v3646 = vpop.f32.mrb[0].mxu0
      %v3647 = vadd.f32 %v3486, %v3646
      %v3648 = vpop.f32.mrb[0].mxu0
      %v3649 = vpop.f32.mrb[0].mxu0
      %v3650 = vadd.f32 %v3489, %v3649
      %v3651 = vpop.f32.mrb[0].mxu0
      %3652 = vmatprep.mubr.bf16.mxu0 0
      %3653 = vmatmul.mubr.bf16.gmra.mrb[0].mxu0 %v3246
      %v3654 = vpop.f32.mrb[0].mxu0
      %v3655 = vadd.f32 %v3494, %v3654
      %v3656 = vpop.f32.mrb[0].mxu0
      %v3657 = vpop.f32.mrb[0].mxu0
      %v3658 = vadd.f32 %v3497, %v3657
      %v3659 = vpop.f32.mrb[0].mxu0
      %3660 = vmatprep.mubr.bf16.mxu0 0
      %3661 = vmatmul.mubr.bf16.gmra.mrb[0].mxu0 %v3249
      %v3662 = vpop.f32.mrb[0].mxu0
      %v3663 = vadd.f32 %v3502, %v3662
      %v3664 = vpop.f32.mrb[0].mxu0
      %v3665 = vpop.f32.mrb[0].mxu0
      %v3666 = vadd.f32 %v3505, %v3665
      %v3667 = vpop.f32.mrb[0].mxu0
      %3668 = vmatprep.mubr.bf16.mxu0 0
      %3669 = vmatmul.mubr.bf16.gmra.mrb[0].mxu0 %v3252
      %v3670 = vpop.f32.mrb[0].mxu0
      %v3671 = vadd.f32 %v3510, %v3670
      %v3672 = vpop.f32.mrb[0].mxu0
      %v3673 = vpop.f32.mrb[0].mxu0
      %v3674 = vadd.f32 %v3513, %v3673
      %v3675 = vpop.f32.mrb[0].mxu0
      %3676 = vmatprep.mubr.bf16.mxu0 0
      %3677 = vmatmul.mubr.bf16.gmra.mrb[0].mxu0 %v3255
      %v3678 = vpop.f32.mrb[0].mxu0
      %v3679 = vadd.f32 %v3518, %v3678
      %v3680 = vpop.f32.mrb[0].mxu0
      %v3681 = vpop.f32.mrb[0].mxu0
      %v3682 = vadd.f32 %v3521, %v3681
      %v3683 = vpop.f32.mrb[0].mxu0
      %3684 = vmatprep.mubr.bf16.mxu0 0
      %3685 = vmatmul.mubr.bf16.gmra.mrb[0].mxu0 %v3258
      %v3686 = vpop.f32.mrb[0].mxu0
      %v3687 = vadd.f32 %v3526, %v3686
      %v3688 = vpop.f32.mrb[0].mxu0
      %v3689 = vpop.f32.mrb[0].mxu0
      %v3690 = vadd.f32 %v3529, %v3689
      %v3691 = vpop.f32.mrb[0].mxu0
      %3692 = vmatprep.mubr.bf16.mxu0 0
      %3693 = vmatmul.mubr.bf16.gmra.mrb[0].mxu0 %v3261
      %v3694 = vpop.f32.mrb[0].mxu0
      %v3695 = vadd.f32 %v3534, %v3694
      %v3696 = vpop.f32.mrb[0].mxu0
      %v3697 = vpop.f32.mrb[0].mxu0
      %v3698 = vadd.f32 %v3537, %v3697
      %v3699 = vpop.f32.mrb[0].mxu0
      %3700 = vmatprep.mubr.bf16.mxu0 0
      %3701 = vmatmul.mubr.bf16.gmra.mrb[0].mxu0 %v3264
      %v3702 = vpop.f32.mrb[0].mxu0
      %v3703 = vadd.f32 %v3542, %v3702
      %v3704 = vpop.f32.mrb[0].mxu0
      %v3705 = vpop.f32.mrb[0].mxu0
      %v3706 = vadd.f32 %v3545, %v3705
      %v3707 = vpop.f32.mrb[0].mxu0
      %3708 = vmatprep.mubr.bf16.mxu0 0
      %3709 = vmatmul.mubr.bf16.gmra.mrb[0].mxu0 %v3267
      %v3710 = vpop.f32.mrb[0].mxu0
      %v3711 = vadd.f32 %v3550, %v3710
      %v3712 = vpop.f32.mrb[0].mxu0
      %v3713 = vpop.f32.mrb[0].mxu0
      %v3714 = vadd.f32 %v3553, %v3713
      %v3715 = vpop.f32.mrb[0].mxu0
      %3716 = vmatprep.mubr.bf16.mxu0 0
      %3717 = vmatmul.mubr.bf16.gmra.mrb[0].mxu0 %v3270
      %v3718 = vpop.f32.mrb[0].mxu0
      %v3719 = vadd.f32 %v3558, %v3718
      %v3720 = vpop.f32.mrb[0].mxu0
      %v3721 = vpop.f32.mrb[0].mxu0
      %v3722 = vadd.f32 %v3561, %v3721
      %v3723 = vpop.f32.mrb[0].mxu0
      %3724 = vmatprep.mubr.bf16.mxu0 0
      %3725 = vmatmul.mubr.bf16.gmra.mrb[0].mxu0 %v3273
      %v3726 = vpop.f32.mrb[0].mxu0
      %v3727 = vadd.f32 %v3566, %v3726
      %v3728 = vpop.f32.mrb[0].mxu0
      %v3729 = vpop.f32.mrb[0].mxu0
      %v3730 = vadd.f32 %v3569, %v3729
      %v3731 = vpop.f32.mrb[0].mxu0
      %3732 = vmatprep.mubr.bf16.mxu0 0
      %3733 = vmatmul.mubr.bf16.gmra.mrb[0].mxu0 %v3276
      %v3734 = vpop.f32.mrb[0].mxu0
      %v3735 = vadd.f32 %v3574, %v3734
      %v3736 = vpop.f32.mrb[0].mxu0
      %v3737 = vpop.f32.mrb[0].mxu0
      %v3738 = vadd.f32 %v3577, %v3737
      %v3739 = vpop.f32.mrb[0].mxu0
      %3740 = vmatprep.mubr.bf16.mxu0 0
      %3741 = vmatmul.mubr.bf16.gmra.mrb[0].mxu0 %v3279
      %v3742 = vpop.f32.mrb[0].mxu0
      %v3743 = vadd.f32 %v3582, %v3742
      %v3744 = vpop.f32.mrb[0].mxu0
      %v3745 = vpop.f32.mrb[0].mxu0
      %v3746 = vadd.f32 %v3585, %v3745
      %v3747 = vpop.f32.mrb[0].mxu0
      %3748 = vmatprep.mubr.bf16.mxu0 0
      %3749 = vmatmul.mubr.bf16.gmra.mrb[0].mxu0 %v3282
      %v3750 = vpop.f32.mrb[0].mxu0
      %v3751 = vadd.f32 %v3590, %v3750
      %v3752 = vpop.f32.mrb[0].mxu0
      %v3753 = vpop.f32.mrb[0].mxu0
      %v3754 = vadd.f32 %v3593, %v3753
      %v3755 = vpop.f32.mrb[0].mxu0
      %3756 = vmatprep.mubr.bf16.mxu0 0
      %3757 = vmatmul.mubr.bf16.gmra.mrb[0].mxu0 %v3285
      %v3758 = vpop.f32.mrb[0].mxu0
      %v3759 = vadd.f32 %v3598, %v3758
      %v3760 = vpop.f32.mrb[0].mxu0
      %v3761 = vpop.f32.mrb[0].mxu0
      %v3762 = vadd.f32 %v3601, %v3761
      %v3763 = vpop.f32.mrb[0].mxu0
      %3764 = vmatprep.mubr.bf16.mxu0 0
      %3765 = vmatmul.mubr.bf16.gmra.mrb[0].mxu0 %v3288
      %v3766 = vpop.f32.mrb[0].mxu0
      %v3767 = vadd.f32 %v3606, %v3766
      %v3768 = vpop.f32.mrb[0].mxu0
      %v3769 = vpop.f32.mrb[0].mxu0
      %v3770 = vadd.f32 %v3609, %v3769
      %v3771 = vpop.f32.mrb[0].mxu0
      %3772 = vdwg.mxu0
      %v3773 = vld [vmem:[%s249] sm:$0x1]
      %v3775 = vlaneseq
      %v3776 = vshrl.u32 %v3775, 7
      %v3777 = vsub.s32 0, %v3776
      %v3778 = vrot.slane %v3773, %v3777
      %v3780 = vmul.f32 %v3647, %v3778
      %v3781 = vmul.f32 %v3650, %v3778
      %v3782 = vmul.f32 %v3655, %v3778
      %v3783 = vmul.f32 %v3658, %v3778
      %v3784 = vmul.f32 %v3663, %v3778
      %v3785 = vmul.f32 %v3666, %v3778
      %v3786 = vmul.f32 %v3671, %v3778
      %v3787 = vmul.f32 %v3674, %v3778
      %v3788 = vmul.f32 %v3679, %v3778
      %v3789 = vmul.f32 %v3682, %v3778
      %v3790 = vmul.f32 %v3687, %v3778
      %v3791 = vmul.f32 %v3690, %v3778
      %v3792 = vmul.f32 %v3695, %v3778
      %v3793 = vmul.f32 %v3698, %v3778
      %v3794 = vmul.f32 %v3703, %v3778
      %v3795 = vmul.f32 %v3706, %v3778
      %v3796 = vmul.f32 %v3711, %v3778
      %v3797 = vmul.f32 %v3714, %v3778
      %v3798 = vmul.f32 %v3719, %v3778
      %v3799 = vmul.f32 %v3722, %v3778
      %v3800 = vmul.f32 %v3727, %v3778
      %v3801 = vmul.f32 %v3730, %v3778
      %v3802 = vmul.f32 %v3735, %v3778
      %v3803 = vmul.f32 %v3738, %v3778
      %v3804 = vmul.f32 %v3743, %v3778
      %v3805 = vmul.f32 %v3746, %v3778
      %v3806 = vmul.f32 %v3751, %v3778
      %v3807 = vmul.f32 %v3754, %v3778
      %v3808 = vmul.f32 %v3759, %v3778
      %v3809 = vmul.f32 %v3762, %v3778
      %v3810 = vmul.f32 %v3767, %v3778
      %v3811 = vmul.f32 %v3770, %v3778
      %v3812 = vld [vmem:[%s252] sm:$0x1]
      %v3814 = vlaneseq
      %v3815 = vshrl.u32 %v3814, 7
      %v3816 = vsub.s32 0, %v3815
      %v3817 = vrot.slane %v3812, %v3816
      %v3819 = vadd.f32 %v3780, %v3817
      %v3820 = vadd.f32 %v3781, %v3817
      %v3821 = vadd.f32 %v3782, %v3817
      %v3822 = vadd.f32 %v3783, %v3817
      %v3823 = vadd.f32 %v3784, %v3817
      %v3824 = vadd.f32 %v3785, %v3817
      %v3825 = vadd.f32 %v3786, %v3817
      %v3826 = vadd.f32 %v3787, %v3817
      %v3827 = vadd.f32 %v3788, %v3817
      %v3828 = vadd.f32 %v3789, %v3817
      %v3829 = vadd.f32 %v3790, %v3817
      %v3830 = vadd.f32 %v3791, %v3817
      %v3831 = vadd.f32 %v3792, %v3817
      %v3832 = vadd.f32 %v3793, %v3817
      %v3833 = vadd.f32 %v3794, %v3817
      %v3834 = vadd.f32 %v3795, %v3817
      %v3835 = vadd.f32 %v3796, %v3817
      %v3836 = vadd.f32 %v3797, %v3817
      %v3837 = vadd.f32 %v3798, %v3817
      %v3838 = vadd.f32 %v3799, %v3817
      %v3839 = vadd.f32 %v3800, %v3817
      %v3840 = vadd.f32 %v3801, %v3817
      %v3841 = vadd.f32 %v3802, %v3817
      %v3842 = vadd.f32 %v3803, %v3817
      %v3843 = vadd.f32 %v3804, %v3817
      %v3844 = vadd.f32 %v3805, %v3817
      %v3845 = vadd.f32 %v3806, %v3817
      %v3846 = vadd.f32 %v3807, %v3817
      %v3847 = vadd.f32 %v3808, %v3817
      %v3848 = vadd.f32 %v3809, %v3817
      %v3849 = vadd.f32 %v3810, %v3817
      %v3850 = vadd.f32 %v3811, %v3817
      %p3851 = scmp.lt.s32.totalorder %s20, 16
      // Predicated region
      $region41: #{dncnn_forward.1} parent=35 // pred_check
        %p3852 = pneg %p3851
      $region42: #{dncnn_forward.1} parent=35 // pred_check_branch
        %3854 = sbr.rel (%p3852) target = $region44
      $region43: #{dncnn_forward.1} parent=35 // pred_region
        %v3855 = vmax.f32 %v3819, 0.0
        %v3856 = vmax.f32 %v3820, 0.0
        %v3857 = vmax.f32 %v3821, 0.0
        %v3858 = vmax.f32 %v3822, 0.0
        %v3859 = vmax.f32 %v3823, 0.0
        %v3860 = vmax.f32 %v3824, 0.0
        %v3861 = vmax.f32 %v3825, 0.0
        %v3862 = vmax.f32 %v3826, 0.0
        %v3863 = vmax.f32 %v3827, 0.0
        %v3864 = vmax.f32 %v3828, 0.0
        %v3865 = vmax.f32 %v3829, 0.0
        %v3866 = vmax.f32 %v3830, 0.0
        %v3867 = vmax.f32 %v3831, 0.0
        %v3868 = vmax.f32 %v3832, 0.0
        %v3869 = vmax.f32 %v3833, 0.0
        %v3870 = vmax.f32 %v3834, 0.0
        %v3871 = vmax.f32 %v3835, 0.0
        %v3872 = vmax.f32 %v3836, 0.0
        %v3873 = vmax.f32 %v3837, 0.0
        %v3874 = vmax.f32 %v3838, 0.0
        %v3875 = vmax.f32 %v3839, 0.0
        %v3876 = vmax.f32 %v3840, 0.0
        %v3877 = vmax.f32 %v3841, 0.0
        %v3878 = vmax.f32 %v3842, 0.0
        %v3879 = vmax.f32 %v3843, 0.0
        %v3880 = vmax.f32 %v3844, 0.0
        %v3881 = vmax.f32 %v3845, 0.0
        %v3882 = vmax.f32 %v3846, 0.0
        %v3883 = vmax.f32 %v3847, 0.0
        %v3884 = vmax.f32 %v3848, 0.0
        %v3885 = vmax.f32 %v3849, 0.0
        %v3886 = vmax.f32 %v3850, 0.0
        %v3887 = vpack.c.bf16 %v3856, %v3855
        %v3888 = vpack.c.bf16 %v3858, %v3857
        %v3889 = vpack.c.bf16 %v3860, %v3859
        %v3890 = vpack.c.bf16 %v3862, %v3861
        %v3891 = vpack.c.bf16 %v3864, %v3863
        %v3892 = vpack.c.bf16 %v3866, %v3865
        %v3893 = vpack.c.bf16 %v3868, %v3867
        %v3894 = vpack.c.bf16 %v3870, %v3869
        %v3895 = vpack.c.bf16 %v3872, %v3871
        %v3896 = vpack.c.bf16 %v3874, %v3873
        %v3897 = vpack.c.bf16 %v3876, %v3875
        %v3898 = vpack.c.bf16 %v3878, %v3877
        %v3899 = vpack.c.bf16 %v3880, %v3879
        %v3900 = vpack.c.bf16 %v3882, %v3881
        %v3901 = vpack.c.bf16 %v3884, %v3883
        %v3902 = vpack.c.bf16 %v3886, %v3885
        %v3919 = vrot.slane %v3887, 4
        %v3920 = vrot.slane %v3888, 4
        %v3921 = vrot.slane %v3889, 4
        %v3922 = vrot.slane %v3890, 4
        %v3923 = vrot.slane %v3891, 4
        %v3924 = vrot.slane %v3892, 4
        %v3925 = vrot.slane %v3893, 4
        %v3926 = vrot.slane %v3894, 4
        %v3927 = vrot.slane %v3895, 4
        %v3928 = vrot.slane %v3896, 4
        %v3929 = vrot.slane %v3897, 4
        %v3930 = vrot.slane %v3898, 4
        %v3931 = vrot.slane %v3899, 4
        %v3932 = vrot.slane %v3900, 4
        %v3933 = vrot.slane %v3901, 4
        %v3934 = vrot.slane %v3902, 4
        %vm3951 = vcmask 523268
        %3952 = vst.msk [vmem:[%s1191] sm:$0xf0] %vm3951, %v3919
        %vm3953 = vcmask 519168
        %3954 = vst.msk [vmem:[%s1191 + $0x8] sm:$0xf] %vm3953, %v3919
        %3955 = vst.msk [vmem:[%s1191 + $0x10] sm:$0xf0] %vm3951, %v3920
        %3956 = vst.msk [vmem:[%s1191 + $0x18] sm:$0xf] %vm3953, %v3920
        %3957 = vst.msk [vmem:[%s1191 + $0x20] sm:$0xf0] %vm3951, %v3921
        %3958 = vst.msk [vmem:[%s1191 + $0x28] sm:$0xf] %vm3953, %v3921
        %3959 = vst.msk [vmem:[%s1191 + $0x30] sm:$0xf0] %vm3951, %v3922
        %3960 = vst.msk [vmem:[%s1191 + $0x38] sm:$0xf] %vm3953, %v3922
        %3961 = vst.msk [vmem:[%s1191 + $0x40] sm:$0xf0] %vm3951, %v3923
        %3962 = vst.msk [vmem:[%s1191 + $0x48] sm:$0xf] %vm3953, %v3923
        %3963 = vst.msk [vmem:[%s1191 + $0x50] sm:$0xf0] %vm3951, %v3924
        %3964 = vst.msk [vmem:[%s1191 + $0x58] sm:$0xf] %vm3953, %v3924
        %3965 = vst.msk [vmem:[%s1191 + $0x60] sm:$0xf0] %vm3951, %v3925
        %3966 = vst.msk [vmem:[%s1191 + $0x68] sm:$0xf] %vm3953, %v3925
        %3967 = vst.msk [vmem:[%s1191 + $0x70] sm:$0xf0] %vm3951, %v3926
        %3968 = vst.msk [vmem:[%s1191 + $0x78] sm:$0xf] %vm3953, %v3926
        %3969 = vst.msk [vmem:[%s1191 + $0x80] sm:$0xf0] %vm3951, %v3927
        %3970 = vst.msk [vmem:[%s1191 + $0x88] sm:$0xf] %vm3953, %v3927
        %3971 = vst.msk [vmem:[%s1191 + $0x90] sm:$0xf0] %vm3951, %v3928
        %3972 = vst.msk [vmem:[%s1191 + $0x98] sm:$0xf] %vm3953, %v3928
        %3973 = vst.msk [vmem:[%s1191 + $0xa0] sm:$0xf0] %vm3951, %v3929
        %3974 = vst.msk [vmem:[%s1191 + $0xa8] sm:$0xf] %vm3953, %v3929
        %3975 = vst.msk [vmem:[%s1191 + $0xb0] sm:$0xf0] %vm3951, %v3930
        %3976 = vst.msk [vmem:[%s1191 + $0xb8] sm:$0xf] %vm3953, %v3930
        %3977 = vst.msk [vmem:[%s1191 + $0xc0] sm:$0xf0] %vm3951, %v3931
        %3978 = vst.msk [vmem:[%s1191 + $0xc8] sm:$0xf] %vm3953, %v3931
        %3979 = vst.msk [vmem:[%s1191 + $0xd0] sm:$0xf0] %vm3951, %v3932
        %3980 = vst.msk [vmem:[%s1191 + $0xd8] sm:$0xf] %vm3953, %v3932
        %3981 = vst.msk [vmem:[%s1191 + $0xe0] sm:$0xf0] %vm3951, %v3933
        %3982 = vst.msk [vmem:[%s1191 + $0xe8] sm:$0xf] %vm3953, %v3933
        %3983 = vst.msk [vmem:[%s1191 + $0xf0] sm:$0xf0] %vm3951, %v3934
        %3984 = vst.msk [vmem:[%s1191 + $0xf8] sm:$0xf] %vm3953, %v3934
      $region44: #{dncnn_forward.1} parent=35 // pred_fallthru
        _
      %p3985 = scmp.eq.s32.totalorder %s20, 16
      // Predicated region
      $region45: #{dncnn_forward.1} parent=35 // pred_check
        %p3986 = pneg %p3985
      $region46: #{dncnn_forward.1} parent=35 // pred_check_branch
        %3988 = sbr.rel (%p3986) target = $region48
      $region47: #{dncnn_forward.1} parent=35 // pred_region
        %v3989 = vld [vmem:[%s241] sm:$0xf]
        %v3990 = vld [vmem:[%s241 + $0x4] sm:$0xf]
        %v3991 = vld [vmem:[%s241 + $0x8] sm:$0xf]
        %v3992 = vld [vmem:[%s241 + $0xc] sm:$0xf]
        %v3993 = vld [vmem:[%s241 + $0x10] sm:$0xf]
        %v3994 = vld [vmem:[%s241 + $0x14] sm:$0xf]
        %v3995 = vld [vmem:[%s241 + $0x18] sm:$0xf]
        %v3996 = vld [vmem:[%s241 + $0x1c] sm:$0xf]
        %v3997 = vld [vmem:[%s241 + $0x20] sm:$0xf]
        %v3998 = vld [vmem:[%s241 + $0x24] sm:$0xf]
        %v3999 = vld [vmem:[%s241 + $0x28] sm:$0xf]
        %v4000 = vld [vmem:[%s241 + $0x2c] sm:$0xf]
        %v4001 = vld [vmem:[%s241 + $0x30] sm:$0xf]
        %v4002 = vld [vmem:[%s241 + $0x34] sm:$0xf]
        %v4003 = vld [vmem:[%s241 + $0x38] sm:$0xf]
        %v4004 = vld [vmem:[%s241 + $0x3c] sm:$0xf]
        %v4005 = vld [vmem:[%s241 + $0x40] sm:$0xf]
        %v4006 = vld [vmem:[%s241 + $0x44] sm:$0xf]
        %v4007 = vld [vmem:[%s241 + $0x48] sm:$0xf]
        %v4008 = vld [vmem:[%s241 + $0x4c] sm:$0xf]
        %v4009 = vld [vmem:[%s241 + $0x50] sm:$0xf]
        %v4010 = vld [vmem:[%s241 + $0x54] sm:$0xf]
        %v4011 = vld [vmem:[%s241 + $0x58] sm:$0xf]
        %v4012 = vld [vmem:[%s241 + $0x5c] sm:$0xf]
        %v4013 = vld [vmem:[%s241 + $0x60] sm:$0xf]
        %v4014 = vld [vmem:[%s241 + $0x64] sm:$0xf]
        %v4015 = vld [vmem:[%s241 + $0x68] sm:$0xf]
        %v4016 = vld [vmem:[%s241 + $0x6c] sm:$0xf]
        %v4017 = vld [vmem:[%s241 + $0x70] sm:$0xf]
        %v4018 = vld [vmem:[%s241 + $0x74] sm:$0xf]
        %v4019 = vld [vmem:[%s241 + $0x78] sm:$0xf]
        %v4020 = vld [vmem:[%s241 + $0x7c] sm:$0xf]
        %v4021 = vunpack.c.l.bf16 %v3989
        %v4022 = vunpack.c.l.bf16 %v3990
        %v4023 = vunpack.c.l.bf16 %v3991
        %v4024 = vunpack.c.l.bf16 %v3992
        %v4025 = vunpack.c.l.bf16 %v3993
        %v4026 = vunpack.c.l.bf16 %v3994
        %v4027 = vunpack.c.l.bf16 %v3995
        %v4028 = vunpack.c.l.bf16 %v3996
        %v4029 = vunpack.c.l.bf16 %v3997
        %v4030 = vunpack.c.l.bf16 %v3998
        %v4031 = vunpack.c.l.bf16 %v3999
        %v4032 = vunpack.c.l.bf16 %v4000
        %v4033 = vunpack.c.l.bf16 %v4001
        %v4034 = vunpack.c.l.bf16 %v4002
        %v4035 = vunpack.c.l.bf16 %v4003
        %v4036 = vunpack.c.l.bf16 %v4004
        %v4037 = vunpack.c.l.bf16 %v4005
        %v4038 = vunpack.c.l.bf16 %v4006
        %v4039 = vunpack.c.l.bf16 %v4007
        %v4040 = vunpack.c.l.bf16 %v4008
        %v4041 = vunpack.c.l.bf16 %v4009
        %v4042 = vunpack.c.l.bf16 %v4010
        %v4043 = vunpack.c.l.bf16 %v4011
        %v4044 = vunpack.c.l.bf16 %v4012
        %v4045 = vunpack.c.l.bf16 %v4013
        %v4046 = vunpack.c.l.bf16 %v4014
        %v4047 = vunpack.c.l.bf16 %v4015
        %v4048 = vunpack.c.l.bf16 %v4016
        %v4049 = vunpack.c.l.bf16 %v4017
        %v4050 = vunpack.c.l.bf16 %v4018
        %v4051 = vunpack.c.l.bf16 %v4019
        %v4052 = vunpack.c.l.bf16 %v4020
        %v4053 = vsub.f32 %v4021, %v3819
        %v4054 = vsub.f32 %v4022, %v3820
        %v4055 = vsub.f32 %v4023, %v3821
        %v4056 = vsub.f32 %v4024, %v3822
        %v4057 = vsub.f32 %v4025, %v3823
        %v4058 = vsub.f32 %v4026, %v3824
        %v4059 = vsub.f32 %v4027, %v3825
        %v4060 = vsub.f32 %v4028, %v3826
        %v4061 = vsub.f32 %v4029, %v3827
        %v4062 = vsub.f32 %v4030, %v3828
        %v4063 = vsub.f32 %v4031, %v3829
        %v4064 = vsub.f32 %v4032, %v3830
        %v4065 = vsub.f32 %v4033, %v3831
        %v4066 = vsub.f32 %v4034, %v3832
        %v4067 = vsub.f32 %v4035, %v3833
        %v4068 = vsub.f32 %v4036, %v3834
        %v4069 = vsub.f32 %v4037, %v3835
        %v4070 = vsub.f32 %v4038, %v3836
        %v4071 = vsub.f32 %v4039, %v3837
        %v4072 = vsub.f32 %v4040, %v3838
        %v4073 = vsub.f32 %v4041, %v3839
        %v4074 = vsub.f32 %v4042, %v3840
        %v4075 = vsub.f32 %v4043, %v3841
        %v4076 = vsub.f32 %v4044, %v3842
        %v4077 = vsub.f32 %v4045, %v3843
        %v4078 = vsub.f32 %v4046, %v3844
        %v4079 = vsub.f32 %v4047, %v3845
        %v4080 = vsub.f32 %v4048, %v3846
        %v4081 = vsub.f32 %v4049, %v3847
        %v4082 = vsub.f32 %v4050, %v3848
        %v4083 = vsub.f32 %v4051, %v3849
        %v4084 = vsub.f32 %v4052, %v3850
        %v4085 = vpack.c.bf16 %v4054, %v4053
        %v4086 = vpack.c.bf16 %v4056, %v4055
        %v4087 = vpack.c.bf16 %v4058, %v4057
        %v4088 = vpack.c.bf16 %v4060, %v4059
        %v4089 = vpack.c.bf16 %v4062, %v4061
        %v4090 = vpack.c.bf16 %v4064, %v4063
        %v4091 = vpack.c.bf16 %v4066, %v4065
        %v4092 = vpack.c.bf16 %v4068, %v4067
        %v4093 = vpack.c.bf16 %v4070, %v4069
        %v4094 = vpack.c.bf16 %v4072, %v4071
        %v4095 = vpack.c.bf16 %v4074, %v4073
        %v4096 = vpack.c.bf16 %v4076, %v4075
        %v4097 = vpack.c.bf16 %v4078, %v4077
        %v4098 = vpack.c.bf16 %v4080, %v4079
        %v4099 = vpack.c.bf16 %v4082, %v4081
        %v4100 = vpack.c.bf16 %v4084, %v4083
        %v4117 = vunpack.c.l.b16 %v4085
        %v4118 = vunpack.c.h.b16 %v4085
        %v4119 = vunpack.c.l.b16 %v4086
        %v4120 = vunpack.c.h.b16 %v4086
        %v4121 = vunpack.c.l.b16 %v4087
        %v4122 = vunpack.c.h.b16 %v4087
        %v4123 = vunpack.c.l.b16 %v4088
        %v4124 = vunpack.c.h.b16 %v4088
        %v4125 = vunpack.c.l.b16 %v4089
        %v4126 = vunpack.c.h.b16 %v4089
        %v4127 = vunpack.c.l.b16 %v4090
        %v4128 = vunpack.c.h.b16 %v4090
        %v4129 = vunpack.c.l.b16 %v4091
        %v4130 = vunpack.c.h.b16 %v4091
        %v4131 = vunpack.c.l.b16 %v4092
        %v4132 = vunpack.c.h.b16 %v4092
        %v4133 = vunpack.c.l.b16 %v4093
        %v4134 = vunpack.c.h.b16 %v4093
        %v4135 = vunpack.c.l.b16 %v4094
        %v4136 = vunpack.c.h.b16 %v4094
        %v4137 = vunpack.c.l.b16 %v4095
        %v4138 = vunpack.c.h.b16 %v4095
        %v4139 = vunpack.c.l.b16 %v4096
        %v4140 = vunpack.c.h.b16 %v4096
        %v4141 = vunpack.c.l.b16 %v4097
        %v4142 = vunpack.c.h.b16 %v4097
        %v4143 = vunpack.c.l.b16 %v4098
        %v4144 = vunpack.c.h.b16 %v4098
        %v4145 = vunpack.c.l.b16 %v4099
        %v4146 = vunpack.c.h.b16 %v4099
        %v4147 = vunpack.c.l.b16 %v4100
        %v4148 = vunpack.c.h.b16 %v4100
        %v4149 = vpack.c.b16 %v4117, %v4117
        %v4150 = vpack.c.b16 %v4118, %v4118
        %v4151 = vpack.c.b16 %v4119, %v4119
        %v4152 = vpack.c.b16 %v4120, %v4120
        %v4153 = vpack.c.b16 %v4121, %v4121
        %v4154 = vpack.c.b16 %v4122, %v4122
        %v4155 = vpack.c.b16 %v4123, %v4123
        %v4156 = vpack.c.b16 %v4124, %v4124
        %v4157 = vpack.c.b16 %v4125, %v4125
        %v4158 = vpack.c.b16 %v4126, %v4126
        %v4159 = vpack.c.b16 %v4127, %v4127
        %v4160 = vpack.c.b16 %v4128, %v4128
        %v4161 = vpack.c.b16 %v4129, %v4129
        %v4162 = vpack.c.b16 %v4130, %v4130
        %v4163 = vpack.c.b16 %v4131, %v4131
        %v4164 = vpack.c.b16 %v4132, %v4132
        %v4165 = vpack.c.b16 %v4133, %v4133
        %v4166 = vpack.c.b16 %v4134, %v4134
        %v4167 = vpack.c.b16 %v4135, %v4135
        %v4168 = vpack.c.b16 %v4136, %v4136
        %v4169 = vpack.c.b16 %v4137, %v4137
        %v4170 = vpack.c.b16 %v4138, %v4138
        %v4171 = vpack.c.b16 %v4139, %v4139
        %v4172 = vpack.c.b16 %v4140, %v4140
        %v4173 = vpack.c.b16 %v4141, %v4141
        %v4174 = vpack.c.b16 %v4142, %v4142
        %v4175 = vpack.c.b16 %v4143, %v4143
        %v4176 = vpack.c.b16 %v4144, %v4144
        %v4177 = vpack.c.b16 %v4145, %v4145
        %v4178 = vpack.c.b16 %v4146, %v4146
        %v4179 = vpack.c.b16 %v4147, %v4147
        %v4180 = vpack.c.b16 %v4148, %v4148
        %vm4213 = vcmask 519168
        %4214 = vst.msk [vmem:[%s257] sm:$0xf] %vm4213, %v4149
        %4215 = vst.msk [vmem:[%s257 + $0x4] sm:$0xf] %vm4213, %v4150
        %4216 = vst.msk [vmem:[%s257 + $0x8] sm:$0xf] %vm4213, %v4151
        %4217 = vst.msk [vmem:[%s257 + $0xc] sm:$0xf] %vm4213, %v4152
        %4218 = vst.msk [vmem:[%s257 + $0x10] sm:$0xf] %vm4213, %v4153
        %4219 = vst.msk [vmem:[%s257 + $0x14] sm:$0xf] %vm4213, %v4154
        %4220 = vst.msk [vmem:[%s257 + $0x18] sm:$0xf] %vm4213, %v4155
        %4221 = vst.msk [vmem:[%s257 + $0x1c] sm:$0xf] %vm4213, %v4156
        %4222 = vst.msk [vmem:[%s257 + $0x20] sm:$0xf] %vm4213, %v4157
        %4223 = vst.msk [vmem:[%s257 + $0x24] sm:$0xf] %vm4213, %v4158
        %4224 = vst.msk [vmem:[%s257 + $0x28] sm:$0xf] %vm4213, %v4159
        %4225 = vst.msk [vmem:[%s257 + $0x2c] sm:$0xf] %vm4213, %v4160
        %4226 = vst.msk [vmem:[%s257 + $0x30] sm:$0xf] %vm4213, %v4161
        %4227 = vst.msk [vmem:[%s257 + $0x34] sm:$0xf] %vm4213, %v4162
        %4228 = vst.msk [vmem:[%s257 + $0x38] sm:$0xf] %vm4213, %v4163
        %4229 = vst.msk [vmem:[%s257 + $0x3c] sm:$0xf] %vm4213, %v4164
        %4230 = vst.msk [vmem:[%s257 + $0x40] sm:$0xf] %vm4213, %v4165
        %4231 = vst.msk [vmem:[%s257 + $0x44] sm:$0xf] %vm4213, %v4166
        %4232 = vst.msk [vmem:[%s257 + $0x48] sm:$0xf] %vm4213, %v4167
        %4233 = vst.msk [vmem:[%s257 + $0x4c] sm:$0xf] %vm4213, %v4168
        %4234 = vst.msk [vmem:[%s257 + $0x50] sm:$0xf] %vm4213, %v4169
        %4235 = vst.msk [vmem:[%s257 + $0x54] sm:$0xf] %vm4213, %v4170
        %4236 = vst.msk [vmem:[%s257 + $0x58] sm:$0xf] %vm4213, %v4171
        %4237 = vst.msk [vmem:[%s257 + $0x5c] sm:$0xf] %vm4213, %v4172
        %4238 = vst.msk [vmem:[%s257 + $0x60] sm:$0xf] %vm4213, %v4173
        %4239 = vst.msk [vmem:[%s257 + $0x64] sm:$0xf] %vm4213, %v4174
        %4240 = vst.msk [vmem:[%s257 + $0x68] sm:$0xf] %vm4213, %v4175
        %4241 = vst.msk [vmem:[%s257 + $0x6c] sm:$0xf] %vm4213, %v4176
        %4242 = vst.msk [vmem:[%s257 + $0x70] sm:$0xf] %vm4213, %v4177
        %4243 = vst.msk [vmem:[%s257 + $0x74] sm:$0xf] %vm4213, %v4178
        %4244 = vst.msk [vmem:[%s257 + $0x78] sm:$0xf] %vm4213, %v4179
        %4245 = vst.msk [vmem:[%s257 + $0x7c] sm:$0xf] %vm4213, %v4180
      $region48: #{dncnn_forward.1} parent=35 // pred_fallthru
        _
      %p4246 = scmp.lt.s32.totalorder %s19, 1
      %s4247 = scalar_select %p4246, %s19, 1
      %s4248 = smul.addr %s4247, 32
      %s4249 = smul.addr %s4248, 4
      %s4250 = scalar_lea.vmem %s4, %s4249
      // Predicated region
      $region49: #{dncnn_forward.1} parent=35 // pred_check
        %p4251 = pneg %p149
      $region50: #{dncnn_forward.1} parent=35 // pred_check_branch
        %4253 = sbr.rel (%p4251) target = $region52
      $region51: #{dncnn_forward.1} parent=35 // pred_region
        _
      $region52: #{dncnn_forward.1} parent=35 // pred_fallthru
        _
    $region36: #{dncnn_forward.1} parent=5 // pred_fallthru
      _
    %p4254 = scmp.le.s32.totalorder 2, %s10
    // Predicated region
    $region53: #{dncnn_forward.1} parent=5 // pred_check
      %p4255 = pneg %p4254
    $region54: #{dncnn_forward.1} parent=5 // pred_check_branch
      %4257 = sbr.rel (%p4255) target = $region56
    $region55: #{dncnn_forward.1} parent=5 // pred_region
      %s4258 = ssub.s32 %s10, 2
      // Predicated region
      $region57: #{dncnn_forward.1} parent=55 // pred_check
        %p4259 = pneg %p155
      $region58: #{dncnn_forward.1} parent=55 // pred_check_branch
        %4261 = sbr.rel (%p4259) target = $region60
      $region59: #{dncnn_forward.1} parent=55 // pred_region
        %p4262 = scmp.lt.s32.totalorder %s21, 1
        %s4263 = scalar_select %p4262, %s21, 1
        %s4264 = smul.addr %s4263, 32
        %s4265 = smul.addr %s4264, 4
        %s4266 = scalar_lea.vmem %s4, %s4265
      $region60: #{dncnn_forward.1} parent=55 // pred_fallthru
        _
    $region56: #{dncnn_forward.1} parent=5 // pred_fallthru
      _
  $region6: #{dncnn_forward.1} parent=0 // loop_footer
    %s14 = sadd.s32 1, %s10
  $region7: #{dncnn_forward.1} parent=0 // loop_footer_branch
    %9 = sbr.rel target = $region3
  $region8: #{dncnn_forward.1} parent=0 // loop_exit
    _

</llo_original>
